<compile_context>
chip_gen: v5e
topology: v5e:2x2
jax: 0.10.0
libtpu: 0.0.40
codegen_flags: <defaults>
</compile_context>

<pallas_src>
import functools

import jax
import jax.numpy as jnp
from jax import lax
from jax.experimental import pallas as pl
from jax.experimental.pallas import tpu as pltpu

MXU_DTYPE = jnp.bfloat16  # matmul operand dtype (accumulation stays f32)


def _vmem_limit(nbytes, floor=32 * 1024 * 1024, cap=64 * 1024 * 1024):
    """Scoped-VMEM limit sized to actual residency with 2x headroom (clamped)."""
    return int(min(max(2 * nbytes, floor), cap))


# ----------------------------------------------------------------------------
# Kernel 1: one bidirectional LSTM layer (both directions fused in one kernel)
# ----------------------------------------------------------------------------
def bilstm_layer_kernel(x_ref, wih_ref, whh_ref, b_ref, out_ref, xg,
                        *, seq_len, batch):
    """Fused bidirectional LSTM layer (single sequential scan drives both directions).

    x_ref   : (T*B, In)  bf16   time-major input, flattened in the wrapper
    wih_ref : (In, 8H)   bf16   [fwd i|f|o|g  |  bwd i|f|o|g] input weights
    whh_ref : (2H, 8H)   bf16   blockdiag(Whh_fwd, Whh_bwd) recurrent weights
    b_ref   : (1, 8H)    f32    fused biases (b_ih + b_hh), both directions
    out_ref : (T, B, 2H) f32    [h_fwd | h_bwd] per timestep (no wrapper concat)
    xg      : (T, B, 8H) f32    VMEM scratch: hoisted input projections
    """
    T, B = seq_len, batch
    G = wih_ref.shape[1]          # 8H
    H4 = G // 2                   # 4H
    H = H4 // 4
    cdt = wih_ref.dtype

    # Hoisted input projection: ONE MXU matmul for all timesteps & both directions.
    xg[...] = (jnp.dot(x_ref[...], wih_ref[...],
                       preferred_element_type=jnp.float32)
               + b_ref[...]).reshape(T, B, G)

    # Recurrent weights are small (2H x 8H bf16): hoist the VMEM load out of the loop.
    w_blk = whh_ref[...]

    def cell(pre, c_prev):
        # pre: (B, 4H) pre-activations in gate order [i | f | o | g]
        s = jax.nn.sigmoid(pre[:, :3 * H])       # one wide sigmoid covers i, f, o
        g = jnp.tanh(pre[:, 3 * H:])
        c_new = s[:, H:2 * H] * c_prev + s[:, :H] * g
        h_new = s[:, 2 * H:] * jnp.tanh(c_new)
        return h_new, c_new

    def step(t, carry):
        h_cat, c_f, c_b = carry                  # h_cat = [h_f | h_b]  (B, 2H)
        # ONE block-diagonal recurrent matmul serves both directions (8H-lane result).
        rec = jnp.dot(h_cat.astype(cdt), w_blk, preferred_element_type=jnp.float32)
        tb = T - 1 - t
        pre_f = xg[t][:, :H4] + rec[:, :H4]      # forward direction, timestep t
        pre_b = xg[tb][:, H4:] + rec[:, H4:]     # backward direction, timestep T-1-t
        h_f, c_f = cell(pre_f, c_f)
        h_b, c_b = cell(pre_b, c_b)
        out_ref[t, :, 0:H] = h_f                 # fwd half of the fused output row
        out_ref[tb, :, H:2 * H] = h_b            # bwd half of the fused output row
        return jnp.concatenate([h_f, h_b], axis=-1), c_f, c_b

    z = jnp.zeros((B, H), jnp.float32)
    lax.fori_loop(0, T, step,
                  (jnp.zeros((B, 2 * H), jnp.float32), z, z),
                  unroll=True if T <= 64 else 4)


def run_bilstm_layer(x, p_fwd, p_bwd, mxu_dtype=MXU_DTYPE):
    """One bidirectional LSTM layer.

    x : (T, B, In) f32.  p_fwd/p_bwd = (w_ih (4H,In), w_hh (4H,H), b_ih (4H,), b_hh (4H,))
    in PyTorch gate order [i, f, g, o].  Returns (T, B, 2H) f32 (fwd | bwd concat).
    """
    T, B, In = x.shape
    H = p_fwd[1].shape[1]

    def prep(w_ih, w_hh, b_ih, b_hh):
        b = b_ih + b_hh
        def cat(w):   # (4H, X) torch order i,f,g,o -> (X, 4H) in order i,f,o,g
            gi, gf, gg, go = jnp.split(w, 4, axis=0)
            return jnp.transpose(jnp.concatenate([gi, gf, go, gg], axis=0))
        bi, bf_, bg, bo = jnp.split(b, 4)
        return cat(w_ih), cat(w_hh), jnp.concatenate([bi, bf_, bo, bg])

    wih_f, whh_f, b_f = prep(*p_fwd)
    wih_b, whh_b, b_b = prep(*p_bwd)

    # Fuse both directions: input weights side by side, recurrent weights block-diag.
    wih = jnp.concatenate([wih_f, wih_b], axis=1).astype(mxu_dtype)       # (In, 8H)
    bias = jnp.concatenate([b_f, b_b])[None, :].astype(jnp.float32)       # (1, 8H)
    zer = jnp.zeros((H, 4 * H), whh_f.dtype)
    whh_blk = jnp.concatenate(
        [jnp.concatenate([whh_f, zer], axis=1),
         jnp.concatenate([zer, whh_b], axis=1)], axis=0).astype(mxu_dtype)  # (2H, 8H)

    # Wrapper-side flatten + bf16 cast (free at HBM level, halves input DMA bytes).
    x2d = x.reshape(T * B, In).astype(mxu_dtype)

    nbytes = (x2d.size * 2 + wih.size * 2 + whh_blk.size * 2 + bias.size * 4
              + T * B * 2 * H * 4          # fused output
              + T * B * 8 * H * 4)         # xg scratch
    vmem = pl.BlockSpec(memory_space=pltpu.MemorySpace.VMEM)
    out = pl.pallas_call(
        functools.partial(bilstm_layer_kernel, seq_len=T, batch=B),
        out_shape=jax.ShapeDtypeStruct((T, B, 2 * H), jnp.float32),
        in_specs=[vmem] * 4,
        out_specs=vmem,
        scratch_shapes=[pltpu.VMEM((T, B, 8 * H), jnp.float32)],
        compiler_params=pltpu.CompilerParams(vmem_limit_bytes=_vmem_limit(nbytes)),
    )(x2d, wih, whh_blk, bias)
    return out                               # (T, B, 2H), no wrapper concat needed


# ----------------------------------------------------------------------------
# Kernel 2: MatchingAttention('general2') over all timesteps + classifier head
#           (fully batched, tiled over query blocks)
# ----------------------------------------------------------------------------
def attn_cls_kernel(k_ref, q_ref, mask_ref,
                    wt_ref, bt_ref, wl_ref, bl_ref, wf_ref, bfc_ref,
                    logp_ref, alpha_ref):
    """k_ref: (B, T, D) bf16 keys/memories (resident), q_ref: (B, tq, D) bf16 query
    block, mask_ref: (B, T) f32.  logp_ref: (B, tq, C), alpha_ref: (B, tq, T)."""
    B, T, D = k_ref.shape
    tq = q_ref.shape[1]
    cdt = k_ref.dtype

    K = k_ref[...]                       # (B, T, D) bf16
    Q = q_ref[...]                       # (B, tq, D) bf16
    mask = mask_ref[...]                 # (B, T)
    mk = mask[:, None, :]                # (B, 1, T) key mask

    # transform(x) for every query in the block: one big matmul
    xW = (jnp.dot(Q.reshape(B * tq, D), wt_ref[...],
                  preferred_element_type=jnp.float32)
          + bt_ref[...]).reshape(B, tq, D)

    # scores[b,q,k] = <xW[b,q], K[b,k]*m[b,k]> * m[b,k]  (masking memories by a per-key
    # scalar scales the dot product by exactly that scalar -> multiply by m_k*m_k).
    scores = jnp.tanh(
        jnp.einsum('bqd,bkd->bqk', xW.astype(cdt), K,
                   preferred_element_type=jnp.float32) * (mk * mk))       # (B, tq, T)

    # Mask folded into the softmax: masked key columns get a huge negative logit.
    # Equivalent (for a binary mask) to the reference's softmax -> re-mask -> renorm,
    # but with one fewer (B,tq,T) pass / reduction / reciprocal, and no NaN when a
    # query row has every key masked (falls back to a uniform row).
    logits_k = jnp.where(mk > 0.0, scores, jnp.float32(-1e30))
    smax = jnp.max(logits_k, axis=-1, keepdims=True)
    ex = jnp.exp(logits_k - smax)
    alpha = ex / jnp.sum(ex, axis=-1, keepdims=True)   # exact division (alpha returned)

    # attention pool over (unmasked) memories
    attn = jnp.einsum('bqk,bkd->bqd', alpha.astype(cdt), K,
                      preferred_element_type=jnp.float32)                 # (B, tq, D)

    # classifier head: relu(Linear) -> Linear -> log_softmax (dropout = identity, eval)
    hid = jnp.maximum(
        jnp.dot(attn.reshape(B * tq, D).astype(cdt), wl_ref[...],
                preferred_element_type=jnp.float32) + bl_ref[...], 0.0)   # (B*tq, Dh)
    logits = jnp.dot(hid.astype(cdt), wf_ref[...],
                     preferred_element_type=jnp.float32) + bfc_ref[...]   # (B*tq, C)
    mmax = jnp.max(logits, axis=-1, keepdims=True)
    lse = mmax + jnp.log(jnp.sum(jnp.exp(logits - mmax), axis=-1, keepdims=True))

    logp_ref[...] = (logits - lse).reshape(B, tq, -1)   # single lane-dense store
    alpha_ref[...] = alpha                              # single lane-dense store


def run_attention_classifier(emotions, umask, wt, bt, wl, bl, wf, bfc,
                             mxu_dtype=MXU_DTYPE):
    T, B, D = emotions.shape
    Dh = wl.shape[1]
    C = wf.shape[1]

    # batch-major + bf16 in the wrapper (E is only ever consumed as an MXU operand)
    e_btd = jnp.transpose(emotions, (1, 0, 2)).astype(mxu_dtype)   # (B, T, D)
    umask_f = umask.astype(jnp.float32)

    # query-block tiling: whole-T at small sizes (1 grid step), 128-query blocks at
    # production sizes; keys stay resident, q blocks sharded across cores on v7x.
    tq = T if (T <= 128 or T % 128 != 0) else 128
    nq = T // tq

    wt_c, wl_c, wf_c = (w.astype(mxu_dtype) for w in (wt, wl, wf))
    bt_c, bl_c, bfc_c = (b.astype(jnp.float32) for b in (bt, bl, bfc))

    nbytes = (2 * e_btd.size * 2 + umask_f.size * 4
              + (wt_c.size + wl_c.size + wf_c.size) * 2
              + (bt_c.size + bl_c.size + bfc_c.size) * 4
              + B * tq * C * 4 + B * tq * T * 4      # output blocks
              + 6 * B * tq * T * 4)                  # softmax temporaries

    logp_btc, alpha_btt = pl.pallas_call(
        attn_cls_kernel,
        out_shape=(jax.ShapeDtypeStruct((B, T, C), jnp.float32),
                   jax.ShapeDtypeStruct((B, T, T), jnp.float32)),
        grid=(nq,),
        in_specs=[
            pl.BlockSpec((B, T, D), lambda q: (0, 0, 0)),    # keys: full, resident
            pl.BlockSpec((B, tq, D), lambda q: (0, q, 0)),   # query block
            pl.BlockSpec((B, T), lambda q: (0, 0)),          # mask: full, resident
            pl.BlockSpec((D, D), lambda q: (0, 0)),
            pl.BlockSpec((1, D), lambda q: (0, 0)),
            pl.BlockSpec((D, Dh), lambda q: (0, 0)),
            pl.BlockSpec((1, Dh), lambda q: (0, 0)),
            pl.BlockSpec((Dh, C), lambda q: (0, 0)),
            pl.BlockSpec((1, C), lambda q: (0, 0)),
        ],
        out_specs=(pl.BlockSpec((B, tq, C), lambda q: (0, q, 0)),
                   pl.BlockSpec((B, tq, T), lambda q: (0, q, 0))),
        compiler_params=pltpu.CompilerParams(
            dimension_semantics=("parallel",),
            vmem_limit_bytes=_vmem_limit(nbytes)),
    )(e_btd, e_btd, umask_f, wt_c, bt_c, wl_c, bl_c, wf_c, bfc_c)

    # back to torch-style (T, B, ...) ordering — wrapper-side layout plumbing
    return jnp.transpose(logp_btc, (1, 0, 2)), jnp.transpose(alpha_btt, (1, 0, 2))


# ----------------------------------------------------------------------------
# Parameter init + full forward (glue in plain JAX)
# ----------------------------------------------------------------------------
def init_params(key, D_m, D_e, D_h, n_classes):
    def nxt():
        nonlocal key
        key, sub = jax.random.split(key)
        return sub

    def nrm(shape):
        return (jax.random.normal(nxt(), shape, jnp.float32) * 0.1).astype(jnp.float32)

    params = {"lstm": {}}
    for layer in range(2):
        in_dim = D_m if layer == 0 else 2 * D_e
        for direction in ("fwd", "bwd"):
            params["lstm"][(layer, direction)] = (
                nrm((4 * D_e, in_dim)),   # w_ih
                nrm((4 * D_e, D_e)),      # w_hh
                nrm((4 * D_e,)),          # b_ih
                nrm((4 * D_e,)),          # b_hh
            )
    D = 2 * D_e
    params["att_w"] = nrm((D, D))           # MatchingAttention 'general2' Linear(D, D)
    params["att_b"] = nrm((D,))
    params["lin_w"] = nrm((D_h, D))         # linear: Linear(D, D_h)
    params["lin_b"] = nrm((D_h,))
    params["fc_w"] = nrm((n_classes, D_h))  # smax_fc: Linear(D_h, n_classes)
    params["fc_b"] = nrm((n_classes,))
    return params


@jax.jit
def lstm_model_forward(params, U, qmask, umask):
    """U: (T, B, D_m), qmask: (T, B, party) (unused, as in the torch forward),
    umask: (B, T).  Returns (log_prob, alpha, alpha_f, alpha_b, emotions)."""
    del qmask  # not used by LSTMModel.forward

    # 2-layer bidirectional LSTM (eval mode: inter-layer dropout is identity)
    x = U
    for layer in range(2):
        x = run_bilstm_layer(x, params["lstm"][(layer, "fwd")],
                             params["lstm"][(layer, "bwd")])
    emotions = x  # (T, B, 2*D_e)

    # MatchingAttention('general2') for every timestep + relu(Linear) ->
    # dropout(identity, eval) -> Linear -> log_softmax
    wt = jnp.transpose(params["att_w"])        # (D, D)
    bt = params["att_b"][None, :]              # (1, D)
    wl = jnp.transpose(params["lin_w"])        # (D, Dh)
    bl = params["lin_b"][None, :]              # (1, Dh)
    wf = jnp.transpose(params["fc_w"])         # (Dh, C)
    bfc = params["fc_b"][None, :]              # (1, C)

    log_prob, alpha = run_attention_classifier(emotions, umask,
                                               wt, bt, wl, bl, wf, bfc)
    # alpha matches torch's list of (B, T) per query timestep, stacked: (T, B, T)
    return log_prob, alpha, [], [], emotions


# ----------------------------------------------------------------------------
if __name__ == "__main__":
    T, B = 8, 2
    D_m, D_e, D_h, n_classes = 16, 16, 32, 7

    key = jax.random.PRNGKey(0)
    k_p, k_u, k_q = jax.random.split(key, 3)

    params = init_params(k_p, D_m, D_e, D_h, n_classes)

    U = jax.random.normal(k_u, (T, B, D_m), jnp.float32)
    qmask = jax.random.normal(k_q, (T, B, 2), jnp.float32)  # party mask (unused)
    umask = jnp.ones((B, T), jnp.float32)
    umask = umask.at[1, 6:].set(0.0)  # exercise masking on batch element 1

    log_prob, alpha, alpha_f, alpha_b, emotions = lstm_model_forward(
        params, U, qmask, umask)
    jax.block_until_ready(log_prob)
    jax.block_until_ready(alpha)
    jax.block_until_ready(emotions)

    assert log_prob.shape == (T, B, n_classes)
    assert alpha.shape == (T, B, T)
    assert emotions.shape == (T, B, 2 * D_e)
    assert bool(jnp.all(jnp.isfinite(log_prob)))
    assert bool(jnp.all(jnp.isfinite(alpha)))
    print("KERNEL_OK")
</pallas_src>

<mosaic_0001>
module attributes {stable_mosaic.version = 11 : i64} {
  func.func @bilstm_layer_kernel(%arg0: memref<16x16xbf16, #tpu.memory_space<vmem>>, %arg1: memref<16x128xbf16, #tpu.memory_space<vmem>>, %arg2: memref<32x128xbf16, #tpu.memory_space<vmem>>, %arg3: memref<1x128xf32, #tpu.memory_space<vmem>>, %arg4: memref<8x2x32xf32, #tpu.memory_space<vmem>>, %arg5: memref<8x2x128xf32, #tpu.memory_space<vmem>>) attributes {dimension_semantics = [], scalar_prefetch = 0 : i64, scratch_operands = 1 : i64, tpu.core_type = #tpu.core_type<tc>} {
    %c0 = arith.constant 0 : index
    %c0_0 = arith.constant 0 : index
    %0 = vector.load %arg0[%c0, %c0_0] : memref<16x16xbf16, #tpu.memory_space<vmem>>, vector<16x16xbf16>
    %c0_1 = arith.constant 0 : index
    %c0_2 = arith.constant 0 : index
    %1 = vector.load %arg1[%c0_1, %c0_2] : memref<16x128xbf16, #tpu.memory_space<vmem>>, vector<16x128xbf16>
    %cst = arith.constant dense<0.000000e+00> : vector<16x128xf32>
    %2 = tpu.matmul %0, %1, %cst {dimension_numbers = #tpu.dot_dimension_numbers<[1], [0], [0], [1], [0, 0, 1, 1], [], []>} : vector<16x16xbf16>, vector<16x128xbf16>, vector<16x128xf32> -> vector<16x128xf32>
    %c0_3 = arith.constant 0 : index
    %c0_4 = arith.constant 0 : index
    %3 = vector.load %arg3[%c0_3, %c0_4] : memref<1x128xf32, #tpu.memory_space<vmem>>, vector<1x128xf32>
    %4 = vector.broadcast %3 : vector<1x128xf32> to vector<16x128xf32>
    %5 = arith.addf %2, %4 : vector<16x128xf32>
    %6 = vector.shape_cast %5 : vector<16x128xf32> to vector<8x2x128xf32>
    %c0_5 = arith.constant 0 : index
    %c0_6 = arith.constant 0 : index
    %c0_7 = arith.constant 0 : index
    %7 = vector.load %arg5[%c0_5, %c0_6, %c0_7] : memref<8x2x128xf32, #tpu.memory_space<vmem>>, vector<8x2x128xf32>
    tpu.vector_store %arg5[%c0_5, %c0_6, %c0_7], %6 {strides = array<i32>} : memref<8x2x128xf32, #tpu.memory_space<vmem>>, vector<8x2x128xf32>,
    %c0_8 = arith.constant 0 : index
    %c0_9 = arith.constant 0 : index
    %8 = vector.load %arg2[%c0_8, %c0_9] : memref<32x128xbf16, #tpu.memory_space<vmem>>, vector<32x128xbf16>
    %cst_10 = arith.constant 0.000000e+00 : f32
    %9 = vector.broadcast %cst_10 : f32 to vector<2x16xf32>
    %cst_11 = arith.constant 0.000000e+00 : f32
    %10 = vector.broadcast %cst_11 : f32 to vector<2x32xf32>
    %c0_i32 = arith.constant 0 : i32
    %11 = arith.truncf %10 : vector<2x32xf32> to vector<2x32xbf16>
    %cst_12 = arith.constant dense<0.000000e+00> : vector<2x128xf32>
    %12 = tpu.matmul %11, %8, %cst_12 {dimension_numbers = #tpu.dot_dimension_numbers<[1], [0], [0], [1], [0, 0, 1, 1], [], []>} : vector<2x32xbf16>, vector<32x128xbf16>, vector<2x128xf32> -> vector<2x128xf32>
    %c7_i32 = arith.constant 7 : i32
    %13 = arith.subi %c7_i32, %c0_i32 : i32
    %14 = arith.index_cast %c0_i32 : i32 to index
    %c0_13 = arith.constant 0 : index
    %c0_14 = arith.constant 0 : index
    %15 = vector.load %arg5[%14, %c0_13, %c0_14] : memref<8x2x128xf32, #tpu.memory_space<vmem>>, vector<1x2x128xf32>
    %16 = vector.shape_cast %15 : vector<1x2x128xf32> to vector<2x128xf32>
    %17 = vector.extract_strided_slice %16 {offsets = [0, 0], sizes = [2, 64], strides = [1, 1]} : vector<2x128xf32> to vector<2x64xf32>
    %18 = vector.extract_strided_slice %12 {offsets = [0, 0], sizes = [2, 64], strides = [1, 1]} : vector<2x128xf32> to vector<2x64xf32>
    %19 = arith.addf %17, %18 : vector<2x64xf32>
    %20 = arith.index_cast %13 : i32 to index
    %c0_15 = arith.constant 0 : index
    %c0_16 = arith.constant 0 : index
    %21 = vector.load %arg5[%20, %c0_15, %c0_16] : memref<8x2x128xf32, #tpu.memory_space<vmem>>, vector<1x2x128xf32>
    %22 = vector.shape_cast %21 : vector<1x2x128xf32> to vector<2x128xf32>
    %23 = vector.extract_strided_slice %22 {offsets = [0, 64], sizes = [2, 64], strides = [1, 1]} : vector<2x128xf32> to vector<2x64xf32>
    %24 = vector.extract_strided_slice %12 {offsets = [0, 64], sizes = [2, 64], strides = [1, 1]} : vector<2x128xf32> to vector<2x64xf32>
    %25 = arith.addf %23, %24 : vector<2x64xf32>
    %26 = vector.extract_strided_slice %19 {offsets = [0, 0], sizes = [2, 48], strides = [1, 1]} : vector<2x64xf32> to vector<2x48xf32>
    %27 = arith.negf %26 : vector<2x48xf32>
    %28 = math.exp %27 : vector<2x48xf32>
    %cst_17 = arith.constant 1.000000e+00 : f32
    %29 = vector.broadcast %cst_17 : f32 to vector<2x48xf32>
    %30 = arith.addf %29, %28 : vector<2x48xf32>
    %31 = arith.divf %29, %30 : vector<2x48xf32>
    %32 = vector.extract_strided_slice %19 {offsets = [0, 48], sizes = [2, 16], strides = [1, 1]} : vector<2x64xf32> to vector<2x16xf32>
    %33 = math.tanh %32 : vector<2x16xf32>
    %34 = vector.extract_strided_slice %31 {offsets = [0, 16], sizes = [2, 16], strides = [1, 1]} : vector<2x48xf32> to vector<2x16xf32>
    %35 = arith.mulf %34, %9 : vector<2x16xf32>
    %36 = vector.extract_strided_slice %31 {offsets = [0, 0], sizes = [2, 16], strides = [1, 1]} : vector<2x48xf32> to vector<2x16xf32>
    %37 = arith.mulf %36, %33 : vector<2x16xf32>
    %38 = arith.addf %35, %37 : vector<2x16xf32>
    %39 = vector.extract_strided_slice %31 {offsets = [0, 32], sizes = [2, 16], strides = [1, 1]} : vector<2x48xf32> to vector<2x16xf32>
    %40 = math.tanh %38 : vector<2x16xf32>
    %41 = arith.mulf %39, %40 : vector<2x16xf32>
    %42 = vector.extract_strided_slice %25 {offsets = [0, 0], sizes = [2, 48], strides = [1, 1]} : vector<2x64xf32> to vector<2x48xf32>
    %43 = arith.negf %42 : vector<2x48xf32>
    %44 = math.exp %43 : vector<2x48xf32>
    %cst_18 = arith.constant 1.000000e+00 : f32
    %45 = vector.broadcast %cst_18 : f32 to vector<2x48xf32>
    %46 = arith.addf %45, %44 : vector<2x48xf32>
    %47 = arith.divf %45, %46 : vector<2x48xf32>
    %48 = vector.extract_strided_slice %25 {offsets = [0, 48], sizes = [2, 16], strides = [1, 1]} : vector<2x64xf32> to vector<2x16xf32>
    %49 = math.tanh %48 : vector<2x16xf32>
    %50 = vector.extract_strided_slice %47 {offsets = [0, 16], sizes = [2, 16], strides = [1, 1]} : vector<2x48xf32> to vector<2x16xf32>
    %51 = arith.mulf %50, %9 : vector<2x16xf32>
    %52 = vector.extract_strided_slice %47 {offsets = [0, 0], sizes = [2, 16], strides = [1, 1]} : vector<2x48xf32> to vector<2x16xf32>
    %53 = arith.mulf %52, %49 : vector<2x16xf32>
    %54 = arith.addf %51, %53 : vector<2x16xf32>
    %55 = vector.extract_strided_slice %47 {offsets = [0, 32], sizes = [2, 16], strides = [1, 1]} : vector<2x48xf32> to vector<2x16xf32>
    %56 = math.tanh %54 : vector<2x16xf32>
    %57 = arith.mulf %55, %56 : vector<2x16xf32>
    %58 = arith.index_cast %c0_i32 : i32 to index
    %c0_19 = arith.constant 0 : index
    %c0_20 = arith.constant 0 : index
    %59 = vector.load %arg4[%58, %c0_19, %c0_20] : memref<8x2x32xf32, #tpu.memory_space<vmem>>, vector<1x2x16xf32>
    %60 = vector.shape_cast %59 : vector<1x2x16xf32> to vector<2x16xf32>
    %61 = vector.shape_cast %41 : vector<2x16xf32> to vector<1x2x16xf32>
    tpu.vector_store %arg4[%58, %c0_19, %c0_20], %61 {strides = array<i32>} : memref<8x2x32xf32, #tpu.memory_space<vmem>>, vector<1x2x16xf32>,
    %62 = arith.index_cast %13 : i32 to index
    %c0_21 = arith.constant 0 : index
    %c16 = arith.constant 16 : index
    %63 = vector.load %arg4[%62, %c0_21, %c16] : memref<8x2x32xf32, #tpu.memory_space<vmem>>, vector<1x2x16xf32>
    %64 = vector.shape_cast %63 : vector<1x2x16xf32> to vector<2x16xf32>
    %65 = vector.shape_cast %57 : vector<2x16xf32> to vector<1x2x16xf32>
    tpu.vector_store %arg4[%62, %c0_21, %c16], %65 {strides = array<i32>} : memref<8x2x32xf32, #tpu.memory_space<vmem>>, vector<1x2x16xf32>,
    %66 = tpu.concatenate %41, %57 in 1 : vector<2x16xf32>, vector<2x16xf32> -> vector<2x32xf32>
    %c1_i32 = arith.constant 1 : i32
    %67 = arith.truncf %66 : vector<2x32xf32> to vector<2x32xbf16>
    %cst_22 = arith.constant dense<0.000000e+00> : vector<2x128xf32>
    %68 = tpu.matmul %67, %8, %cst_22 {dimension_numbers = #tpu.dot_dimension_numbers<[1], [0], [0], [1], [0, 0, 1, 1], [], []>} : vector<2x32xbf16>, vector<32x128xbf16>, vector<2x128xf32> -> vector<2x128xf32>
    %c7_i32_23 = arith.constant 7 : i32
    %69 = arith.subi %c7_i32_23, %c1_i32 : i32
    %70 = arith.index_cast %c1_i32 : i32 to index
    %c0_24 = arith.constant 0 : index
    %c0_25 = arith.constant 0 : index
    %71 = vector.load %arg5[%70, %c0_24, %c0_25] : memref<8x2x128xf32, #tpu.memory_space<vmem>>, vector<1x2x128xf32>
    %72 = vector.shape_cast %71 : vector<1x2x128xf32> to vector<2x128xf32>
    %73 = vector.extract_strided_slice %72 {offsets = [0, 0], sizes = [2, 64], strides = [1, 1]} : vector<2x128xf32> to vector<2x64xf32>
    %74 = vector.extract_strided_slice %68 {offsets = [0, 0], sizes = [2, 64], strides = [1, 1]} : vector<2x128xf32> to vector<2x64xf32>
    %75 = arith.addf %73, %74 : vector<2x64xf32>
    %76 = arith.index_cast %69 : i32 to index
    %c0_26 = arith.constant 0 : index
    %c0_27 = arith.constant 0 : index
    %77 = vector.load %arg5[%76, %c0_26, %c0_27] : memref<8x2x128xf32, #tpu.memory_space<vmem>>, vector<1x2x128xf32>
    %78 = vector.shape_cast %77 : vector<1x2x128xf32> to vector<2x128xf32>
    %79 = vector.extract_strided_slice %78 {offsets = [0, 64], sizes = [2, 64], strides = [1, 1]} : vector<2x128xf32> to vector<2x64xf32>
    %80 = vector.extract_strided_slice %68 {offsets = [0, 64], sizes = [2, 64], strides = [1, 1]} : vector<2x128xf32> to vector<2x64xf32>
    %81 = arith.addf %79, %80 : vector<2x64xf32>
    %82 = vector.extract_strided_slice %75 {offsets = [0, 0], sizes = [2, 48], strides = [1, 1]} : vector<2x64xf32> to vector<2x48xf32>
    %83 = arith.negf %82 : vector<2x48xf32>
    %84 = math.exp %83 : vector<2x48xf32>
    %cst_28 = arith.constant 1.000000e+00 : f32
    %85 = vector.broadcast %cst_28 : f32 to vector<2x48xf32>
    %86 = arith.addf %85, %84 : vector<2x48xf32>
    %87 = arith.divf %85, %86 : vector<2x48xf32>
    %88 = vector.extract_strided_slice %75 {offsets = [0, 48], sizes = [2, 16], strides = [1, 1]} : vector<2x64xf32> to vector<2x16xf32>
    %89 = math.tanh %88 : vector<2x16xf32>
    %90 = vector.extract_strided_slice %87 {offsets = [0, 16], sizes = [2, 16], strides = [1, 1]} : vector<2x48xf32> to vector<2x16xf32>
    %91 = arith.mulf %90, %38 : vector<2x16xf32>
    %92 = vector.extract_strided_slice %87 {offsets = [0, 0], sizes = [2, 16], strides = [1, 1]} : vector<2x48xf32> to vector<2x16xf32>
    %93 = arith.mulf %92, %89 : vector<2x16xf32>
    %94 = arith.addf %91, %93 : vector<2x16xf32>
    %95 = vector.extract_strided_slice %87 {offsets = [0, 32], sizes = [2, 16], strides = [1, 1]} : vector<2x48xf32> to vector<2x16xf32>
    %96 = math.tanh %94 : vector<2x16xf32>
    %97 = arith.mulf %95, %96 : vector<2x16xf32>
    %98 = vector.extract_strided_slice %81 {offsets = [0, 0], sizes = [2, 48], strides = [1, 1]} : vector<2x64xf32> to vector<2x48xf32>
    %99 = arith.negf %98 : vector<2x48xf32>
    %100 = math.exp %99 : vector<2x48xf32>
    %cst_29 = arith.constant 1.000000e+00 : f32
    %101 = vector.broadcast %cst_29 : f32 to vector<2x48xf32>
    %102 = arith.addf %101, %100 : vector<2x48xf32>
    %103 = arith.divf %101, %102 : vector<2x48xf32>
    %104 = vector.extract_strided_slice %81 {offsets = [0, 48], sizes = [2, 16], strides = [1, 1]} : vector<2x64xf32> to vector<2x16xf32>
    %105 = math.tanh %104 : vector<2x16xf32>
    %106 = vector.extract_strided_slice %103 {offsets = [0, 16], sizes = [2, 16], strides = [1, 1]} : vector<2x48xf32> to vector<2x16xf32>
    %107 = arith.mulf %106, %54 : vector<2x16xf32>
    %108 = vector.extract_strided_slice %103 {offsets = [0, 0], sizes = [2, 16], strides = [1, 1]} : vector<2x48xf32> to vector<2x16xf32>
    %109 = arith.mulf %108, %105 : vector<2x16xf32>
    %110 = arith.addf %107, %109 : vector<2x16xf32>
    %111 = vector.extract_strided_slice %103 {offsets = [0, 32], sizes = [2, 16], strides = [1, 1]} : vector<2x48xf32> to vector<2x16xf32>
    %112 = math.tanh %110 : vector<2x16xf32>
    %113 = arith.mulf %111, %112 : vector<2x16xf32>
    %114 = arith.index_cast %c1_i32 : i32 to index
    %c0_30 = arith.constant 0 : index
    %c0_31 = arith.constant 0 : index
    %115 = vector.load %arg4[%114, %c0_30, %c0_31] : memref<8x2x32xf32, #tpu.memory_space<vmem>>, vector<1x2x16xf32>
    %116 = vector.shape_cast %115 : vector<1x2x16xf32> to vector<2x16xf32>
    %117 = vector.shape_cast %97 : vector<2x16xf32> to vector<1x2x16xf32>
    tpu.vector_store %arg4[%114, %c0_30, %c0_31], %117 {strides = array<i32>} : memref<8x2x32xf32, #tpu.memory_space<vmem>>, vector<1x2x16xf32>,
    %118 = arith.index_cast %69 : i32 to index
    %c0_32 = arith.constant 0 : index
    %c16_33 = arith.constant 16 : index
    %119 = vector.load %arg4[%118, %c0_32, %c16_33] : memref<8x2x32xf32, #tpu.memory_space<vmem>>, vector<1x2x16xf32>
    %120 = vector.shape_cast %119 : vector<1x2x16xf32> to vector<2x16xf32>
    %121 = vector.shape_cast %113 : vector<2x16xf32> to vector<1x2x16xf32>
    tpu.vector_store %arg4[%118, %c0_32, %c16_33], %121 {strides = array<i32>} : memref<8x2x32xf32, #tpu.memory_space<vmem>>, vector<1x2x16xf32>,
    %122 = tpu.concatenate %97, %113 in 1 : vector<2x16xf32>, vector<2x16xf32> -> vector<2x32xf32>
    %c2_i32 = arith.constant 2 : i32
    %123 = arith.truncf %122 : vector<2x32xf32> to vector<2x32xbf16>
    %cst_34 = arith.constant dense<0.000000e+00> : vector<2x128xf32>
    %124 = tpu.matmul %123, %8, %cst_34 {dimension_numbers = #tpu.dot_dimension_numbers<[1], [0], [0], [1], [0, 0, 1, 1], [], []>} : vector<2x32xbf16>, vector<32x128xbf16>, vector<2x128xf32> -> vector<2x128xf32>
    %c7_i32_35 = arith.constant 7 : i32
    %125 = arith.subi %c7_i32_35, %c2_i32 : i32
    %126 = arith.index_cast %c2_i32 : i32 to index
    %c0_36 = arith.constant 0 : index
    %c0_37 = arith.constant 0 : index
    %127 = vector.load %arg5[%126, %c0_36, %c0_37] : memref<8x2x128xf32, #tpu.memory_space<vmem>>, vector<1x2x128xf32>
    %128 = vector.shape_cast %127 : vector<1x2x128xf32> to vector<2x128xf32>
    %129 = vector.extract_strided_slice %128 {offsets = [0, 0], sizes = [2, 64], strides = [1, 1]} : vector<2x128xf32> to vector<2x64xf32>
    %130 = vector.extract_strided_slice %124 {offsets = [0, 0], sizes = [2, 64], strides = [1, 1]} : vector<2x128xf32> to vector<2x64xf32>
    %131 = arith.addf %129, %130 : vector<2x64xf32>
    %132 = arith.index_cast %125 : i32 to index
    %c0_38 = arith.constant 0 : index
    %c0_39 = arith.constant 0 : index
    %133 = vector.load %arg5[%132, %c0_38, %c0_39] : memref<8x2x128xf32, #tpu.memory_space<vmem>>, vector<1x2x128xf32>
    %134 = vector.shape_cast %133 : vector<1x2x128xf32> to vector<2x128xf32>
    %135 = vector.extract_strided_slice %134 {offsets = [0, 64], sizes = [2, 64], strides = [1, 1]} : vector<2x128xf32> to vector<2x64xf32>
    %136 = vector.extract_strided_slice %124 {offsets = [0, 64], sizes = [2, 64], strides = [1, 1]} : vector<2x128xf32> to vector<2x64xf32>
    %137 = arith.addf %135, %136 : vector<2x64xf32>
    %138 = vector.extract_strided_slice %131 {offsets = [0, 0], sizes = [2, 48], strides = [1, 1]} : vector<2x64xf32> to vector<2x48xf32>
    %139 = arith.negf %138 : vector<2x48xf32>
    %140 = math.exp %139 : vector<2x48xf32>
    %cst_40 = arith.constant 1.000000e+00 : f32
    %141 = vector.broadcast %cst_40 : f32 to vector<2x48xf32>
    %142 = arith.addf %141, %140 : vector<2x48xf32>
    %143 = arith.divf %141, %142 : vector<2x48xf32>
    %144 = vector.extract_strided_slice %131 {offsets = [0, 48], sizes = [2, 16], strides = [1, 1]} : vector<2x64xf32> to vector<2x16xf32>
    %145 = math.tanh %144 : vector<2x16xf32>
    %146 = vector.extract_strided_slice %143 {offsets = [0, 16], sizes = [2, 16], strides = [1, 1]} : vector<2x48xf32> to vector<2x16xf32>
    %147 = arith.mulf %146, %94 : vector<2x16xf32>
    %148 = vector.extract_strided_slice %143 {offsets = [0, 0], sizes = [2, 16], strides = [1, 1]} : vector<2x48xf32> to vector<2x16xf32>
    %149 = arith.mulf %148, %145 : vector<2x16xf32>
    %150 = arith.addf %147, %149 : vector<2x16xf32>
    %151 = vector.extract_strided_slice %143 {offsets = [0, 32], sizes = [2, 16], strides = [1, 1]} : vector<2x48xf32> to vector<2x16xf32>
    %152 = math.tanh %150 : vector<2x16xf32>
    %153 = arith.mulf %151, %152 : vector<2x16xf32>
    %154 = vector.extract_strided_slice %137 {offsets = [0, 0], sizes = [2, 48], strides = [1, 1]} : vector<2x64xf32> to vector<2x48xf32>
    %155 = arith.negf %154 : vector<2x48xf32>
    %156 = math.exp %155 : vector<2x48xf32>
    %cst_41 = arith.constant 1.000000e+00 : f32
    %157 = vector.broadcast %cst_41 : f32 to vector<2x48xf32>
    %158 = arith.addf %157, %156 : vector<2x48xf32>
    %159 = arith.divf %157, %158 : vector<2x48xf32>
    %160 = vector.extract_strided_slice %137 {offsets = [0, 48], sizes = [2, 16], strides = [1, 1]} : vector<2x64xf32> to vector<2x16xf32>
    %161 = math.tanh %160 : vector<2x16xf32>
    %162 = vector.extract_strided_slice %159 {offsets = [0, 16], sizes = [2, 16], strides = [1, 1]} : vector<2x48xf32> to vector<2x16xf32>
    %163 = arith.mulf %162, %110 : vector<2x16xf32>
    %164 = vector.extract_strided_slice %159 {offsets = [0, 0], sizes = [2, 16], strides = [1, 1]} : vector<2x48xf32> to vector<2x16xf32>
    %165 = arith.mulf %164, %161 : vector<2x16xf32>
    %166 = arith.addf %163, %165 : vector<2x16xf32>
    %167 = vector.extract_strided_slice %159 {offsets = [0, 32], sizes = [2, 16], strides = [1, 1]} : vector<2x48xf32> to vector<2x16xf32>
    %168 = math.tanh %166 : vector<2x16xf32>
    %169 = arith.mulf %167, %168 : vector<2x16xf32>
    %170 = arith.index_cast %c2_i32 : i32 to index
    %c0_42 = arith.constant 0 : index
    %c0_43 = arith.constant 0 : index
    %171 = vector.load %arg4[%170, %c0_42, %c0_43] : memref<8x2x32xf32, #tpu.memory_space<vmem>>, vector<1x2x16xf32>
    %172 = vector.shape_cast %171 : vector<1x2x16xf32> to vector<2x16xf32>
    %173 = vector.shape_cast %153 : vector<2x16xf32> to vector<1x2x16xf32>
    tpu.vector_store %arg4[%170, %c0_42, %c0_43], %173 {strides = array<i32>} : memref<8x2x32xf32, #tpu.memory_space<vmem>>, vector<1x2x16xf32>,
    %174 = arith.index_cast %125 : i32 to index
    %c0_44 = arith.constant 0 : index
    %c16_45 = arith.constant 16 : index
    %175 = vector.load %arg4[%174, %c0_44, %c16_45] : memref<8x2x32xf32, #tpu.memory_space<vmem>>, vector<1x2x16xf32>
    %176 = vector.shape_cast %175 : vector<1x2x16xf32> to vector<2x16xf32>
    %177 = vector.shape_cast %169 : vector<2x16xf32> to vector<1x2x16xf32>
    tpu.vector_store %arg4[%174, %c0_44, %c16_45], %177 {strides = array<i32>} : memref<8x2x32xf32, #tpu.memory_space<vmem>>, vector<1x2x16xf32>,
    %178 = tpu.concatenate %153, %169 in 1 : vector<2x16xf32>, vector<2x16xf32> -> vector<2x32xf32>
    %c3_i32 = arith.constant 3 : i32
    %179 = arith.truncf %178 : vector<2x32xf32> to vector<2x32xbf16>
    %cst_46 = arith.constant dense<0.000000e+00> : vector<2x128xf32>
    %180 = tpu.matmul %179, %8, %cst_46 {dimension_numbers = #tpu.dot_dimension_numbers<[1], [0], [0], [1], [0, 0, 1, 1], [], []>} : vector<2x32xbf16>, vector<32x128xbf16>, vector<2x128xf32> -> vector<2x128xf32>
    %c7_i32_47 = arith.constant 7 : i32
    %181 = arith.subi %c7_i32_47, %c3_i32 : i32
    %182 = arith.index_cast %c3_i32 : i32 to index
    %c0_48 = arith.constant 0 : index
    %c0_49 = arith.constant 0 : index
    %183 = vector.load %arg5[%182, %c0_48, %c0_49] : memref<8x2x128xf32, #tpu.memory_space<vmem>>, vector<1x2x128xf32>
    %184 = vector.shape_cast %183 : vector<1x2x128xf32> to vector<2x128xf32>
    %185 = vector.extract_strided_slice %184 {offsets = [0, 0], sizes = [2, 64], strides = [1, 1]} : vector<2x128xf32> to vector<2x64xf32>
    %186 = vector.extract_strided_slice %180 {offsets = [0, 0], sizes = [2, 64], strides = [1, 1]} : vector<2x128xf32> to vector<2x64xf32>
    %187 = arith.addf %185, %186 : vector<2x64xf32>
    %188 = arith.index_cast %181 : i32 to index
    %c0_50 = arith.constant 0 : index
    %c0_51 = arith.constant 0 : index
    %189 = vector.load %arg5[%188, %c0_50, %c0_51] : memref<8x2x128xf32, #tpu.memory_space<vmem>>, vector<1x2x128xf32>
    %190 = vector.shape_cast %189 : vector<1x2x128xf32> to vector<2x128xf32>
    %191 = vector.extract_strided_slice %190 {offsets = [0, 64], sizes = [2, 64], strides = [1, 1]} : vector<2x128xf32> to vector<2x64xf32>
    %192 = vector.extract_strided_slice %180 {offsets = [0, 64], sizes = [2, 64], strides = [1, 1]} : vector<2x128xf32> to vector<2x64xf32>
    %193 = arith.addf %191, %192 : vector<2x64xf32>
    %194 = vector.extract_strided_slice %187 {offsets = [0, 0], sizes = [2, 48], strides = [1, 1]} : vector<2x64xf32> to vector<2x48xf32>
    %195 = arith.negf %194 : vector<2x48xf32>
    %196 = math.exp %195 : vector<2x48xf32>
    %cst_52 = arith.constant 1.000000e+00 : f32
    %197 = vector.broadcast %cst_52 : f32 to vector<2x48xf32>
    %198 = arith.addf %197, %196 : vector<2x48xf32>
    %199 = arith.divf %197, %198 : vector<2x48xf32>
    %200 = vector.extract_strided_slice %187 {offsets = [0, 48], sizes = [2, 16], strides = [1, 1]} : vector<2x64xf32> to vector<2x16xf32>
    %201 = math.tanh %200 : vector<2x16xf32>
    %202 = vector.extract_strided_slice %199 {offsets = [0, 16], sizes = [2, 16], strides = [1, 1]} : vector<2x48xf32> to vector<2x16xf32>
    %203 = arith.mulf %202, %150 : vector<2x16xf32>
    %204 = vector.extract_strided_slice %199 {offsets = [0, 0], sizes = [2, 16], strides = [1, 1]} : vector<2x48xf32> to vector<2x16xf32>
    %205 = arith.mulf %204, %201 : vector<2x16xf32>
    %206 = arith.addf %203, %205 : vector<2x16xf32>
    %207 = vector.extract_strided_slice %199 {offsets = [0, 32], sizes = [2, 16], strides = [1, 1]} : vector<2x48xf32> to vector<2x16xf32>
    %208 = math.tanh %206 : vector<2x16xf32>
    %209 = arith.mulf %207, %208 : vector<2x16xf32>
    %210 = vector.extract_strided_slice %193 {offsets = [0, 0], sizes = [2, 48], strides = [1, 1]} : vector<2x64xf32> to vector<2x48xf32>
    %211 = arith.negf %210 : vector<2x48xf32>
    %212 = math.exp %211 : vector<2x48xf32>
    %cst_53 = arith.constant 1.000000e+00 : f32
    %213 = vector.broadcast %cst_53 : f32 to vector<2x48xf32>
    %214 = arith.addf %213, %212 : vector<2x48xf32>
    %215 = arith.divf %213, %214 : vector<2x48xf32>
    %216 = vector.extract_strided_slice %193 {offsets = [0, 48], sizes = [2, 16], strides = [1, 1]} : vector<2x64xf32> to vector<2x16xf32>
    %217 = math.tanh %216 : vector<2x16xf32>
    %218 = vector.extract_strided_slice %215 {offsets = [0, 16], sizes = [2, 16], strides = [1, 1]} : vector<2x48xf32> to vector<2x16xf32>
    %219 = arith.mulf %218, %166 : vector<2x16xf32>
    %220 = vector.extract_strided_slice %215 {offsets = [0, 0], sizes = [2, 16], strides = [1, 1]} : vector<2x48xf32> to vector<2x16xf32>
    %221 = arith.mulf %220, %217 : vector<2x16xf32>
    %222 = arith.addf %219, %221 : vector<2x16xf32>
    %223 = vector.extract_strided_slice %215 {offsets = [0, 32], sizes = [2, 16], strides = [1, 1]} : vector<2x48xf32> to vector<2x16xf32>
    %224 = math.tanh %222 : vector<2x16xf32>
    %225 = arith.mulf %223, %224 : vector<2x16xf32>
    %226 = arith.index_cast %c3_i32 : i32 to index
    %c0_54 = arith.constant 0 : index
    %c0_55 = arith.constant 0 : index
    %227 = vector.load %arg4[%226, %c0_54, %c0_55] : memref<8x2x32xf32, #tpu.memory_space<vmem>>, vector<1x2x16xf32>
    %228 = vector.shape_cast %227 : vector<1x2x16xf32> to vector<2x16xf32>
    %229 = vector.shape_cast %209 : vector<2x16xf32> to vector<1x2x16xf32>
    tpu.vector_store %arg4[%226, %c0_54, %c0_55], %229 {strides = array<i32>} : memref<8x2x32xf32, #tpu.memory_space<vmem>>, vector<1x2x16xf32>,
    %230 = arith.index_cast %181 : i32 to index
    %c0_56 = arith.constant 0 : index
    %c16_57 = arith.constant 16 : index
    %231 = vector.load %arg4[%230, %c0_56, %c16_57] : memref<8x2x32xf32, #tpu.memory_space<vmem>>, vector<1x2x16xf32>
    %232 = vector.shape_cast %231 : vector<1x2x16xf32> to vector<2x16xf32>
    %233 = vector.shape_cast %225 : vector<2x16xf32> to vector<1x2x16xf32>
    tpu.vector_store %arg4[%230, %c0_56, %c16_57], %233 {strides = array<i32>} : memref<8x2x32xf32, #tpu.memory_space<vmem>>, vector<1x2x16xf32>,
    %234 = tpu.concatenate %209, %225 in 1 : vector<2x16xf32>, vector<2x16xf32> -> vector<2x32xf32>
    %c4_i32 = arith.constant 4 : i32
    %235 = arith.truncf %234 : vector<2x32xf32> to vector<2x32xbf16>
    %cst_58 = arith.constant dense<0.000000e+00> : vector<2x128xf32>
    %236 = tpu.matmul %235, %8, %cst_58 {dimension_numbers = #tpu.dot_dimension_numbers<[1], [0], [0], [1], [0, 0, 1, 1], [], []>} : vector<2x32xbf16>, vector<32x128xbf16>, vector<2x128xf32> -> vector<2x128xf32>
    %c7_i32_59 = arith.constant 7 : i32
    %237 = arith.subi %c7_i32_59, %c4_i32 : i32
    %238 = arith.index_cast %c4_i32 : i32 to index
    %c0_60 = arith.constant 0 : index
    %c0_61 = arith.constant 0 : index
    %239 = vector.load %arg5[%238, %c0_60, %c0_61] : memref<8x2x128xf32, #tpu.memory_space<vmem>>, vector<1x2x128xf32>
    %240 = vector.shape_cast %239 : vector<1x2x128xf32> to vector<2x128xf32>
    %241 = vector.extract_strided_slice %240 {offsets = [0, 0], sizes = [2, 64], strides = [1, 1]} : vector<2x128xf32> to vector<2x64xf32>
    %242 = vector.extract_strided_slice %236 {offsets = [0, 0], sizes = [2, 64], strides = [1, 1]} : vector<2x128xf32> to vector<2x64xf32>
    %243 = arith.addf %241, %242 : vector<2x64xf32>
    %244 = arith.index_cast %237 : i32 to index
    %c0_62 = arith.constant 0 : index
    %c0_63 = arith.constant 0 : index
    %245 = vector.load %arg5[%244, %c0_62, %c0_63] : memref<8x2x128xf32, #tpu.memory_space<vmem>>, vector<1x2x128xf32>
    %246 = vector.shape_cast %245 : vector<1x2x128xf32> to vector<2x128xf32>
    %247 = vector.extract_strided_slice %246 {offsets = [0, 64], sizes = [2, 64], strides = [1, 1]} : vector<2x128xf32> to vector<2x64xf32>
    %248 = vector.extract_strided_slice %236 {offsets = [0, 64], sizes = [2, 64], strides = [1, 1]} : vector<2x128xf32> to vector<2x64xf32>
    %249 = arith.addf %247, %248 : vector<2x64xf32>
    %250 = vector.extract_strided_slice %243 {offsets = [0, 0], sizes = [2, 48], strides = [1, 1]} : vector<2x64xf32> to vector<2x48xf32>
    %251 = arith.negf %250 : vector<2x48xf32>
    %252 = math.exp %251 : vector<2x48xf32>
    %cst_64 = arith.constant 1.000000e+00 : f32
    %253 = vector.broadcast %cst_64 : f32 to vector<2x48xf32>
    %254 = arith.addf %253, %252 : vector<2x48xf32>
    %255 = arith.divf %253, %254 : vector<2x48xf32>
    %256 = vector.extract_strided_slice %243 {offsets = [0, 48], sizes = [2, 16], strides = [1, 1]} : vector<2x64xf32> to vector<2x16xf32>
    %257 = math.tanh %256 : vector<2x16xf32>
    %258 = vector.extract_strided_slice %255 {offsets = [0, 16], sizes = [2, 16], strides = [1, 1]} : vector<2x48xf32> to vector<2x16xf32>
    %259 = arith.mulf %258, %206 : vector<2x16xf32>
    %260 = vector.extract_strided_slice %255 {offsets = [0, 0], sizes = [2, 16], strides = [1, 1]} : vector<2x48xf32> to vector<2x16xf32>
    %261 = arith.mulf %260, %257 : vector<2x16xf32>
    %262 = arith.addf %259, %261 : vector<2x16xf32>
    %263 = vector.extract_strided_slice %255 {offsets = [0, 32], sizes = [2, 16], strides = [1, 1]} : vector<2x48xf32> to vector<2x16xf32>
    %264 = math.tanh %262 : vector<2x16xf32>
    %265 = arith.mulf %263, %264 : vector<2x16xf32>
    %266 = vector.extract_strided_slice %249 {offsets = [0, 0], sizes = [2, 48], strides = [1, 1]} : vector<2x64xf32> to vector<2x48xf32>
    %267 = arith.negf %266 : vector<2x48xf32>
    %268 = math.exp %267 : vector<2x48xf32>
    %cst_65 = arith.constant 1.000000e+00 : f32
    %269 = vector.broadcast %cst_65 : f32 to vector<2x48xf32>
    %270 = arith.addf %269, %268 : vector<2x48xf32>
    %271 = arith.divf %269, %270 : vector<2x48xf32>
    %272 = vector.extract_strided_slice %249 {offsets = [0, 48], sizes = [2, 16], strides = [1, 1]} : vector<2x64xf32> to vector<2x16xf32>
    %273 = math.tanh %272 : vector<2x16xf32>
    %274 = vector.extract_strided_slice %271 {offsets = [0, 16], sizes = [2, 16], strides = [1, 1]} : vector<2x48xf32> to vector<2x16xf32>
    %275 = arith.mulf %274, %222 : vector<2x16xf32>
    %276 = vector.extract_strided_slice %271 {offsets = [0, 0], sizes = [2, 16], strides = [1, 1]} : vector<2x48xf32> to vector<2x16xf32>
    %277 = arith.mulf %276, %273 : vector<2x16xf32>
    %278 = arith.addf %275, %277 : vector<2x16xf32>
    %279 = vector.extract_strided_slice %271 {offsets = [0, 32], sizes = [2, 16], strides = [1, 1]} : vector<2x48xf32> to vector<2x16xf32>
    %280 = math.tanh %278 : vector<2x16xf32>
    %281 = arith.mulf %279, %280 : vector<2x16xf32>
    %282 = arith.index_cast %c4_i32 : i32 to index
    %c0_66 = arith.constant 0 : index
    %c0_67 = arith.constant 0 : index
    %283 = vector.load %arg4[%282, %c0_66, %c0_67] : memref<8x2x32xf32, #tpu.memory_space<vmem>>, vector<1x2x16xf32>
    %284 = vector.shape_cast %283 : vector<1x2x16xf32> to vector<2x16xf32>
    %285 = vector.shape_cast %265 : vector<2x16xf32> to vector<1x2x16xf32>
    tpu.vector_store %arg4[%282, %c0_66, %c0_67], %285 {strides = array<i32>} : memref<8x2x32xf32, #tpu.memory_space<vmem>>, vector<1x2x16xf32>,
    %286 = arith.index_cast %237 : i32 to index
    %c0_68 = arith.constant 0 : index
    %c16_69 = arith.constant 16 : index
    %287 = vector.load %arg4[%286, %c0_68, %c16_69] : memref<8x2x32xf32, #tpu.memory_space<vmem>>, vector<1x2x16xf32>
    %288 = vector.shape_cast %287 : vector<1x2x16xf32> to vector<2x16xf32>
    %289 = vector.shape_cast %281 : vector<2x16xf32> to vector<1x2x16xf32>
    tpu.vector_store %arg4[%286, %c0_68, %c16_69], %289 {strides = array<i32>} : memref<8x2x32xf32, #tpu.memory_space<vmem>>, vector<1x2x16xf32>,
    %290 = tpu.concatenate %265, %281 in 1 : vector<2x16xf32>, vector<2x16xf32> -> vector<2x32xf32>
    %c5_i32 = arith.constant 5 : i32
    %291 = arith.truncf %290 : vector<2x32xf32> to vector<2x32xbf16>
    %cst_70 = arith.constant dense<0.000000e+00> : vector<2x128xf32>
    %292 = tpu.matmul %291, %8, %cst_70 {dimension_numbers = #tpu.dot_dimension_numbers<[1], [0], [0], [1], [0, 0, 1, 1], [], []>} : vector<2x32xbf16>, vector<32x128xbf16>, vector<2x128xf32> -> vector<2x128xf32>
    %c7_i32_71 = arith.constant 7 : i32
    %293 = arith.subi %c7_i32_71, %c5_i32 : i32
    %294 = arith.index_cast %c5_i32 : i32 to index
    %c0_72 = arith.constant 0 : index
    %c0_73 = arith.constant 0 : index
    %295 = vector.load %arg5[%294, %c0_72, %c0_73] : memref<8x2x128xf32, #tpu.memory_space<vmem>>, vector<1x2x128xf32>
    %296 = vector.shape_cast %295 : vector<1x2x128xf32> to vector<2x128xf32>
    %297 = vector.extract_strided_slice %296 {offsets = [0, 0], sizes = [2, 64], strides = [1, 1]} : vector<2x128xf32> to vector<2x64xf32>
    %298 = vector.extract_strided_slice %292 {offsets = [0, 0], sizes = [2, 64], strides = [1, 1]} : vector<2x128xf32> to vector<2x64xf32>
    %299 = arith.addf %297, %298 : vector<2x64xf32>
    %300 = arith.index_cast %293 : i32 to index
    %c0_74 = arith.constant 0 : index
    %c0_75 = arith.constant 0 : index
    %301 = vector.load %arg5[%300, %c0_74, %c0_75] : memref<8x2x128xf32, #tpu.memory_space<vmem>>, vector<1x2x128xf32>
    %302 = vector.shape_cast %301 : vector<1x2x128xf32> to vector<2x128xf32>
    %303 = vector.extract_strided_slice %302 {offsets = [0, 64], sizes = [2, 64], strides = [1, 1]} : vector<2x128xf32> to vector<2x64xf32>
    %304 = vector.extract_strided_slice %292 {offsets = [0, 64], sizes = [2, 64], strides = [1, 1]} : vector<2x128xf32> to vector<2x64xf32>
    %305 = arith.addf %303, %304 : vector<2x64xf32>
    %306 = vector.extract_strided_slice %299 {offsets = [0, 0], sizes = [2, 48], strides = [1, 1]} : vector<2x64xf32> to vector<2x48xf32>
    %307 = arith.negf %306 : vector<2x48xf32>
    %308 = math.exp %307 : vector<2x48xf32>
    %cst_76 = arith.constant 1.000000e+00 : f32
    %309 = vector.broadcast %cst_76 : f32 to vector<2x48xf32>
    %310 = arith.addf %309, %308 : vector<2x48xf32>
    %311 = arith.divf %309, %310 : vector<2x48xf32>
    %312 = vector.extract_strided_slice %299 {offsets = [0, 48], sizes = [2, 16], strides = [1, 1]} : vector<2x64xf32> to vector<2x16xf32>
    %313 = math.tanh %312 : vector<2x16xf32>
    %314 = vector.extract_strided_slice %311 {offsets = [0, 16], sizes = [2, 16], strides = [1, 1]} : vector<2x48xf32> to vector<2x16xf32>
    %315 = arith.mulf %314, %262 : vector<2x16xf32>
    %316 = vector.extract_strided_slice %311 {offsets = [0, 0], sizes = [2, 16], strides = [1, 1]} : vector<2x48xf32> to vector<2x16xf32>
    %317 = arith.mulf %316, %313 : vector<2x16xf32>
    %318 = arith.addf %315, %317 : vector<2x16xf32>
    %319 = vector.extract_strided_slice %311 {offsets = [0, 32], sizes = [2, 16], strides = [1, 1]} : vector<2x48xf32> to vector<2x16xf32>
    %320 = math.tanh %318 : vector<2x16xf32>
    %321 = arith.mulf %319, %320 : vector<2x16xf32>
    %322 = vector.extract_strided_slice %305 {offsets = [0, 0], sizes = [2, 48], strides = [1, 1]} : vector<2x64xf32> to vector<2x48xf32>
    %323 = arith.negf %322 : vector<2x48xf32>
    %324 = math.exp %323 : vector<2x48xf32>
    %cst_77 = arith.constant 1.000000e+00 : f32
    %325 = vector.broadcast %cst_77 : f32 to vector<2x48xf32>
    %326 = arith.addf %325, %324 : vector<2x48xf32>
    %327 = arith.divf %325, %326 : vector<2x48xf32>
    %328 = vector.extract_strided_slice %305 {offsets = [0, 48], sizes = [2, 16], strides = [1, 1]} : vector<2x64xf32> to vector<2x16xf32>
    %329 = math.tanh %328 : vector<2x16xf32>
    %330 = vector.extract_strided_slice %327 {offsets = [0, 16], sizes = [2, 16], strides = [1, 1]} : vector<2x48xf32> to vector<2x16xf32>
    %331 = arith.mulf %330, %278 : vector<2x16xf32>
    %332 = vector.extract_strided_slice %327 {offsets = [0, 0], sizes = [2, 16], strides = [1, 1]} : vector<2x48xf32> to vector<2x16xf32>
    %333 = arith.mulf %332, %329 : vector<2x16xf32>
    %334 = arith.addf %331, %333 : vector<2x16xf32>
    %335 = vector.extract_strided_slice %327 {offsets = [0, 32], sizes = [2, 16], strides = [1, 1]} : vector<2x48xf32> to vector<2x16xf32>
    %336 = math.tanh %334 : vector<2x16xf32>
    %337 = arith.mulf %335, %336 : vector<2x16xf32>
    %338 = arith.index_cast %c5_i32 : i32 to index
    %c0_78 = arith.constant 0 : index
    %c0_79 = arith.constant 0 : index
    %339 = vector.load %arg4[%338, %c0_78, %c0_79] : memref<8x2x32xf32, #tpu.memory_space<vmem>>, vector<1x2x16xf32>
    %340 = vector.shape_cast %339 : vector<1x2x16xf32> to vector<2x16xf32>
    %341 = vector.shape_cast %321 : vector<2x16xf32> to vector<1x2x16xf32>
    tpu.vector_store %arg4[%338, %c0_78, %c0_79], %341 {strides = array<i32>} : memref<8x2x32xf32, #tpu.memory_space<vmem>>, vector<1x2x16xf32>,
    %342 = arith.index_cast %293 : i32 to index
    %c0_80 = arith.constant 0 : index
    %c16_81 = arith.constant 16 : index
    %343 = vector.load %arg4[%342, %c0_80, %c16_81] : memref<8x2x32xf32, #tpu.memory_space<vmem>>, vector<1x2x16xf32>
    %344 = vector.shape_cast %343 : vector<1x2x16xf32> to vector<2x16xf32>
    %345 = vector.shape_cast %337 : vector<2x16xf32> to vector<1x2x16xf32>
    tpu.vector_store %arg4[%342, %c0_80, %c16_81], %345 {strides = array<i32>} : memref<8x2x32xf32, #tpu.memory_space<vmem>>, vector<1x2x16xf32>,
    %346 = tpu.concatenate %321, %337 in 1 : vector<2x16xf32>, vector<2x16xf32> -> vector<2x32xf32>
    %c6_i32 = arith.constant 6 : i32
    %347 = arith.truncf %346 : vector<2x32xf32> to vector<2x32xbf16>
    %cst_82 = arith.constant dense<0.000000e+00> : vector<2x128xf32>
    %348 = tpu.matmul %347, %8, %cst_82 {dimension_numbers = #tpu.dot_dimension_numbers<[1], [0], [0], [1], [0, 0, 1, 1], [], []>} : vector<2x32xbf16>, vector<32x128xbf16>, vector<2x128xf32> -> vector<2x128xf32>
    %c7_i32_83 = arith.constant 7 : i32
    %349 = arith.subi %c7_i32_83, %c6_i32 : i32
    %350 = arith.index_cast %c6_i32 : i32 to index
    %c0_84 = arith.constant 0 : index
    %c0_85 = arith.constant 0 : index
    %351 = vector.load %arg5[%350, %c0_84, %c0_85] : memref<8x2x128xf32, #tpu.memory_space<vmem>>, vector<1x2x128xf32>
    %352 = vector.shape_cast %351 : vector<1x2x128xf32> to vector<2x128xf32>
    %353 = vector.extract_strided_slice %352 {offsets = [0, 0], sizes = [2, 64], strides = [1, 1]} : vector<2x128xf32> to vector<2x64xf32>
    %354 = vector.extract_strided_slice %348 {offsets = [0, 0], sizes = [2, 64], strides = [1, 1]} : vector<2x128xf32> to vector<2x64xf32>
    %355 = arith.addf %353, %354 : vector<2x64xf32>
    %356 = arith.index_cast %349 : i32 to index
    %c0_86 = arith.constant 0 : index
    %c0_87 = arith.constant 0 : index
    %357 = vector.load %arg5[%356, %c0_86, %c0_87] : memref<8x2x128xf32, #tpu.memory_space<vmem>>, vector<1x2x128xf32>
    %358 = vector.shape_cast %357 : vector<1x2x128xf32> to vector<2x128xf32>
    %359 = vector.extract_strided_slice %358 {offsets = [0, 64], sizes = [2, 64], strides = [1, 1]} : vector<2x128xf32> to vector<2x64xf32>
    %360 = vector.extract_strided_slice %348 {offsets = [0, 64], sizes = [2, 64], strides = [1, 1]} : vector<2x128xf32> to vector<2x64xf32>
    %361 = arith.addf %359, %360 : vector<2x64xf32>
    %362 = vector.extract_strided_slice %355 {offsets = [0, 0], sizes = [2, 48], strides = [1, 1]} : vector<2x64xf32> to vector<2x48xf32>
    %363 = arith.negf %362 : vector<2x48xf32>
    %364 = math.exp %363 : vector<2x48xf32>
    %cst_88 = arith.constant 1.000000e+00 : f32
    %365 = vector.broadcast %cst_88 : f32 to vector<2x48xf32>
    %366 = arith.addf %365, %364 : vector<2x48xf32>
    %367 = arith.divf %365, %366 : vector<2x48xf32>
    %368 = vector.extract_strided_slice %355 {offsets = [0, 48], sizes = [2, 16], strides = [1, 1]} : vector<2x64xf32> to vector<2x16xf32>
    %369 = math.tanh %368 : vector<2x16xf32>
    %370 = vector.extract_strided_slice %367 {offsets = [0, 16], sizes = [2, 16], strides = [1, 1]} : vector<2x48xf32> to vector<2x16xf32>
    %371 = arith.mulf %370, %318 : vector<2x16xf32>
    %372 = vector.extract_strided_slice %367 {offsets = [0, 0], sizes = [2, 16], strides = [1, 1]} : vector<2x48xf32> to vector<2x16xf32>
    %373 = arith.mulf %372, %369 : vector<2x16xf32>
    %374 = arith.addf %371, %373 : vector<2x16xf32>
    %375 = vector.extract_strided_slice %367 {offsets = [0, 32], sizes = [2, 16], strides = [1, 1]} : vector<2x48xf32> to vector<2x16xf32>
    %376 = math.tanh %374 : vector<2x16xf32>
    %377 = arith.mulf %375, %376 : vector<2x16xf32>
    %378 = vector.extract_strided_slice %361 {offsets = [0, 0], sizes = [2, 48], strides = [1, 1]} : vector<2x64xf32> to vector<2x48xf32>
    %379 = arith.negf %378 : vector<2x48xf32>
    %380 = math.exp %379 : vector<2x48xf32>
    %cst_89 = arith.constant 1.000000e+00 : f32
    %381 = vector.broadcast %cst_89 : f32 to vector<2x48xf32>
    %382 = arith.addf %381, %380 : vector<2x48xf32>
    %383 = arith.divf %381, %382 : vector<2x48xf32>
    %384 = vector.extract_strided_slice %361 {offsets = [0, 48], sizes = [2, 16], strides = [1, 1]} : vector<2x64xf32> to vector<2x16xf32>
    %385 = math.tanh %384 : vector<2x16xf32>
    %386 = vector.extract_strided_slice %383 {offsets = [0, 16], sizes = [2, 16], strides = [1, 1]} : vector<2x48xf32> to vector<2x16xf32>
    %387 = arith.mulf %386, %334 : vector<2x16xf32>
    %388 = vector.extract_strided_slice %383 {offsets = [0, 0], sizes = [2, 16], strides = [1, 1]} : vector<2x48xf32> to vector<2x16xf32>
    %389 = arith.mulf %388, %385 : vector<2x16xf32>
    %390 = arith.addf %387, %389 : vector<2x16xf32>
    %391 = vector.extract_strided_slice %383 {offsets = [0, 32], sizes = [2, 16], strides = [1, 1]} : vector<2x48xf32> to vector<2x16xf32>
    %392 = math.tanh %390 : vector<2x16xf32>
    %393 = arith.mulf %391, %392 : vector<2x16xf32>
    %394 = arith.index_cast %c6_i32 : i32 to index
    %c0_90 = arith.constant 0 : index
    %c0_91 = arith.constant 0 : index
    %395 = vector.load %arg4[%394, %c0_90, %c0_91] : memref<8x2x32xf32, #tpu.memory_space<vmem>>, vector<1x2x16xf32>
    %396 = vector.shape_cast %395 : vector<1x2x16xf32> to vector<2x16xf32>
    %397 = vector.shape_cast %377 : vector<2x16xf32> to vector<1x2x16xf32>
    tpu.vector_store %arg4[%394, %c0_90, %c0_91], %397 {strides = array<i32>} : memref<8x2x32xf32, #tpu.memory_space<vmem>>, vector<1x2x16xf32>,
    %398 = arith.index_cast %349 : i32 to index
    %c0_92 = arith.constant 0 : index
    %c16_93 = arith.constant 16 : index
    %399 = vector.load %arg4[%398, %c0_92, %c16_93] : memref<8x2x32xf32, #tpu.memory_space<vmem>>, vector<1x2x16xf32>
    %400 = vector.shape_cast %399 : vector<1x2x16xf32> to vector<2x16xf32>
    %401 = vector.shape_cast %393 : vector<2x16xf32> to vector<1x2x16xf32>
    tpu.vector_store %arg4[%398, %c0_92, %c16_93], %401 {strides = array<i32>} : memref<8x2x32xf32, #tpu.memory_space<vmem>>, vector<1x2x16xf32>,
    %402 = tpu.concatenate %377, %393 in 1 : vector<2x16xf32>, vector<2x16xf32> -> vector<2x32xf32>
    %c7_i32_94 = arith.constant 7 : i32
    %403 = arith.truncf %402 : vector<2x32xf32> to vector<2x32xbf16>
    %cst_95 = arith.constant dense<0.000000e+00> : vector<2x128xf32>
    %404 = tpu.matmul %403, %8, %cst_95 {dimension_numbers = #tpu.dot_dimension_numbers<[1], [0], [0], [1], [0, 0, 1, 1], [], []>} : vector<2x32xbf16>, vector<32x128xbf16>, vector<2x128xf32> -> vector<2x128xf32>
    %c7_i32_96 = arith.constant 7 : i32
    %405 = arith.subi %c7_i32_96, %c7_i32_94 : i32
    %406 = arith.index_cast %c7_i32_94 : i32 to index
    %c0_97 = arith.constant 0 : index
    %c0_98 = arith.constant 0 : index
    %407 = vector.load %arg5[%406, %c0_97, %c0_98] : memref<8x2x128xf32, #tpu.memory_space<vmem>>, vector<1x2x128xf32>
    %408 = vector.shape_cast %407 : vector<1x2x128xf32> to vector<2x128xf32>
    %409 = vector.extract_strided_slice %408 {offsets = [0, 0], sizes = [2, 64], strides = [1, 1]} : vector<2x128xf32> to vector<2x64xf32>
    %410 = vector.extract_strided_slice %404 {offsets = [0, 0], sizes = [2, 64], strides = [1, 1]} : vector<2x128xf32> to vector<2x64xf32>
    %411 = arith.addf %409, %410 : vector<2x64xf32>
    %412 = arith.index_cast %405 : i32 to index
    %c0_99 = arith.constant 0 : index
    %c0_100 = arith.constant 0 : index
    %413 = vector.load %arg5[%412, %c0_99, %c0_100] : memref<8x2x128xf32, #tpu.memory_space<vmem>>, vector<1x2x128xf32>
    %414 = vector.shape_cast %413 : vector<1x2x128xf32> to vector<2x128xf32>
    %415 = vector.extract_strided_slice %414 {offsets = [0, 64], sizes = [2, 64], strides = [1, 1]} : vector<2x128xf32> to vector<2x64xf32>
    %416 = vector.extract_strided_slice %404 {offsets = [0, 64], sizes = [2, 64], strides = [1, 1]} : vector<2x128xf32> to vector<2x64xf32>
    %417 = arith.addf %415, %416 : vector<2x64xf32>
    %418 = vector.extract_strided_slice %411 {offsets = [0, 0], sizes = [2, 48], strides = [1, 1]} : vector<2x64xf32> to vector<2x48xf32>
    %419 = arith.negf %418 : vector<2x48xf32>
    %420 = math.exp %419 : vector<2x48xf32>
    %cst_101 = arith.constant 1.000000e+00 : f32
    %421 = vector.broadcast %cst_101 : f32 to vector<2x48xf32>
    %422 = arith.addf %421, %420 : vector<2x48xf32>
    %423 = arith.divf %421, %422 : vector<2x48xf32>
    %424 = vector.extract_strided_slice %411 {offsets = [0, 48], sizes = [2, 16], strides = [1, 1]} : vector<2x64xf32> to vector<2x16xf32>
    %425 = math.tanh %424 : vector<2x16xf32>
    %426 = vector.extract_strided_slice %423 {offsets = [0, 16], sizes = [2, 16], strides = [1, 1]} : vector<2x48xf32> to vector<2x16xf32>
    %427 = arith.mulf %426, %374 : vector<2x16xf32>
    %428 = vector.extract_strided_slice %423 {offsets = [0, 0], sizes = [2, 16], strides = [1, 1]} : vector<2x48xf32> to vector<2x16xf32>
    %429 = arith.mulf %428, %425 : vector<2x16xf32>
    %430 = arith.addf %427, %429 : vector<2x16xf32>
    %431 = vector.extract_strided_slice %423 {offsets = [0, 32], sizes = [2, 16], strides = [1, 1]} : vector<2x48xf32> to vector<2x16xf32>
    %432 = math.tanh %430 : vector<2x16xf32>
    %433 = arith.mulf %431, %432 : vector<2x16xf32>
    %434 = vector.extract_strided_slice %417 {offsets = [0, 0], sizes = [2, 48], strides = [1, 1]} : vector<2x64xf32> to vector<2x48xf32>
    %435 = arith.negf %434 : vector<2x48xf32>
    %436 = math.exp %435 : vector<2x48xf32>
    %cst_102 = arith.constant 1.000000e+00 : f32
    %437 = vector.broadcast %cst_102 : f32 to vector<2x48xf32>
    %438 = arith.addf %437, %436 : vector<2x48xf32>
    %439 = arith.divf %437, %438 : vector<2x48xf32>
    %440 = vector.extract_strided_slice %417 {offsets = [0, 48], sizes = [2, 16], strides = [1, 1]} : vector<2x64xf32> to vector<2x16xf32>
    %441 = math.tanh %440 : vector<2x16xf32>
    %442 = vector.extract_strided_slice %439 {offsets = [0, 16], sizes = [2, 16], strides = [1, 1]} : vector<2x48xf32> to vector<2x16xf32>
    %443 = arith.mulf %442, %390 : vector<2x16xf32>
    %444 = vector.extract_strided_slice %439 {offsets = [0, 0], sizes = [2, 16], strides = [1, 1]} : vector<2x48xf32> to vector<2x16xf32>
    %445 = arith.mulf %444, %441 : vector<2x16xf32>
    %446 = arith.addf %443, %445 : vector<2x16xf32>
    %447 = vector.extract_strided_slice %439 {offsets = [0, 32], sizes = [2, 16], strides = [1, 1]} : vector<2x48xf32> to vector<2x16xf32>
    %448 = math.tanh %446 : vector<2x16xf32>
    %449 = arith.mulf %447, %448 : vector<2x16xf32>
    %450 = arith.index_cast %c7_i32_94 : i32 to index
    %c0_103 = arith.constant 0 : index
    %c0_104 = arith.constant 0 : index
    %451 = vector.load %arg4[%450, %c0_103, %c0_104] : memref<8x2x32xf32, #tpu.memory_space<vmem>>, vector<1x2x16xf32>
    %452 = vector.shape_cast %451 : vector<1x2x16xf32> to vector<2x16xf32>
    %453 = vector.shape_cast %433 : vector<2x16xf32> to vector<1x2x16xf32>
    tpu.vector_store %arg4[%450, %c0_103, %c0_104], %453 {strides = array<i32>} : memref<8x2x32xf32, #tpu.memory_space<vmem>>, vector<1x2x16xf32>,
    %454 = arith.index_cast %405 : i32 to index
    %c0_105 = arith.constant 0 : index
    %c16_106 = arith.constant 16 : index
    %455 = vector.load %arg4[%454, %c0_105, %c16_106] : memref<8x2x32xf32, #tpu.memory_space<vmem>>, vector<1x2x16xf32>
    %456 = vector.shape_cast %455 : vector<1x2x16xf32> to vector<2x16xf32>
    %457 = vector.shape_cast %449 : vector<2x16xf32> to vector<1x2x16xf32>
    tpu.vector_store %arg4[%454, %c0_105, %c16_106], %457 {strides = array<i32>} : memref<8x2x32xf32, #tpu.memory_space<vmem>>, vector<1x2x16xf32>,
    %458 = tpu.concatenate %433, %449 in 1 : vector<2x16xf32>, vector<2x16xf32> -> vector<2x32xf32>
    %c8_i32 = arith.constant 8 : i32
    return
  }
}

module attributes {stable_mosaic.version = 11 : i64} {
  func.func @bilstm_layer_kernel(%arg0: memref<16x32xbf16, #tpu.memory_space<vmem>>, %arg1: memref<32x128xbf16, #tpu.memory_space<vmem>>, %arg2: memref<32x128xbf16, #tpu.memory_space<vmem>>, %arg3: memref<1x128xf32, #tpu.memory_space<vmem>>, %arg4: memref<8x2x32xf32, #tpu.memory_space<vmem>>, %arg5: memref<8x2x128xf32, #tpu.memory_space<vmem>>) attributes {dimension_semantics = [], scalar_prefetch = 0 : i64, scratch_operands = 1 : i64, tpu.core_type = #tpu.core_type<tc>} {
    %c0 = arith.constant 0 : index
    %c0_0 = arith.constant 0 : index
    %0 = vector.load %arg0[%c0, %c0_0] : memref<16x32xbf16, #tpu.memory_space<vmem>>, vector<16x32xbf16>
    %c0_1 = arith.constant 0 : index
    %c0_2 = arith.constant 0 : index
    %1 = vector.load %arg1[%c0_1, %c0_2] : memref<32x128xbf16, #tpu.memory_space<vmem>>, vector<32x128xbf16>
    %cst = arith.constant dense<0.000000e+00> : vector<16x128xf32>
    %2 = tpu.matmul %0, %1, %cst {dimension_numbers = #tpu.dot_dimension_numbers<[1], [0], [0], [1], [0, 0, 1, 1], [], []>} : vector<16x32xbf16>, vector<32x128xbf16>, vector<16x128xf32> -> vector<16x128xf32>
    %c0_3 = arith.constant 0 : index
    %c0_4 = arith.constant 0 : index
    %3 = vector.load %arg3[%c0_3, %c0_4] : memref<1x128xf32, #tpu.memory_space<vmem>>, vector<1x128xf32>
    %4 = vector.broadcast %3 : vector<1x128xf32> to vector<16x128xf32>
    %5 = arith.addf %2, %4 : vector<16x128xf32>
    %6 = vector.shape_cast %5 : vector<16x128xf32> to vector<8x2x128xf32>
    %c0_5 = arith.constant 0 : index
    %c0_6 = arith.constant 0 : index
    %c0_7 = arith.constant 0 : index
    %7 = vector.load %arg5[%c0_5, %c0_6, %c0_7] : memref<8x2x128xf32, #tpu.memory_space<vmem>>, vector<8x2x128xf32>
    tpu.vector_store %arg5[%c0_5, %c0_6, %c0_7], %6 {strides = array<i32>} : memref<8x2x128xf32, #tpu.memory_space<vmem>>, vector<8x2x128xf32>,
    %c0_8 = arith.constant 0 : index
    %c0_9 = arith.constant 0 : index
    %8 = vector.load %arg2[%c0_8, %c0_9] : memref<32x128xbf16, #tpu.memory_space<vmem>>, vector<32x128xbf16>
    %cst_10 = arith.constant 0.000000e+00 : f32
    %9 = vector.broadcast %cst_10 : f32 to vector<2x16xf32>
    %cst_11 = arith.constant 0.000000e+00 : f32
    %10 = vector.broadcast %cst_11 : f32 to vector<2x32xf32>
    %c0_i32 = arith.constant 0 : i32
    %11 = arith.truncf %10 : vector<2x32xf32> to vector<2x32xbf16>
    %cst_12 = arith.constant dense<0.000000e+00> : vector<2x128xf32>
    %12 = tpu.matmul %11, %8, %cst_12 {dimension_numbers = #tpu.dot_dimension_numbers<[1], [0], [0], [1], [0, 0, 1, 1], [], []>} : vector<2x32xbf16>, vector<32x128xbf16>, vector<2x128xf32> -> vector<2x128xf32>
    %c7_i32 = arith.constant 7 : i32
    %13 = arith.subi %c7_i32, %c0_i32 : i32
    %14 = arith.index_cast %c0_i32 : i32 to index
    %c0_13 = arith.constant 0 : index
    %c0_14 = arith.constant 0 : index
    %15 = vector.load %arg5[%14, %c0_13, %c0_14] : memref<8x2x128xf32, #tpu.memory_space<vmem>>, vector<1x2x128xf32>
    %16 = vector.shape_cast %15 : vector<1x2x128xf32> to vector<2x128xf32>
    %17 = vector.extract_strided_slice %16 {offsets = [0, 0], sizes = [2, 64], strides = [1, 1]} : vector<2x128xf32> to vector<2x64xf32>
    %18 = vector.extract_strided_slice %12 {offsets = [0, 0], sizes = [2, 64], strides = [1, 1]} : vector<2x128xf32> to vector<2x64xf32>
    %19 = arith.addf %17, %18 : vector<2x64xf32>
    %20 = arith.index_cast %13 : i32 to index
    %c0_15 = arith.constant 0 : index
    %c0_16 = arith.constant 0 : index
    %21 = vector.load %arg5[%20, %c0_15, %c0_16] : memref<8x2x128xf32, #tpu.memory_space<vmem>>, vector<1x2x128xf32>
    %22 = vector.shape_cast %21 : vector<1x2x128xf32> to vector<2x128xf32>
    %23 = vector.extract_strided_slice %22 {offsets = [0, 64], sizes = [2, 64], strides = [1, 1]} : vector<2x128xf32> to vector<2x64xf32>
    %24 = vector.extract_strided_slice %12 {offsets = [0, 64], sizes = [2, 64], strides = [1, 1]} : vector<2x128xf32> to vector<2x64xf32>
    %25 = arith.addf %23, %24 : vector<2x64xf32>
    %26 = vector.extract_strided_slice %19 {offsets = [0, 0], sizes = [2, 48], strides = [1, 1]} : vector<2x64xf32> to vector<2x48xf32>
    %27 = arith.negf %26 : vector<2x48xf32>
    %28 = math.exp %27 : vector<2x48xf32>
    %cst_17 = arith.constant 1.000000e+00 : f32
    %29 = vector.broadcast %cst_17 : f32 to vector<2x48xf32>
    %30 = arith.addf %29, %28 : vector<2x48xf32>
    %31 = arith.divf %29, %30 : vector<2x48xf32>
    %32 = vector.extract_strided_slice %19 {offsets = [0, 48], sizes = [2, 16], strides = [1, 1]} : vector<2x64xf32> to vector<2x16xf32>
    %33 = math.tanh %32 : vector<2x16xf32>
    %34 = vector.extract_strided_slice %31 {offsets = [0, 16], sizes = [2, 16], strides = [1, 1]} : vector<2x48xf32> to vector<2x16xf32>
    %35 = arith.mulf %34, %9 : vector<2x16xf32>
    %36 = vector.extract_strided_slice %31 {offsets = [0, 0], sizes = [2, 16], strides = [1, 1]} : vector<2x48xf32> to vector<2x16xf32>
    %37 = arith.mulf %36, %33 : vector<2x16xf32>
    %38 = arith.addf %35, %37 : vector<2x16xf32>
    %39 = vector.extract_strided_slice %31 {offsets = [0, 32], sizes = [2, 16], strides = [1, 1]} : vector<2x48xf32> to vector<2x16xf32>
    %40 = math.tanh %38 : vector<2x16xf32>
    %41 = arith.mulf %39, %40 : vector<2x16xf32>
    %42 = vector.extract_strided_slice %25 {offsets = [0, 0], sizes = [2, 48], strides = [1, 1]} : vector<2x64xf32> to vector<2x48xf32>
    %43 = arith.negf %42 : vector<2x48xf32>
    %44 = math.exp %43 : vector<2x48xf32>
    %cst_18 = arith.constant 1.000000e+00 : f32
    %45 = vector.broadcast %cst_18 : f32 to vector<2x48xf32>
    %46 = arith.addf %45, %44 : vector<2x48xf32>
    %47 = arith.divf %45, %46 : vector<2x48xf32>
    %48 = vector.extract_strided_slice %25 {offsets = [0, 48], sizes = [2, 16], strides = [1, 1]} : vector<2x64xf32> to vector<2x16xf32>
    %49 = math.tanh %48 : vector<2x16xf32>
    %50 = vector.extract_strided_slice %47 {offsets = [0, 16], sizes = [2, 16], strides = [1, 1]} : vector<2x48xf32> to vector<2x16xf32>
    %51 = arith.mulf %50, %9 : vector<2x16xf32>
    %52 = vector.extract_strided_slice %47 {offsets = [0, 0], sizes = [2, 16], strides = [1, 1]} : vector<2x48xf32> to vector<2x16xf32>
    %53 = arith.mulf %52, %49 : vector<2x16xf32>
    %54 = arith.addf %51, %53 : vector<2x16xf32>
    %55 = vector.extract_strided_slice %47 {offsets = [0, 32], sizes = [2, 16], strides = [1, 1]} : vector<2x48xf32> to vector<2x16xf32>
    %56 = math.tanh %54 : vector<2x16xf32>
    %57 = arith.mulf %55, %56 : vector<2x16xf32>
    %58 = arith.index_cast %c0_i32 : i32 to index
    %c0_19 = arith.constant 0 : index
    %c0_20 = arith.constant 0 : index
    %59 = vector.load %arg4[%58, %c0_19, %c0_20] : memref<8x2x32xf32, #tpu.memory_space<vmem>>, vector<1x2x16xf32>
    %60 = vector.shape_cast %59 : vector<1x2x16xf32> to vector<2x16xf32>
    %61 = vector.shape_cast %41 : vector<2x16xf32> to vector<1x2x16xf32>
    tpu.vector_store %arg4[%58, %c0_19, %c0_20], %61 {strides = array<i32>} : memref<8x2x32xf32, #tpu.memory_space<vmem>>, vector<1x2x16xf32>,
    %62 = arith.index_cast %13 : i32 to index
    %c0_21 = arith.constant 0 : index
    %c16 = arith.constant 16 : index
    %63 = vector.load %arg4[%62, %c0_21, %c16] : memref<8x2x32xf32, #tpu.memory_space<vmem>>, vector<1x2x16xf32>
    %64 = vector.shape_cast %63 : vector<1x2x16xf32> to vector<2x16xf32>
    %65 = vector.shape_cast %57 : vector<2x16xf32> to vector<1x2x16xf32>
    tpu.vector_store %arg4[%62, %c0_21, %c16], %65 {strides = array<i32>} : memref<8x2x32xf32, #tpu.memory_space<vmem>>, vector<1x2x16xf32>,
    %66 = tpu.concatenate %41, %57 in 1 : vector<2x16xf32>, vector<2x16xf32> -> vector<2x32xf32>
    %c1_i32 = arith.constant 1 : i32
    %67 = arith.truncf %66 : vector<2x32xf32> to vector<2x32xbf16>
    %cst_22 = arith.constant dense<0.000000e+00> : vector<2x128xf32>
    %68 = tpu.matmul %67, %8, %cst_22 {dimension_numbers = #tpu.dot_dimension_numbers<[1], [0], [0], [1], [0, 0, 1, 1], [], []>} : vector<2x32xbf16>, vector<32x128xbf16>, vector<2x128xf32> -> vector<2x128xf32>
    %c7_i32_23 = arith.constant 7 : i32
    %69 = arith.subi %c7_i32_23, %c1_i32 : i32
    %70 = arith.index_cast %c1_i32 : i32 to index
    %c0_24 = arith.constant 0 : index
    %c0_25 = arith.constant 0 : index
    %71 = vector.load %arg5[%70, %c0_24, %c0_25] : memref<8x2x128xf32, #tpu.memory_space<vmem>>, vector<1x2x128xf32>
    %72 = vector.shape_cast %71 : vector<1x2x128xf32> to vector<2x128xf32>
    %73 = vector.extract_strided_slice %72 {offsets = [0, 0], sizes = [2, 64], strides = [1, 1]} : vector<2x128xf32> to vector<2x64xf32>
    %74 = vector.extract_strided_slice %68 {offsets = [0, 0], sizes = [2, 64], strides = [1, 1]} : vector<2x128xf32> to vector<2x64xf32>
    %75 = arith.addf %73, %74 : vector<2x64xf32>
    %76 = arith.index_cast %69 : i32 to index
    %c0_26 = arith.constant 0 : index
    %c0_27 = arith.constant 0 : index
    %77 = vector.load %arg5[%76, %c0_26, %c0_27] : memref<8x2x128xf32, #tpu.memory_space<vmem>>, vector<1x2x128xf32>
    %78 = vector.shape_cast %77 : vector<1x2x128xf32> to vector<2x128xf32>
    %79 = vector.extract_strided_slice %78 {offsets = [0, 64], sizes = [2, 64], strides = [1, 1]} : vector<2x128xf32> to vector<2x64xf32>
    %80 = vector.extract_strided_slice %68 {offsets = [0, 64], sizes = [2, 64], strides = [1, 1]} : vector<2x128xf32> to vector<2x64xf32>
    %81 = arith.addf %79, %80 : vector<2x64xf32>
    %82 = vector.extract_strided_slice %75 {offsets = [0, 0], sizes = [2, 48], strides = [1, 1]} : vector<2x64xf32> to vector<2x48xf32>
    %83 = arith.negf %82 : vector<2x48xf32>
    %84 = math.exp %83 : vector<2x48xf32>
    %cst_28 = arith.constant 1.000000e+00 : f32
    %85 = vector.broadcast %cst_28 : f32 to vector<2x48xf32>
    %86 = arith.addf %85, %84 : vector<2x48xf32>
    %87 = arith.divf %85, %86 : vector<2x48xf32>
    %88 = vector.extract_strided_slice %75 {offsets = [0, 48], sizes = [2, 16], strides = [1, 1]} : vector<2x64xf32> to vector<2x16xf32>
    %89 = math.tanh %88 : vector<2x16xf32>
    %90 = vector.extract_strided_slice %87 {offsets = [0, 16], sizes = [2, 16], strides = [1, 1]} : vector<2x48xf32> to vector<2x16xf32>
    %91 = arith.mulf %90, %38 : vector<2x16xf32>
    %92 = vector.extract_strided_slice %87 {offsets = [0, 0], sizes = [2, 16], strides = [1, 1]} : vector<2x48xf32> to vector<2x16xf32>
    %93 = arith.mulf %92, %89 : vector<2x16xf32>
    %94 = arith.addf %91, %93 : vector<2x16xf32>
    %95 = vector.extract_strided_slice %87 {offsets = [0, 32], sizes = [2, 16], strides = [1, 1]} : vector<2x48xf32> to vector<2x16xf32>
    %96 = math.tanh %94 : vector<2x16xf32>
    %97 = arith.mulf %95, %96 : vector<2x16xf32>
    %98 = vector.extract_strided_slice %81 {offsets = [0, 0], sizes = [2, 48], strides = [1, 1]} : vector<2x64xf32> to vector<2x48xf32>
    %99 = arith.negf %98 : vector<2x48xf32>
    %100 = math.exp %99 : vector<2x48xf32>
    %cst_29 = arith.constant 1.000000e+00 : f32
    %101 = vector.broadcast %cst_29 : f32 to vector<2x48xf32>
    %102 = arith.addf %101, %100 : vector<2x48xf32>
    %103 = arith.divf %101, %102 : vector<2x48xf32>
    %104 = vector.extract_strided_slice %81 {offsets = [0, 48], sizes = [2, 16], strides = [1, 1]} : vector<2x64xf32> to vector<2x16xf32>
    %105 = math.tanh %104 : vector<2x16xf32>
    %106 = vector.extract_strided_slice %103 {offsets = [0, 16], sizes = [2, 16], strides = [1, 1]} : vector<2x48xf32> to vector<2x16xf32>
    %107 = arith.mulf %106, %54 : vector<2x16xf32>
    %108 = vector.extract_strided_slice %103 {offsets = [0, 0], sizes = [2, 16], strides = [1, 1]} : vector<2x48xf32> to vector<2x16xf32>
    %109 = arith.mulf %108, %105 : vector<2x16xf32>
    %110 = arith.addf %107, %109 : vector<2x16xf32>
    %111 = vector.extract_strided_slice %103 {offsets = [0, 32], sizes = [2, 16], strides = [1, 1]} : vector<2x48xf32> to vector<2x16xf32>
    %112 = math.tanh %110 : vector<2x16xf32>
    %113 = arith.mulf %111, %112 : vector<2x16xf32>
    %114 = arith.index_cast %c1_i32 : i32 to index
    %c0_30 = arith.constant 0 : index
    %c0_31 = arith.constant 0 : index
    %115 = vector.load %arg4[%114, %c0_30, %c0_31] : memref<8x2x32xf32, #tpu.memory_space<vmem>>, vector<1x2x16xf32>
    %116 = vector.shape_cast %115 : vector<1x2x16xf32> to vector<2x16xf32>
    %117 = vector.shape_cast %97 : vector<2x16xf32> to vector<1x2x16xf32>
    tpu.vector_store %arg4[%114, %c0_30, %c0_31], %117 {strides = array<i32>} : memref<8x2x32xf32, #tpu.memory_space<vmem>>, vector<1x2x16xf32>,
    %118 = arith.index_cast %69 : i32 to index
    %c0_32 = arith.constant 0 : index
    %c16_33 = arith.constant 16 : index
    %119 = vector.load %arg4[%118, %c0_32, %c16_33] : memref<8x2x32xf32, #tpu.memory_space<vmem>>, vector<1x2x16xf32>
    %120 = vector.shape_cast %119 : vector<1x2x16xf32> to vector<2x16xf32>
    %121 = vector.shape_cast %113 : vector<2x16xf32> to vector<1x2x16xf32>
    tpu.vector_store %arg4[%118, %c0_32, %c16_33], %121 {strides = array<i32>} : memref<8x2x32xf32, #tpu.memory_space<vmem>>, vector<1x2x16xf32>,
    %122 = tpu.concatenate %97, %113 in 1 : vector<2x16xf32>, vector<2x16xf32> -> vector<2x32xf32>
    %c2_i32 = arith.constant 2 : i32
    %123 = arith.truncf %122 : vector<2x32xf32> to vector<2x32xbf16>
    %cst_34 = arith.constant dense<0.000000e+00> : vector<2x128xf32>
    %124 = tpu.matmul %123, %8, %cst_34 {dimension_numbers = #tpu.dot_dimension_numbers<[1], [0], [0], [1], [0, 0, 1, 1], [], []>} : vector<2x32xbf16>, vector<32x128xbf16>, vector<2x128xf32> -> vector<2x128xf32>
    %c7_i32_35 = arith.constant 7 : i32
    %125 = arith.subi %c7_i32_35, %c2_i32 : i32
    %126 = arith.index_cast %c2_i32 : i32 to index
    %c0_36 = arith.constant 0 : index
    %c0_37 = arith.constant 0 : index
    %127 = vector.load %arg5[%126, %c0_36, %c0_37] : memref<8x2x128xf32, #tpu.memory_space<vmem>>, vector<1x2x128xf32>
    %128 = vector.shape_cast %127 : vector<1x2x128xf32> to vector<2x128xf32>
    %129 = vector.extract_strided_slice %128 {offsets = [0, 0], sizes = [2, 64], strides = [1, 1]} : vector<2x128xf32> to vector<2x64xf32>
    %130 = vector.extract_strided_slice %124 {offsets = [0, 0], sizes = [2, 64], strides = [1, 1]} : vector<2x128xf32> to vector<2x64xf32>
    %131 = arith.addf %129, %130 : vector<2x64xf32>
    %132 = arith.index_cast %125 : i32 to index
    %c0_38 = arith.constant 0 : index
    %c0_39 = arith.constant 0 : index
    %133 = vector.load %arg5[%132, %c0_38, %c0_39] : memref<8x2x128xf32, #tpu.memory_space<vmem>>, vector<1x2x128xf32>
    %134 = vector.shape_cast %133 : vector<1x2x128xf32> to vector<2x128xf32>
    %135 = vector.extract_strided_slice %134 {offsets = [0, 64], sizes = [2, 64], strides = [1, 1]} : vector<2x128xf32> to vector<2x64xf32>
    %136 = vector.extract_strided_slice %124 {offsets = [0, 64], sizes = [2, 64], strides = [1, 1]} : vector<2x128xf32> to vector<2x64xf32>
    %137 = arith.addf %135, %136 : vector<2x64xf32>
    %138 = vector.extract_strided_slice %131 {offsets = [0, 0], sizes = [2, 48], strides = [1, 1]} : vector<2x64xf32> to vector<2x48xf32>
    %139 = arith.negf %138 : vector<2x48xf32>
    %140 = math.exp %139 : vector<2x48xf32>
    %cst_40 = arith.constant 1.000000e+00 : f32
    %141 = vector.broadcast %cst_40 : f32 to vector<2x48xf32>
    %142 = arith.addf %141, %140 : vector<2x48xf32>
    %143 = arith.divf %141, %142 : vector<2x48xf32>
    %144 = vector.extract_strided_slice %131 {offsets = [0, 48], sizes = [2, 16], strides = [1, 1]} : vector<2x64xf32> to vector<2x16xf32>
    %145 = math.tanh %144 : vector<2x16xf32>
    %146 = vector.extract_strided_slice %143 {offsets = [0, 16], sizes = [2, 16], strides = [1, 1]} : vector<2x48xf32> to vector<2x16xf32>
    %147 = arith.mulf %146, %94 : vector<2x16xf32>
    %148 = vector.extract_strided_slice %143 {offsets = [0, 0], sizes = [2, 16], strides = [1, 1]} : vector<2x48xf32> to vector<2x16xf32>
    %149 = arith.mulf %148, %145 : vector<2x16xf32>
    %150 = arith.addf %147, %149 : vector<2x16xf32>
    %151 = vector.extract_strided_slice %143 {offsets = [0, 32], sizes = [2, 16], strides = [1, 1]} : vector<2x48xf32> to vector<2x16xf32>
    %152 = math.tanh %150 : vector<2x16xf32>
    %153 = arith.mulf %151, %152 : vector<2x16xf32>
    %154 = vector.extract_strided_slice %137 {offsets = [0, 0], sizes = [2, 48], strides = [1, 1]} : vector<2x64xf32> to vector<2x48xf32>
    %155 = arith.negf %154 : vector<2x48xf32>
    %156 = math.exp %155 : vector<2x48xf32>
    %cst_41 = arith.constant 1.000000e+00 : f32
    %157 = vector.broadcast %cst_41 : f32 to vector<2x48xf32>
    %158 = arith.addf %157, %156 : vector<2x48xf32>
    %159 = arith.divf %157, %158 : vector<2x48xf32>
    %160 = vector.extract_strided_slice %137 {offsets = [0, 48], sizes = [2, 16], strides = [1, 1]} : vector<2x64xf32> to vector<2x16xf32>
    %161 = math.tanh %160 : vector<2x16xf32>
    %162 = vector.extract_strided_slice %159 {offsets = [0, 16], sizes = [2, 16], strides = [1, 1]} : vector<2x48xf32> to vector<2x16xf32>
    %163 = arith.mulf %162, %110 : vector<2x16xf32>
    %164 = vector.extract_strided_slice %159 {offsets = [0, 0], sizes = [2, 16], strides = [1, 1]} : vector<2x48xf32> to vector<2x16xf32>
    %165 = arith.mulf %164, %161 : vector<2x16xf32>
    %166 = arith.addf %163, %165 : vector<2x16xf32>
    %167 = vector.extract_strided_slice %159 {offsets = [0, 32], sizes = [2, 16], strides = [1, 1]} : vector<2x48xf32> to vector<2x16xf32>
    %168 = math.tanh %166 : vector<2x16xf32>
    %169 = arith.mulf %167, %168 : vector<2x16xf32>
    %170 = arith.index_cast %c2_i32 : i32 to index
    %c0_42 = arith.constant 0 : index
    %c0_43 = arith.constant 0 : index
    %171 = vector.load %arg4[%170, %c0_42, %c0_43] : memref<8x2x32xf32, #tpu.memory_space<vmem>>, vector<1x2x16xf32>
    %172 = vector.shape_cast %171 : vector<1x2x16xf32> to vector<2x16xf32>
    %173 = vector.shape_cast %153 : vector<2x16xf32> to vector<1x2x16xf32>
    tpu.vector_store %arg4[%170, %c0_42, %c0_43], %173 {strides = array<i32>} : memref<8x2x32xf32, #tpu.memory_space<vmem>>, vector<1x2x16xf32>,
    %174 = arith.index_cast %125 : i32 to index
    %c0_44 = arith.constant 0 : index
    %c16_45 = arith.constant 16 : index
    %175 = vector.load %arg4[%174, %c0_44, %c16_45] : memref<8x2x32xf32, #tpu.memory_space<vmem>>, vector<1x2x16xf32>
    %176 = vector.shape_cast %175 : vector<1x2x16xf32> to vector<2x16xf32>
    %177 = vector.shape_cast %169 : vector<2x16xf32> to vector<1x2x16xf32>
    tpu.vector_store %arg4[%174, %c0_44, %c16_45], %177 {strides = array<i32>} : memref<8x2x32xf32, #tpu.memory_space<vmem>>, vector<1x2x16xf32>,
    %178 = tpu.concatenate %153, %169 in 1 : vector<2x16xf32>, vector<2x16xf32> -> vector<2x32xf32>
    %c3_i32 = arith.constant 3 : i32
    %179 = arith.truncf %178 : vector<2x32xf32> to vector<2x32xbf16>
    %cst_46 = arith.constant dense<0.000000e+00> : vector<2x128xf32>
    %180 = tpu.matmul %179, %8, %cst_46 {dimension_numbers = #tpu.dot_dimension_numbers<[1], [0], [0], [1], [0, 0, 1, 1], [], []>} : vector<2x32xbf16>, vector<32x128xbf16>, vector<2x128xf32> -> vector<2x128xf32>
    %c7_i32_47 = arith.constant 7 : i32
    %181 = arith.subi %c7_i32_47, %c3_i32 : i32
    %182 = arith.index_cast %c3_i32 : i32 to index
    %c0_48 = arith.constant 0 : index
    %c0_49 = arith.constant 0 : index
    %183 = vector.load %arg5[%182, %c0_48, %c0_49] : memref<8x2x128xf32, #tpu.memory_space<vmem>>, vector<1x2x128xf32>
    %184 = vector.shape_cast %183 : vector<1x2x128xf32> to vector<2x128xf32>
    %185 = vector.extract_strided_slice %184 {offsets = [0, 0], sizes = [2, 64], strides = [1, 1]} : vector<2x128xf32> to vector<2x64xf32>
    %186 = vector.extract_strided_slice %180 {offsets = [0, 0], sizes = [2, 64], strides = [1, 1]} : vector<2x128xf32> to vector<2x64xf32>
    %187 = arith.addf %185, %186 : vector<2x64xf32>
    %188 = arith.index_cast %181 : i32 to index
    %c0_50 = arith.constant 0 : index
    %c0_51 = arith.constant 0 : index
    %189 = vector.load %arg5[%188, %c0_50, %c0_51] : memref<8x2x128xf32, #tpu.memory_space<vmem>>, vector<1x2x128xf32>
    %190 = vector.shape_cast %189 : vector<1x2x128xf32> to vector<2x128xf32>
    %191 = vector.extract_strided_slice %190 {offsets = [0, 64], sizes = [2, 64], strides = [1, 1]} : vector<2x128xf32> to vector<2x64xf32>
    %192 = vector.extract_strided_slice %180 {offsets = [0, 64], sizes = [2, 64], strides = [1, 1]} : vector<2x128xf32> to vector<2x64xf32>
    %193 = arith.addf %191, %192 : vector<2x64xf32>
    %194 = vector.extract_strided_slice %187 {offsets = [0, 0], sizes = [2, 48], strides = [1, 1]} : vector<2x64xf32> to vector<2x48xf32>
    %195 = arith.negf %194 : vector<2x48xf32>
    %196 = math.exp %195 : vector<2x48xf32>
    %cst_52 = arith.constant 1.000000e+00 : f32
    %197 = vector.broadcast %cst_52 : f32 to vector<2x48xf32>
    %198 = arith.addf %197, %196 : vector<2x48xf32>
    %199 = arith.divf %197, %198 : vector<2x48xf32>
    %200 = vector.extract_strided_slice %187 {offsets = [0, 48], sizes = [2, 16], strides = [1, 1]} : vector<2x64xf32> to vector<2x16xf32>
    %201 = math.tanh %200 : vector<2x16xf32>
    %202 = vector.extract_strided_slice %199 {offsets = [0, 16], sizes = [2, 16], strides = [1, 1]} : vector<2x48xf32> to vector<2x16xf32>
    %203 = arith.mulf %202, %150 : vector<2x16xf32>
    %204 = vector.extract_strided_slice %199 {offsets = [0, 0], sizes = [2, 16], strides = [1, 1]} : vector<2x48xf32> to vector<2x16xf32>
    %205 = arith.mulf %204, %201 : vector<2x16xf32>
    %206 = arith.addf %203, %205 : vector<2x16xf32>
    %207 = vector.extract_strided_slice %199 {offsets = [0, 32], sizes = [2, 16], strides = [1, 1]} : vector<2x48xf32> to vector<2x16xf32>
    %208 = math.tanh %206 : vector<2x16xf32>
    %209 = arith.mulf %207, %208 : vector<2x16xf32>
    %210 = vector.extract_strided_slice %193 {offsets = [0, 0], sizes = [2, 48], strides = [1, 1]} : vector<2x64xf32> to vector<2x48xf32>
    %211 = arith.negf %210 : vector<2x48xf32>
    %212 = math.exp %211 : vector<2x48xf32>
    %cst_53 = arith.constant 1.000000e+00 : f32
    %213 = vector.broadcast %cst_53 : f32 to vector<2x48xf32>
    %214 = arith.addf %213, %212 : vector<2x48xf32>
    %215 = arith.divf %213, %214 : vector<2x48xf32>
    %216 = vector.extract_strided_slice %193 {offsets = [0, 48], sizes = [2, 16], strides = [1, 1]} : vector<2x64xf32> to vector<2x16xf32>
    %217 = math.tanh %216 : vector<2x16xf32>
    %218 = vector.extract_strided_slice %215 {offsets = [0, 16], sizes = [2, 16], strides = [1, 1]} : vector<2x48xf32> to vector<2x16xf32>
    %219 = arith.mulf %218, %166 : vector<2x16xf32>
    %220 = vector.extract_strided_slice %215 {offsets = [0, 0], sizes = [2, 16], strides = [1, 1]} : vector<2x48xf32> to vector<2x16xf32>
    %221 = arith.mulf %220, %217 : vector<2x16xf32>
    %222 = arith.addf %219, %221 : vector<2x16xf32>
    %223 = vector.extract_strided_slice %215 {offsets = [0, 32], sizes = [2, 16], strides = [1, 1]} : vector<2x48xf32> to vector<2x16xf32>
    %224 = math.tanh %222 : vector<2x16xf32>
    %225 = arith.mulf %223, %224 : vector<2x16xf32>
    %226 = arith.index_cast %c3_i32 : i32 to index
    %c0_54 = arith.constant 0 : index
    %c0_55 = arith.constant 0 : index
    %227 = vector.load %arg4[%226, %c0_54, %c0_55] : memref<8x2x32xf32, #tpu.memory_space<vmem>>, vector<1x2x16xf32>
    %228 = vector.shape_cast %227 : vector<1x2x16xf32> to vector<2x16xf32>
    %229 = vector.shape_cast %209 : vector<2x16xf32> to vector<1x2x16xf32>
    tpu.vector_store %arg4[%226, %c0_54, %c0_55], %229 {strides = array<i32>} : memref<8x2x32xf32, #tpu.memory_space<vmem>>, vector<1x2x16xf32>,
    %230 = arith.index_cast %181 : i32 to index
    %c0_56 = arith.constant 0 : index
    %c16_57 = arith.constant 16 : index
    %231 = vector.load %arg4[%230, %c0_56, %c16_57] : memref<8x2x32xf32, #tpu.memory_space<vmem>>, vector<1x2x16xf32>
    %232 = vector.shape_cast %231 : vector<1x2x16xf32> to vector<2x16xf32>
    %233 = vector.shape_cast %225 : vector<2x16xf32> to vector<1x2x16xf32>
    tpu.vector_store %arg4[%230, %c0_56, %c16_57], %233 {strides = array<i32>} : memref<8x2x32xf32, #tpu.memory_space<vmem>>, vector<1x2x16xf32>,
    %234 = tpu.concatenate %209, %225 in 1 : vector<2x16xf32>, vector<2x16xf32> -> vector<2x32xf32>
    %c4_i32 = arith.constant 4 : i32
    %235 = arith.truncf %234 : vector<2x32xf32> to vector<2x32xbf16>
    %cst_58 = arith.constant dense<0.000000e+00> : vector<2x128xf32>
    %236 = tpu.matmul %235, %8, %cst_58 {dimension_numbers = #tpu.dot_dimension_numbers<[1], [0], [0], [1], [0, 0, 1, 1], [], []>} : vector<2x32xbf16>, vector<32x128xbf16>, vector<2x128xf32> -> vector<2x128xf32>
    %c7_i32_59 = arith.constant 7 : i32
    %237 = arith.subi %c7_i32_59, %c4_i32 : i32
    %238 = arith.index_cast %c4_i32 : i32 to index
    %c0_60 = arith.constant 0 : index
    %c0_61 = arith.constant 0 : index
    %239 = vector.load %arg5[%238, %c0_60, %c0_61] : memref<8x2x128xf32, #tpu.memory_space<vmem>>, vector<1x2x128xf32>
    %240 = vector.shape_cast %239 : vector<1x2x128xf32> to vector<2x128xf32>
    %241 = vector.extract_strided_slice %240 {offsets = [0, 0], sizes = [2, 64], strides = [1, 1]} : vector<2x128xf32> to vector<2x64xf32>
    %242 = vector.extract_strided_slice %236 {offsets = [0, 0], sizes = [2, 64], strides = [1, 1]} : vector<2x128xf32> to vector<2x64xf32>
    %243 = arith.addf %241, %242 : vector<2x64xf32>
    %244 = arith.index_cast %237 : i32 to index
    %c0_62 = arith.constant 0 : index
    %c0_63 = arith.constant 0 : index
    %245 = vector.load %arg5[%244, %c0_62, %c0_63] : memref<8x2x128xf32, #tpu.memory_space<vmem>>, vector<1x2x128xf32>
    %246 = vector.shape_cast %245 : vector<1x2x128xf32> to vector<2x128xf32>
    %247 = vector.extract_strided_slice %246 {offsets = [0, 64], sizes = [2, 64], strides = [1, 1]} : vector<2x128xf32> to vector<2x64xf32>
    %248 = vector.extract_strided_slice %236 {offsets = [0, 64], sizes = [2, 64], strides = [1, 1]} : vector<2x128xf32> to vector<2x64xf32>
    %249 = arith.addf %247, %248 : vector<2x64xf32>
    %250 = vector.extract_strided_slice %243 {offsets = [0, 0], sizes = [2, 48], strides = [1, 1]} : vector<2x64xf32> to vector<2x48xf32>
    %251 = arith.negf %250 : vector<2x48xf32>
    %252 = math.exp %251 : vector<2x48xf32>
    %cst_64 = arith.constant 1.000000e+00 : f32
    %253 = vector.broadcast %cst_64 : f32 to vector<2x48xf32>
    %254 = arith.addf %253, %252 : vector<2x48xf32>
    %255 = arith.divf %253, %254 : vector<2x48xf32>
    %256 = vector.extract_strided_slice %243 {offsets = [0, 48], sizes = [2, 16], strides = [1, 1]} : vector<2x64xf32> to vector<2x16xf32>
    %257 = math.tanh %256 : vector<2x16xf32>
    %258 = vector.extract_strided_slice %255 {offsets = [0, 16], sizes = [2, 16], strides = [1, 1]} : vector<2x48xf32> to vector<2x16xf32>
    %259 = arith.mulf %258, %206 : vector<2x16xf32>
    %260 = vector.extract_strided_slice %255 {offsets = [0, 0], sizes = [2, 16], strides = [1, 1]} : vector<2x48xf32> to vector<2x16xf32>
    %261 = arith.mulf %260, %257 : vector<2x16xf32>
    %262 = arith.addf %259, %261 : vector<2x16xf32>
    %263 = vector.extract_strided_slice %255 {offsets = [0, 32], sizes = [2, 16], strides = [1, 1]} : vector<2x48xf32> to vector<2x16xf32>
    %264 = math.tanh %262 : vector<2x16xf32>
    %265 = arith.mulf %263, %264 : vector<2x16xf32>
    %266 = vector.extract_strided_slice %249 {offsets = [0, 0], sizes = [2, 48], strides = [1, 1]} : vector<2x64xf32> to vector<2x48xf32>
    %267 = arith.negf %266 : vector<2x48xf32>
    %268 = math.exp %267 : vector<2x48xf32>
    %cst_65 = arith.constant 1.000000e+00 : f32
    %269 = vector.broadcast %cst_65 : f32 to vector<2x48xf32>
    %270 = arith.addf %269, %268 : vector<2x48xf32>
    %271 = arith.divf %269, %270 : vector<2x48xf32>
    %272 = vector.extract_strided_slice %249 {offsets = [0, 48], sizes = [2, 16], strides = [1, 1]} : vector<2x64xf32> to vector<2x16xf32>
    %273 = math.tanh %272 : vector<2x16xf32>
    %274 = vector.extract_strided_slice %271 {offsets = [0, 16], sizes = [2, 16], strides = [1, 1]} : vector<2x48xf32> to vector<2x16xf32>
    %275 = arith.mulf %274, %222 : vector<2x16xf32>
    %276 = vector.extract_strided_slice %271 {offsets = [0, 0], sizes = [2, 16], strides = [1, 1]} : vector<2x48xf32> to vector<2x16xf32>
    %277 = arith.mulf %276, %273 : vector<2x16xf32>
    %278 = arith.addf %275, %277 : vector<2x16xf32>
    %279 = vector.extract_strided_slice %271 {offsets = [0, 32], sizes = [2, 16], strides = [1, 1]} : vector<2x48xf32> to vector<2x16xf32>
    %280 = math.tanh %278 : vector<2x16xf32>
    %281 = arith.mulf %279, %280 : vector<2x16xf32>
    %282 = arith.index_cast %c4_i32 : i32 to index
    %c0_66 = arith.constant 0 : index
    %c0_67 = arith.constant 0 : index
    %283 = vector.load %arg4[%282, %c0_66, %c0_67] : memref<8x2x32xf32, #tpu.memory_space<vmem>>, vector<1x2x16xf32>
    %284 = vector.shape_cast %283 : vector<1x2x16xf32> to vector<2x16xf32>
    %285 = vector.shape_cast %265 : vector<2x16xf32> to vector<1x2x16xf32>
    tpu.vector_store %arg4[%282, %c0_66, %c0_67], %285 {strides = array<i32>} : memref<8x2x32xf32, #tpu.memory_space<vmem>>, vector<1x2x16xf32>,
    %286 = arith.index_cast %237 : i32 to index
    %c0_68 = arith.constant 0 : index
    %c16_69 = arith.constant 16 : index
    %287 = vector.load %arg4[%286, %c0_68, %c16_69] : memref<8x2x32xf32, #tpu.memory_space<vmem>>, vector<1x2x16xf32>
    %288 = vector.shape_cast %287 : vector<1x2x16xf32> to vector<2x16xf32>
    %289 = vector.shape_cast %281 : vector<2x16xf32> to vector<1x2x16xf32>
    tpu.vector_store %arg4[%286, %c0_68, %c16_69], %289 {strides = array<i32>} : memref<8x2x32xf32, #tpu.memory_space<vmem>>, vector<1x2x16xf32>,
    %290 = tpu.concatenate %265, %281 in 1 : vector<2x16xf32>, vector<2x16xf32> -> vector<2x32xf32>
    %c5_i32 = arith.constant 5 : i32
    %291 = arith.truncf %290 : vector<2x32xf32> to vector<2x32xbf16>
    %cst_70 = arith.constant dense<0.000000e+00> : vector<2x128xf32>
    %292 = tpu.matmul %291, %8, %cst_70 {dimension_numbers = #tpu.dot_dimension_numbers<[1], [0], [0], [1], [0, 0, 1, 1], [], []>} : vector<2x32xbf16>, vector<32x128xbf16>, vector<2x128xf32> -> vector<2x128xf32>
    %c7_i32_71 = arith.constant 7 : i32
    %293 = arith.subi %c7_i32_71, %c5_i32 : i32
    %294 = arith.index_cast %c5_i32 : i32 to index
    %c0_72 = arith.constant 0 : index
    %c0_73 = arith.constant 0 : index
    %295 = vector.load %arg5[%294, %c0_72, %c0_73] : memref<8x2x128xf32, #tpu.memory_space<vmem>>, vector<1x2x128xf32>
    %296 = vector.shape_cast %295 : vector<1x2x128xf32> to vector<2x128xf32>
    %297 = vector.extract_strided_slice %296 {offsets = [0, 0], sizes = [2, 64], strides = [1, 1]} : vector<2x128xf32> to vector<2x64xf32>
    %298 = vector.extract_strided_slice %292 {offsets = [0, 0], sizes = [2, 64], strides = [1, 1]} : vector<2x128xf32> to vector<2x64xf32>
    %299 = arith.addf %297, %298 : vector<2x64xf32>
    %300 = arith.index_cast %293 : i32 to index
    %c0_74 = arith.constant 0 : index
    %c0_75 = arith.constant 0 : index
    %301 = vector.load %arg5[%300, %c0_74, %c0_75] : memref<8x2x128xf32, #tpu.memory_space<vmem>>, vector<1x2x128xf32>
    %302 = vector.shape_cast %301 : vector<1x2x128xf32> to vector<2x128xf32>
    %303 = vector.extract_strided_slice %302 {offsets = [0, 64], sizes = [2, 64], strides = [1, 1]} : vector<2x128xf32> to vector<2x64xf32>
    %304 = vector.extract_strided_slice %292 {offsets = [0, 64], sizes = [2, 64], strides = [1, 1]} : vector<2x128xf32> to vector<2x64xf32>
    %305 = arith.addf %303, %304 : vector<2x64xf32>
    %306 = vector.extract_strided_slice %299 {offsets = [0, 0], sizes = [2, 48], strides = [1, 1]} : vector<2x64xf32> to vector<2x48xf32>
    %307 = arith.negf %306 : vector<2x48xf32>
    %308 = math.exp %307 : vector<2x48xf32>
    %cst_76 = arith.constant 1.000000e+00 : f32
    %309 = vector.broadcast %cst_76 : f32 to vector<2x48xf32>
    %310 = arith.addf %309, %308 : vector<2x48xf32>
    %311 = arith.divf %309, %310 : vector<2x48xf32>
    %312 = vector.extract_strided_slice %299 {offsets = [0, 48], sizes = [2, 16], strides = [1, 1]} : vector<2x64xf32> to vector<2x16xf32>
    %313 = math.tanh %312 : vector<2x16xf32>
    %314 = vector.extract_strided_slice %311 {offsets = [0, 16], sizes = [2, 16], strides = [1, 1]} : vector<2x48xf32> to vector<2x16xf32>
    %315 = arith.mulf %314, %262 : vector<2x16xf32>
    %316 = vector.extract_strided_slice %311 {offsets = [0, 0], sizes = [2, 16], strides = [1, 1]} : vector<2x48xf32> to vector<2x16xf32>
    %317 = arith.mulf %316, %313 : vector<2x16xf32>
    %318 = arith.addf %315, %317 : vector<2x16xf32>
    %319 = vector.extract_strided_slice %311 {offsets = [0, 32], sizes = [2, 16], strides = [1, 1]} : vector<2x48xf32> to vector<2x16xf32>
    %320 = math.tanh %318 : vector<2x16xf32>
    %321 = arith.mulf %319, %320 : vector<2x16xf32>
    %322 = vector.extract_strided_slice %305 {offsets = [0, 0], sizes = [2, 48], strides = [1, 1]} : vector<2x64xf32> to vector<2x48xf32>
    %323 = arith.negf %322 : vector<2x48xf32>
    %324 = math.exp %323 : vector<2x48xf32>
    %cst_77 = arith.constant 1.000000e+00 : f32
    %325 = vector.broadcast %cst_77 : f32 to vector<2x48xf32>
    %326 = arith.addf %325, %324 : vector<2x48xf32>
    %327 = arith.divf %325, %326 : vector<2x48xf32>
    %328 = vector.extract_strided_slice %305 {offsets = [0, 48], sizes = [2, 16], strides = [1, 1]} : vector<2x64xf32> to vector<2x16xf32>
    %329 = math.tanh %328 : vector<2x16xf32>
    %330 = vector.extract_strided_slice %327 {offsets = [0, 16], sizes = [2, 16], strides = [1, 1]} : vector<2x48xf32> to vector<2x16xf32>
    %331 = arith.mulf %330, %278 : vector<2x16xf32>
    %332 = vector.extract_strided_slice %327 {offsets = [0, 0], sizes = [2, 16], strides = [1, 1]} : vector<2x48xf32> to vector<2x16xf32>
    %333 = arith.mulf %332, %329 : vector<2x16xf32>
    %334 = arith.addf %331, %333 : vector<2x16xf32>
    %335 = vector.extract_strided_slice %327 {offsets = [0, 32], sizes = [2, 16], strides = [1, 1]} : vector<2x48xf32> to vector<2x16xf32>
    %336 = math.tanh %334 : vector<2x16xf32>
    %337 = arith.mulf %335, %336 : vector<2x16xf32>
    %338 = arith.index_cast %c5_i32 : i32 to index
    %c0_78 = arith.constant 0 : index
    %c0_79 = arith.constant 0 : index
    %339 = vector.load %arg4[%338, %c0_78, %c0_79] : memref<8x2x32xf32, #tpu.memory_space<vmem>>, vector<1x2x16xf32>
    %340 = vector.shape_cast %339 : vector<1x2x16xf32> to vector<2x16xf32>
    %341 = vector.shape_cast %321 : vector<2x16xf32> to vector<1x2x16xf32>
    tpu.vector_store %arg4[%338, %c0_78, %c0_79], %341 {strides = array<i32>} : memref<8x2x32xf32, #tpu.memory_space<vmem>>, vector<1x2x16xf32>,
    %342 = arith.index_cast %293 : i32 to index
    %c0_80 = arith.constant 0 : index
    %c16_81 = arith.constant 16 : index
    %343 = vector.load %arg4[%342, %c0_80, %c16_81] : memref<8x2x32xf32, #tpu.memory_space<vmem>>, vector<1x2x16xf32>
    %344 = vector.shape_cast %343 : vector<1x2x16xf32> to vector<2x16xf32>
    %345 = vector.shape_cast %337 : vector<2x16xf32> to vector<1x2x16xf32>
    tpu.vector_store %arg4[%342, %c0_80, %c16_81], %345 {strides = array<i32>} : memref<8x2x32xf32, #tpu.memory_space<vmem>>, vector<1x2x16xf32>,
    %346 = tpu.concatenate %321, %337 in 1 : vector<2x16xf32>, vector<2x16xf32> -> vector<2x32xf32>
    %c6_i32 = arith.constant 6 : i32
    %347 = arith.truncf %346 : vector<2x32xf32> to vector<2x32xbf16>
    %cst_82 = arith.constant dense<0.000000e+00> : vector<2x128xf32>
    %348 = tpu.matmul %347, %8, %cst_82 {dimension_numbers = #tpu.dot_dimension_numbers<[1], [0], [0], [1], [0, 0, 1, 1], [], []>} : vector<2x32xbf16>, vector<32x128xbf16>, vector<2x128xf32> -> vector<2x128xf32>
    %c7_i32_83 = arith.constant 7 : i32
    %349 = arith.subi %c7_i32_83, %c6_i32 : i32
    %350 = arith.index_cast %c6_i32 : i32 to index
    %c0_84 = arith.constant 0 : index
    %c0_85 = arith.constant 0 : index
    %351 = vector.load %arg5[%350, %c0_84, %c0_85] : memref<8x2x128xf32, #tpu.memory_space<vmem>>, vector<1x2x128xf32>
    %352 = vector.shape_cast %351 : vector<1x2x128xf32> to vector<2x128xf32>
    %353 = vector.extract_strided_slice %352 {offsets = [0, 0], sizes = [2, 64], strides = [1, 1]} : vector<2x128xf32> to vector<2x64xf32>
    %354 = vector.extract_strided_slice %348 {offsets = [0, 0], sizes = [2, 64], strides = [1, 1]} : vector<2x128xf32> to vector<2x64xf32>
    %355 = arith.addf %353, %354 : vector<2x64xf32>
    %356 = arith.index_cast %349 : i32 to index
    %c0_86 = arith.constant 0 : index
    %c0_87 = arith.constant 0 : index
    %357 = vector.load %arg5[%356, %c0_86, %c0_87] : memref<8x2x128xf32, #tpu.memory_space<vmem>>, vector<1x2x128xf32>
    %358 = vector.shape_cast %357 : vector<1x2x128xf32> to vector<2x128xf32>
    %359 = vector.extract_strided_slice %358 {offsets = [0, 64], sizes = [2, 64], strides = [1, 1]} : vector<2x128xf32> to vector<2x64xf32>
    %360 = vector.extract_strided_slice %348 {offsets = [0, 64], sizes = [2, 64], strides = [1, 1]} : vector<2x128xf32> to vector<2x64xf32>
    %361 = arith.addf %359, %360 : vector<2x64xf32>
    %362 = vector.extract_strided_slice %355 {offsets = [0, 0], sizes = [2, 48], strides = [1, 1]} : vector<2x64xf32> to vector<2x48xf32>
    %363 = arith.negf %362 : vector<2x48xf32>
    %364 = math.exp %363 : vector<2x48xf32>
    %cst_88 = arith.constant 1.000000e+00 : f32
    %365 = vector.broadcast %cst_88 : f32 to vector<2x48xf32>
    %366 = arith.addf %365, %364 : vector<2x48xf32>
    %367 = arith.divf %365, %366 : vector<2x48xf32>
    %368 = vector.extract_strided_slice %355 {offsets = [0, 48], sizes = [2, 16], strides = [1, 1]} : vector<2x64xf32> to vector<2x16xf32>
    %369 = math.tanh %368 : vector<2x16xf32>
    %370 = vector.extract_strided_slice %367 {offsets = [0, 16], sizes = [2, 16], strides = [1, 1]} : vector<2x48xf32> to vector<2x16xf32>
    %371 = arith.mulf %370, %318 : vector<2x16xf32>
    %372 = vector.extract_strided_slice %367 {offsets = [0, 0], sizes = [2, 16], strides = [1, 1]} : vector<2x48xf32> to vector<2x16xf32>
    %373 = arith.mulf %372, %369 : vector<2x16xf32>
    %374 = arith.addf %371, %373 : vector<2x16xf32>
    %375 = vector.extract_strided_slice %367 {offsets = [0, 32], sizes = [2, 16], strides = [1, 1]} : vector<2x48xf32> to vector<2x16xf32>
    %376 = math.tanh %374 : vector<2x16xf32>
    %377 = arith.mulf %375, %376 : vector<2x16xf32>
    %378 = vector.extract_strided_slice %361 {offsets = [0, 0], sizes = [2, 48], strides = [1, 1]} : vector<2x64xf32> to vector<2x48xf32>
    %379 = arith.negf %378 : vector<2x48xf32>
    %380 = math.exp %379 : vector<2x48xf32>
    %cst_89 = arith.constant 1.000000e+00 : f32
    %381 = vector.broadcast %cst_89 : f32 to vector<2x48xf32>
    %382 = arith.addf %381, %380 : vector<2x48xf32>
    %383 = arith.divf %381, %382 : vector<2x48xf32>
    %384 = vector.extract_strided_slice %361 {offsets = [0, 48], sizes = [2, 16], strides = [1, 1]} : vector<2x64xf32> to vector<2x16xf32>
    %385 = math.tanh %384 : vector<2x16xf32>
    %386 = vector.extract_strided_slice %383 {offsets = [0, 16], sizes = [2, 16], strides = [1, 1]} : vector<2x48xf32> to vector<2x16xf32>
    %387 = arith.mulf %386, %334 : vector<2x16xf32>
    %388 = vector.extract_strided_slice %383 {offsets = [0, 0], sizes = [2, 16], strides = [1, 1]} : vector<2x48xf32> to vector<2x16xf32>
    %389 = arith.mulf %388, %385 : vector<2x16xf32>
    %390 = arith.addf %387, %389 : vector<2x16xf32>
    %391 = vector.extract_strided_slice %383 {offsets = [0, 32], sizes = [2, 16], strides = [1, 1]} : vector<2x48xf32> to vector<2x16xf32>
    %392 = math.tanh %390 : vector<2x16xf32>
    %393 = arith.mulf %391, %392 : vector<2x16xf32>
    %394 = arith.index_cast %c6_i32 : i32 to index
    %c0_90 = arith.constant 0 : index
    %c0_91 = arith.constant 0 : index
    %395 = vector.load %arg4[%394, %c0_90, %c0_91] : memref<8x2x32xf32, #tpu.memory_space<vmem>>, vector<1x2x16xf32>
    %396 = vector.shape_cast %395 : vector<1x2x16xf32> to vector<2x16xf32>
    %397 = vector.shape_cast %377 : vector<2x16xf32> to vector<1x2x16xf32>
    tpu.vector_store %arg4[%394, %c0_90, %c0_91], %397 {strides = array<i32>} : memref<8x2x32xf32, #tpu.memory_space<vmem>>, vector<1x2x16xf32>,
    %398 = arith.index_cast %349 : i32 to index
    %c0_92 = arith.constant 0 : index
    %c16_93 = arith.constant 16 : index
    %399 = vector.load %arg4[%398, %c0_92, %c16_93] : memref<8x2x32xf32, #tpu.memory_space<vmem>>, vector<1x2x16xf32>
    %400 = vector.shape_cast %399 : vector<1x2x16xf32> to vector<2x16xf32>
    %401 = vector.shape_cast %393 : vector<2x16xf32> to vector<1x2x16xf32>
    tpu.vector_store %arg4[%398, %c0_92, %c16_93], %401 {strides = array<i32>} : memref<8x2x32xf32, #tpu.memory_space<vmem>>, vector<1x2x16xf32>,
    %402 = tpu.concatenate %377, %393 in 1 : vector<2x16xf32>, vector<2x16xf32> -> vector<2x32xf32>
    %c7_i32_94 = arith.constant 7 : i32
    %403 = arith.truncf %402 : vector<2x32xf32> to vector<2x32xbf16>
    %cst_95 = arith.constant dense<0.000000e+00> : vector<2x128xf32>
    %404 = tpu.matmul %403, %8, %cst_95 {dimension_numbers = #tpu.dot_dimension_numbers<[1], [0], [0], [1], [0, 0, 1, 1], [], []>} : vector<2x32xbf16>, vector<32x128xbf16>, vector<2x128xf32> -> vector<2x128xf32>
    %c7_i32_96 = arith.constant 7 : i32
    %405 = arith.subi %c7_i32_96, %c7_i32_94 : i32
    %406 = arith.index_cast %c7_i32_94 : i32 to index
    %c0_97 = arith.constant 0 : index
    %c0_98 = arith.constant 0 : index
    %407 = vector.load %arg5[%406, %c0_97, %c0_98] : memref<8x2x128xf32, #tpu.memory_space<vmem>>, vector<1x2x128xf32>
    %408 = vector.shape_cast %407 : vector<1x2x128xf32> to vector<2x128xf32>
    %409 = vector.extract_strided_slice %408 {offsets = [0, 0], sizes = [2, 64], strides = [1, 1]} : vector<2x128xf32> to vector<2x64xf32>
    %410 = vector.extract_strided_slice %404 {offsets = [0, 0], sizes = [2, 64], strides = [1, 1]} : vector<2x128xf32> to vector<2x64xf32>
    %411 = arith.addf %409, %410 : vector<2x64xf32>
    %412 = arith.index_cast %405 : i32 to index
    %c0_99 = arith.constant 0 : index
    %c0_100 = arith.constant 0 : index
    %413 = vector.load %arg5[%412, %c0_99, %c0_100] : memref<8x2x128xf32, #tpu.memory_space<vmem>>, vector<1x2x128xf32>
    %414 = vector.shape_cast %413 : vector<1x2x128xf32> to vector<2x128xf32>
    %415 = vector.extract_strided_slice %414 {offsets = [0, 64], sizes = [2, 64], strides = [1, 1]} : vector<2x128xf32> to vector<2x64xf32>
    %416 = vector.extract_strided_slice %404 {offsets = [0, 64], sizes = [2, 64], strides = [1, 1]} : vector<2x128xf32> to vector<2x64xf32>
    %417 = arith.addf %415, %416 : vector<2x64xf32>
    %418 = vector.extract_strided_slice %411 {offsets = [0, 0], sizes = [2, 48], strides = [1, 1]} : vector<2x64xf32> to vector<2x48xf32>
    %419 = arith.negf %418 : vector<2x48xf32>
    %420 = math.exp %419 : vector<2x48xf32>
    %cst_101 = arith.constant 1.000000e+00 : f32
    %421 = vector.broadcast %cst_101 : f32 to vector<2x48xf32>
    %422 = arith.addf %421, %420 : vector<2x48xf32>
    %423 = arith.divf %421, %422 : vector<2x48xf32>
    %424 = vector.extract_strided_slice %411 {offsets = [0, 48], sizes = [2, 16], strides = [1, 1]} : vector<2x64xf32> to vector<2x16xf32>
    %425 = math.tanh %424 : vector<2x16xf32>
    %426 = vector.extract_strided_slice %423 {offsets = [0, 16], sizes = [2, 16], strides = [1, 1]} : vector<2x48xf32> to vector<2x16xf32>
    %427 = arith.mulf %426, %374 : vector<2x16xf32>
    %428 = vector.extract_strided_slice %423 {offsets = [0, 0], sizes = [2, 16], strides = [1, 1]} : vector<2x48xf32> to vector<2x16xf32>
    %429 = arith.mulf %428, %425 : vector<2x16xf32>
    %430 = arith.addf %427, %429 : vector<2x16xf32>
    %431 = vector.extract_strided_slice %423 {offsets = [0, 32], sizes = [2, 16], strides = [1, 1]} : vector<2x48xf32> to vector<2x16xf32>
    %432 = math.tanh %430 : vector<2x16xf32>
    %433 = arith.mulf %431, %432 : vector<2x16xf32>
    %434 = vector.extract_strided_slice %417 {offsets = [0, 0], sizes = [2, 48], strides = [1, 1]} : vector<2x64xf32> to vector<2x48xf32>
    %435 = arith.negf %434 : vector<2x48xf32>
    %436 = math.exp %435 : vector<2x48xf32>
    %cst_102 = arith.constant 1.000000e+00 : f32
    %437 = vector.broadcast %cst_102 : f32 to vector<2x48xf32>
    %438 = arith.addf %437, %436 : vector<2x48xf32>
    %439 = arith.divf %437, %438 : vector<2x48xf32>
    %440 = vector.extract_strided_slice %417 {offsets = [0, 48], sizes = [2, 16], strides = [1, 1]} : vector<2x64xf32> to vector<2x16xf32>
    %441 = math.tanh %440 : vector<2x16xf32>
    %442 = vector.extract_strided_slice %439 {offsets = [0, 16], sizes = [2, 16], strides = [1, 1]} : vector<2x48xf32> to vector<2x16xf32>
    %443 = arith.mulf %442, %390 : vector<2x16xf32>
    %444 = vector.extract_strided_slice %439 {offsets = [0, 0], sizes = [2, 16], strides = [1, 1]} : vector<2x48xf32> to vector<2x16xf32>
    %445 = arith.mulf %444, %441 : vector<2x16xf32>
    %446 = arith.addf %443, %445 : vector<2x16xf32>
    %447 = vector.extract_strided_slice %439 {offsets = [0, 32], sizes = [2, 16], strides = [1, 1]} : vector<2x48xf32> to vector<2x16xf32>
    %448 = math.tanh %446 : vector<2x16xf32>
    %449 = arith.mulf %447, %448 : vector<2x16xf32>
    %450 = arith.index_cast %c7_i32_94 : i32 to index
    %c0_103 = arith.constant 0 : index
    %c0_104 = arith.constant 0 : index
    %451 = vector.load %arg4[%450, %c0_103, %c0_104] : memref<8x2x32xf32, #tpu.memory_space<vmem>>, vector<1x2x16xf32>
    %452 = vector.shape_cast %451 : vector<1x2x16xf32> to vector<2x16xf32>
    %453 = vector.shape_cast %433 : vector<2x16xf32> to vector<1x2x16xf32>
    tpu.vector_store %arg4[%450, %c0_103, %c0_104], %453 {strides = array<i32>} : memref<8x2x32xf32, #tpu.memory_space<vmem>>, vector<1x2x16xf32>,
    %454 = arith.index_cast %405 : i32 to index
    %c0_105 = arith.constant 0 : index
    %c16_106 = arith.constant 16 : index
    %455 = vector.load %arg4[%454, %c0_105, %c16_106] : memref<8x2x32xf32, #tpu.memory_space<vmem>>, vector<1x2x16xf32>
    %456 = vector.shape_cast %455 : vector<1x2x16xf32> to vector<2x16xf32>
    %457 = vector.shape_cast %449 : vector<2x16xf32> to vector<1x2x16xf32>
    tpu.vector_store %arg4[%454, %c0_105, %c16_106], %457 {strides = array<i32>} : memref<8x2x32xf32, #tpu.memory_space<vmem>>, vector<1x2x16xf32>,
    %458 = tpu.concatenate %433, %449 in 1 : vector<2x16xf32>, vector<2x16xf32> -> vector<2x32xf32>
    %c8_i32 = arith.constant 8 : i32
    return
  }
}

module attributes {stable_mosaic.version = 11 : i64} {
  func.func @attn_cls_kernel(%arg0: i32, %arg1: memref<2x8x32xbf16, #tpu.memory_space<vmem>>, %arg2: memref<2x8x32xbf16, #tpu.memory_space<vmem>>, %arg3: memref<2x8xf32, #tpu.memory_space<vmem>>, %arg4: memref<32x32xbf16, #tpu.memory_space<vmem>>, %arg5: memref<1x32xf32, #tpu.memory_space<vmem>>, %arg6: memref<32x32xbf16, #tpu.memory_space<vmem>>, %arg7: memref<1x32xf32, #tpu.memory_space<vmem>>, %arg8: memref<32x7xbf16, #tpu.memory_space<vmem>>, %arg9: memref<1x7xf32, #tpu.memory_space<vmem>>, %arg10: memref<2x8x7xf32, #tpu.memory_space<vmem>>, %arg11: memref<2x8x8xf32, #tpu.memory_space<vmem>>) attributes {dimension_semantics = [#tpu.dimension_semantics<parallel>], iteration_bounds = array<i64: 1>, scalar_prefetch = 0 : i64, scratch_operands = 0 : i64, tpu.core_type = #tpu.core_type<tc>, window_params = [{pipeline_mode = #tpu.pipeline_mode<synchronous>, transform_indices = @transform_0, window_bounds = array<i64: 2, 8, 32>}, {transform_indices = @transform_1, window_bounds = array<i64: 2, 8, 32>}, {pipeline_mode = #tpu.pipeline_mode<synchronous>, transform_indices = @transform_2, window_bounds = array<i64: 2, 8>}, {pipeline_mode = #tpu.pipeline_mode<synchronous>, transform_indices = @transform_3, window_bounds = array<i64: 32, 32>}, {pipeline_mode = #tpu.pipeline_mode<synchronous>, transform_indices = @transform_4, window_bounds = array<i64: 1, 32>}, {pipeline_mode = #tpu.pipeline_mode<synchronous>, transform_indices = @transform_5, window_bounds = array<i64: 32, 32>}, {pipeline_mode = #tpu.pipeline_mode<synchronous>, transform_indices = @transform_6, window_bounds = array<i64: 1, 32>}, {pipeline_mode = #tpu.pipeline_mode<synchronous>, transform_indices = @transform_7, window_bounds = array<i64: 32, 7>}, {pipeline_mode = #tpu.pipeline_mode<synchronous>, transform_indices = @transform_8, window_bounds = array<i64: 1, 7>}, {transform_indices = @transform_9, window_bounds = array<i64: 2, 8, 7>}, {transform_indices = @transform_10, window_bounds = array<i64: 2, 8, 8>}]} {
    %c0 = arith.constant 0 : index
    %c0_0 = arith.constant 0 : index
    %c0_1 = arith.constant 0 : index
    %0 = vector.load %arg1[%c0, %c0_0, %c0_1] : memref<2x8x32xbf16, #tpu.memory_space<vmem>>, vector<2x8x32xbf16>
    %c0_2 = arith.constant 0 : index
    %c0_3 = arith.constant 0 : index
    %c0_4 = arith.constant 0 : index
    %1 = vector.load %arg2[%c0_2, %c0_3, %c0_4] : memref<2x8x32xbf16, #tpu.memory_space<vmem>>, vector<2x8x32xbf16>
    %c0_5 = arith.constant 0 : index
    %c0_6 = arith.constant 0 : index
    %2 = vector.load %arg3[%c0_5, %c0_6] : memref<2x8xf32, #tpu.memory_space<vmem>>, vector<2x8xf32>
    %3 = vector.shape_cast %2 : vector<2x8xf32> to vector<2x1x8xf32>
    %4 = vector.shape_cast %1 : vector<2x8x32xbf16> to vector<16x32xbf16>
    %c0_7 = arith.constant 0 : index
    %c0_8 = arith.constant 0 : index
    %5 = vector.load %arg4[%c0_7, %c0_8] : memref<32x32xbf16, #tpu.memory_space<vmem>>, vector<32x32xbf16>
    %cst = arith.constant dense<0.000000e+00> : vector<16x32xf32>
    %6 = tpu.matmul %4, %5, %cst {dimension_numbers = #tpu.dot_dimension_numbers<[1], [0], [0], [1], [0, 0, 1, 1], [], []>} : vector<16x32xbf16>, vector<32x32xbf16>, vector<16x32xf32> -> vector<16x32xf32>
    %c0_9 = arith.constant 0 : index
    %c0_10 = arith.constant 0 : index
    %7 = vector.load %arg5[%c0_9, %c0_10] : memref<1x32xf32, #tpu.memory_space<vmem>>, vector<1x32xf32>
    %8 = vector.broadcast %7 : vector<1x32xf32> to vector<16x32xf32>
    %9 = arith.addf %6, %8 : vector<16x32xf32>
    %10 = vector.shape_cast %9 : vector<16x32xf32> to vector<2x8x32xf32>
    %11 = arith.truncf %10 : vector<2x8x32xf32> to vector<2x8x32xbf16>
    "tpu.trace_start"() <{level = 10 : i32, message = "bqd,bkd->bqk"}> : () -> ()
    %cst_11 = arith.constant dense<0.000000e+00> : vector<2x8x8xf32>
    %12 = tpu.matmul %11, %0, %cst_11 {dimension_numbers = #tpu.dot_dimension_numbers<[2], [2], [1], [1], [0, 0, 0, 1, 1, 1], [0], [0]>} : vector<2x8x32xbf16>, vector<2x8x32xbf16>, vector<2x8x8xf32> -> vector<2x8x8xf32>
    "tpu.trace_stop"() : () -> ()
    %13 = arith.mulf %3, %3 : vector<2x1x8xf32>
    %14 = vector.broadcast %13 : vector<2x1x8xf32> to vector<2x8x8xf32>
    %15 = arith.mulf %12, %14 : vector<2x8x8xf32>
    %16 = math.tanh %15 : vector<2x8x8xf32>
    %cst_12 = arith.constant 0.000000e+00 : f32
    %17 = vector.broadcast %cst_12 : f32 to vector<2x1x8xf32>
    %18 = arith.cmpf ogt, %3, %17 : vector<2x1x8xf32>
    %cst_13 = arith.constant -1.000000e+30 : f32
    %19 = vector.shape_cast %18 : vector<2x1x8xi1> to vector<2x1x8xi1>
    %20 = vector.broadcast %19 : vector<2x1x8xi1> to vector<2x8x8xi1>
    %21 = vector.broadcast %cst_13 : f32 to vector<2x8x8xf32>
    %22 = arith.select %20, %16, %21 : vector<2x8x8xi1>, vector<2x8x8xf32>
    %cst_14 = arith.constant dense<0xFF800000> : vector<2x8xf32>
    %23 = vector.multi_reduction <maximumf>, %22, %cst_14 [2] : vector<2x8x8xf32> to vector<2x8xf32>
    %24 = vector.shape_cast %23 : vector<2x8xf32> to vector<2x8x1xf32>
    %25 = vector.broadcast %24 : vector<2x8x1xf32> to vector<2x8x8xf32>
    %26 = arith.subf %22, %25 : vector<2x8x8xf32>
    %27 = math.exp %26 : vector<2x8x8xf32>
    %cst_15 = arith.constant dense<0.000000e+00> : vector<2x8xf32>
    %28 = vector.multi_reduction <add>, %27, %cst_15 [2] : vector<2x8x8xf32> to vector<2x8xf32>
    %29 = vector.shape_cast %28 : vector<2x8xf32> to vector<2x8x1xf32>
    %30 = vector.broadcast %29 : vector<2x8x1xf32> to vector<2x8x8xf32>
    %31 = arith.divf %27, %30 : vector<2x8x8xf32>
    %32 = arith.truncf %31 : vector<2x8x8xf32> to vector<2x8x8xbf16>
    "tpu.trace_start"() <{level = 10 : i32, message = "bqk,bkd->bqd"}> : () -> ()
    %cst_16 = arith.constant dense<0.000000e+00> : vector<2x8x32xf32>
    %33 = tpu.matmul %32, %0, %cst_16 {dimension_numbers = #tpu.dot_dimension_numbers<[2], [1], [1], [2], [0, 0, 0, 1, 1, 2], [0], [0]>} : vector<2x8x8xbf16>, vector<2x8x32xbf16>, vector<2x8x32xf32> -> vector<2x8x32xf32>
    "tpu.trace_stop"() : () -> ()
    %34 = vector.shape_cast %33 : vector<2x8x32xf32> to vector<16x32xf32>
    %35 = arith.truncf %34 : vector<16x32xf32> to vector<16x32xbf16>
    %c0_17 = arith.constant 0 : index
    %c0_18 = arith.constant 0 : index
    %36 = vector.load %arg6[%c0_17, %c0_18] : memref<32x32xbf16, #tpu.memory_space<vmem>>, vector<32x32xbf16>
    %cst_19 = arith.constant dense<0.000000e+00> : vector<16x32xf32>
    %37 = tpu.matmul %35, %36, %cst_19 {dimension_numbers = #tpu.dot_dimension_numbers<[1], [0], [0], [1], [0, 0, 1, 1], [], []>} : vector<16x32xbf16>, vector<32x32xbf16>, vector<16x32xf32> -> vector<16x32xf32>
    %c0_20 = arith.constant 0 : index
    %c0_21 = arith.constant 0 : index
    %38 = vector.load %arg7[%c0_20, %c0_21] : memref<1x32xf32, #tpu.memory_space<vmem>>, vector<1x32xf32>
    %39 = vector.broadcast %38 : vector<1x32xf32> to vector<16x32xf32>
    %40 = arith.addf %37, %39 : vector<16x32xf32>
    %cst_22 = arith.constant 0.000000e+00 : f32
    %41 = vector.broadcast %cst_22 : f32 to vector<16x32xf32>
    %42 = arith.maximumf %40, %41 : vector<16x32xf32>
    %43 = arith.truncf %42 : vector<16x32xf32> to vector<16x32xbf16>
    %c0_23 = arith.constant 0 : index
    %c0_24 = arith.constant 0 : index
    %44 = vector.load %arg8[%c0_23, %c0_24] : memref<32x7xbf16, #tpu.memory_space<vmem>>, vector<32x7xbf16>
    %cst_25 = arith.constant dense<0.000000e+00> : vector<16x7xf32>
    %45 = tpu.matmul %43, %44, %cst_25 {dimension_numbers = #tpu.dot_dimension_numbers<[1], [0], [0], [1], [0, 0, 1, 1], [], []>} : vector<16x32xbf16>, vector<32x7xbf16>, vector<16x7xf32> -> vector<16x7xf32>
    %c0_26 = arith.constant 0 : index
    %c0_27 = arith.constant 0 : index
    %46 = vector.load %arg9[%c0_26, %c0_27] : memref<1x7xf32, #tpu.memory_space<vmem>>, vector<1x7xf32>
    %47 = vector.broadcast %46 : vector<1x7xf32> to vector<16x7xf32>
    %48 = arith.addf %45, %47 : vector<16x7xf32>
    %cst_28 = arith.constant dense<0xFF800000> : vector<16xf32>
    %49 = vector.multi_reduction <maximumf>, %48, %cst_28 [1] : vector<16x7xf32> to vector<16xf32>
    %50 = vector.shape_cast %49 : vector<16xf32> to vector<16x1xf32>
    %51 = vector.broadcast %50 : vector<16x1xf32> to vector<16x7xf32>
    %52 = arith.subf %48, %51 : vector<16x7xf32>
    %53 = math.exp %52 : vector<16x7xf32>
    %cst_29 = arith.constant dense<0.000000e+00> : vector<16xf32>
    %54 = vector.multi_reduction <add>, %53, %cst_29 [1] : vector<16x7xf32> to vector<16xf32>
    %55 = vector.shape_cast %54 : vector<16xf32> to vector<16x1xf32>
    %56 = math.log %55 : vector<16x1xf32>
    %57 = arith.addf %50, %56 : vector<16x1xf32>
    %58 = vector.broadcast %57 : vector<16x1xf32> to vector<16x7xf32>
    %59 = arith.subf %48, %58 : vector<16x7xf32>
    %60 = vector.shape_cast %59 : vector<16x7xf32> to vector<2x8x7xf32>
    %c0_30 = arith.constant 0 : index
    %c0_31 = arith.constant 0 : index
    %c0_32 = arith.constant 0 : index
    %61 = vector.load %arg10[%c0_30, %c0_31, %c0_32] : memref<2x8x7xf32, #tpu.memory_space<vmem>>, vector<2x8x7xf32>
    tpu.vector_store %arg10[%c0_30, %c0_31, %c0_32], %60 {strides = array<i32>} : memref<2x8x7xf32, #tpu.memory_space<vmem>>, vector<2x8x7xf32>,
    %c0_33 = arith.constant 0 : index
    %c0_34 = arith.constant 0 : index
    %c0_35 = arith.constant 0 : index
    %62 = vector.load %arg11[%c0_33, %c0_34, %c0_35] : memref<2x8x8xf32, #tpu.memory_space<vmem>>, vector<2x8x8xf32>
    tpu.vector_store %arg11[%c0_33, %c0_34, %c0_35], %31 {strides = array<i32>} : memref<2x8x8xf32, #tpu.memory_space<vmem>>, vector<2x8x8xf32>,
    return
  }
  func.func @transform_0(%arg0: i32) -> (i32, i32, i32) {
    %c0_i32 = arith.constant 0 : i32
    %c0_i32_0 = arith.constant 0 : i32
    %c0_i32_1 = arith.constant 0 : i32
    %c0_i32_2 = arith.constant 0 : i32
    return %c0_i32, %c0_i32_0, %c0_i32_1 : i32, i32, i32
  }
  func.func @transform_1(%arg0: i32) -> (i32, i32, i32) {
    %c0_i32 = arith.constant 0 : i32
    %c0_i32_0 = arith.constant 0 : i32
    %c0_i32_1 = arith.constant 0 : i32
    return %c0_i32, %arg0, %c0_i32_0 : i32, i32, i32
  }
  func.func @transform_2(%arg0: i32) -> (i32, i32) {
    %c0_i32 = arith.constant 0 : i32
    %c0_i32_0 = arith.constant 0 : i32
    %c0_i32_1 = arith.constant 0 : i32
    return %c0_i32, %c0_i32_0 : i32, i32
  }
  func.func @transform_3(%arg0: i32) -> (i32, i32) {
    %c0_i32 = arith.constant 0 : i32
    %c0_i32_0 = arith.constant 0 : i32
    %c0_i32_1 = arith.constant 0 : i32
    return %c0_i32, %c0_i32_0 : i32, i32
  }
  func.func @transform_4(%arg0: i32) -> (i32, i32) {
    %c0_i32 = arith.constant 0 : i32
    %c0_i32_0 = arith.constant 0 : i32
    %c0_i32_1 = arith.constant 0 : i32
    return %c0_i32, %c0_i32_0 : i32, i32
  }
  func.func @transform_5(%arg0: i32) -> (i32, i32) {
    %c0_i32 = arith.constant 0 : i32
    %c0_i32_0 = arith.constant 0 : i32
    %c0_i32_1 = arith.constant 0 : i32
    return %c0_i32, %c0_i32_0 : i32, i32
  }
  func.func @transform_6(%arg0: i32) -> (i32, i32) {
    %c0_i32 = arith.constant 0 : i32
    %c0_i32_0 = arith.constant 0 : i32
    %c0_i32_1 = arith.constant 0 : i32
    return %c0_i32, %c0_i32_0 : i32, i32
  }
  func.func @transform_7(%arg0: i32) -> (i32, i32) {
    %c0_i32 = arith.constant 0 : i32
    %c0_i32_0 = arith.constant 0 : i32
    %c0_i32_1 = arith.constant 0 : i32
    return %c0_i32, %c0_i32_0 : i32, i32
  }
  func.func @transform_8(%arg0: i32) -> (i32, i32) {
    %c0_i32 = arith.constant 0 : i32
    %c0_i32_0 = arith.constant 0 : i32
    %c0_i32_1 = arith.constant 0 : i32
    return %c0_i32, %c0_i32_0 : i32, i32
  }
  func.func @transform_9(%arg0: i32) -> (i32, i32, i32) {
    %c0_i32 = arith.constant 0 : i32
    %c0_i32_0 = arith.constant 0 : i32
    %c0_i32_1 = arith.constant 0 : i32
    return %c0_i32, %arg0, %c0_i32_0 : i32, i32, i32
  }
  func.func @transform_10(%arg0: i32) -> (i32, i32, i32) {
    %c0_i32 = arith.constant 0 : i32
    %c0_i32_0 = arith.constant 0 : i32
    %c0_i32_1 = arith.constant 0 : i32
    return %c0_i32, %arg0, %c0_i32_0 : i32, i32, i32
  }
}

</mosaic_0001>

<llo_original>
// kernel: lstm_model_forward.3
$region0: #{lstm_model_forward.3}
  #allocation0 [shape = 'u32[]', space=smem, size = 0x4, offset = 0x4, fixed_abs, tag = 'smem constant byte address 0x4 - core index']
  #allocation1 [shape = 'u32[72,128]{1,0:T(1,128)}', space=vmem, size = 0x9000, scoped, tag = 'internal scratch']
  #allocation2 [shape = 'f32[8,2,128]{2,1,0:T(2,128)}', space=vmem, size = 0x2000, scoped, tag = 'scratch operand']
  %s0 = inlined_call_operand.vmem [shape: bf16[16,16], index: 0, kind: input, shape index: {}]
  %s1 = inlined_call_operand.vmem [shape: bf16[16,128], index: 1, kind: input, shape index: {}]
  %s2 = inlined_call_operand.vmem [shape: bf16[32,128], index: 2, kind: input, shape index: {}]
  %s3 = inlined_call_operand.vmem [shape: f32[1,128], index: 3, kind: input, shape index: {}]
  %s4 = inlined_call_operand.vmem [shape: f32[8,2,32], index: 4, kind: output, shape index: {}]
  %s5 = sld [smem:[#allocation0]]
  $region26: #{lstm_model_forward.3} parent=0
    _
  %s7 = ssub.s32 1, %s5
  %s8 = scalar_select 0, %s7, %s5
  // Predicated region
  $region2: #{lstm_model_forward.3} parent=0 // pred_check
    _
  $region3: #{lstm_model_forward.3} parent=0 // pred_check_branch
    %10 = sbr.rel (0) target = $region5
  $region4: #{lstm_model_forward.3} parent=0 // pred_region
    _
  $region5: #{lstm_model_forward.3} parent=0 // pred_fallthru
    _
  // Predicated region
  $region6: #{lstm_model_forward.3} parent=0 // pred_check
    _
  $region7: #{lstm_model_forward.3} parent=0 // pred_check_branch
    %12 = sbr.rel (0) target = $region9
  $region8: #{lstm_model_forward.3} parent=0 // pred_region
    _
  $region9: #{lstm_model_forward.3} parent=0 // pred_fallthru
    _
  // Predicated region
  $region10: #{lstm_model_forward.3} parent=0 // pred_check
    _
  $region11: #{lstm_model_forward.3} parent=0 // pred_check_branch
    %14 = sbr.rel (0) target = $region13
  $region12: #{lstm_model_forward.3} parent=0 // pred_region
    _
  $region13: #{lstm_model_forward.3} parent=0 // pred_fallthru
    _
  // Predicated region
  $region14: #{lstm_model_forward.3} parent=0 // pred_check
    _
  $region15: #{lstm_model_forward.3} parent=0 // pred_check_branch
    %16 = sbr.rel (0) target = $region17
  $region16: #{lstm_model_forward.3} parent=0 // pred_region
    _
  $region17: #{lstm_model_forward.3} parent=0 // pred_fallthru
    _
  %v18 = vld [vmem:[%s0] sm:$0xf]
  %v19 = vld [vmem:[%s0 + $0x4] sm:$0xf]
  %v20 = vld [vmem:[%s1] sm:$0xf]
  %v21 = vld [vmem:[%s1 + $0x4] sm:$0xf]
  %v22 = vld [vmem:[%s3] sm:$0x1]
  %v24 = vperm.slane %v22, 0
  %v28 = vunpack.c.l.b16 %v18
  %v29 = vunpack.c.l.b16 %v19
  %v30 = vpack.c.b16 %v29, %v28
  %v33 = vunpack.c.l.b16 %v20
  %v34 = vunpack.c.l.b16 %v21
  %v35 = vpack.c.b16 %v34, %v33
  %vm37 = vcmask 130048
  %v39 = vsel %vm37, %v30, 0
  %41 = vmatpush.bf16.msra.mxu0 0
  %42 = vmatpush.bf16.msra.mxu0 0
  %43 = vmatpush.bf16.msra.mxu0 0
  %44 = vmatpush.bf16.msra.mxu0 0
  %45 = vmatpush.bf16.msra.mxu0 0
  %46 = vmatpush.bf16.msra.mxu0 0
  %47 = vmatpush.bf16.msra.mxu0 0
  %48 = vmatpush.bf16.msra.mxu0 %v35
  %49 = vmatmul.bf16.gmra.mxu0 %v39
  %v50 = vpop.f32.mrf.mxu0
  %v51 = vadd.f32 %v24, %v50
  %v52 = vpop.f32.mrf.mxu0
  %v53 = vadd.f32 %v24, %v52
  %54 = vdwg.mxu0
  %v57 = vrot.slane %v51, 2
  %v58 = vrot.slane %v51, 4
  %v59 = vrot.slane %v51, 6
  %v60 = vrot.slane %v53, 2
  %v61 = vrot.slane %v53, 4
  %v62 = vrot.slane %v53, 6
  %69 = vst [vmem:[#allocation2] sm:$0x3] %v51
  %70 = vst [vmem:[#allocation2 + $0x2] sm:$0x3] %v57
  %71 = vst [vmem:[#allocation2 + $0x4] sm:$0x3] %v58
  %72 = vst [vmem:[#allocation2 + $0x6] sm:$0x3] %v59
  %73 = vst [vmem:[#allocation2 + $0x8] sm:$0x3] %v53
  %74 = vst [vmem:[#allocation2 + $0xa] sm:$0x3] %v60
  %75 = vst [vmem:[#allocation2 + $0xc] sm:$0x3] %v61
  %76 = vst [vmem:[#allocation2 + $0xe] sm:$0x3] %v62
  %v77 = vld [vmem:[%s2] sm:$0xf]
  %v78 = vld [vmem:[%s2 + $0x4] sm:$0xf]
  %v79 = vld [vmem:[%s2 + $0x8] sm:$0xf]
  %v80 = vld [vmem:[%s2 + $0xc] sm:$0xf]
  %v85 = vunpack.c.l.b16 %v77
  %v86 = vunpack.c.l.b16 %v78
  %v87 = vunpack.c.l.b16 %v79
  %v88 = vunpack.c.l.b16 %v80
  %v89 = vpack.c.b16 %v86, %v85
  %v90 = vpack.c.b16 %v88, %v87
  %vm93 = vcmask 261120
  %v95 = vsel %vm93, 0, 0
  %97 = vmatpush.bf16.msra.mxu0 0
  %98 = vmatpush.bf16.msra.mxu0 0
  %99 = vmatpush.bf16.msra.mxu0 0
  %100 = vmatpush.bf16.msra.mxu0 0
  %101 = vmatpush.bf16.msra.mxu0 0
  %102 = vmatpush.bf16.msra.mxu0 0
  %103 = vmatpush.bf16.msra.mxu0 %v90
  %104 = vmatpush.bf16.msra.mxu0 %v89
  %105 = vmatmul.bf16.gmra.mxu0 %v95
  %v106 = vpop.f32.mrf.mxu0
  %v107 = vadd.f32 0.0, %v106
  %v108 = vpop.f32.mrf.mxu0
  %109 = vdwg.mxu0
  %v110 = vld [vmem:[#allocation2] sm:$0x3]
  %v111 = vadd.f32 %v110, %v107
  %s112 = scalar_lea.vmem [#allocation2], 14
  %v113 = vld [vmem:[%s112] sm:$0x3]
  %v114 = vadd.f32 %v113, %v107
  %v115 = vxor.u32 %v111, 2147483648
  %v116 = vmul.f32 %v115, 1.442695
  %v117 = vpow.pop %v116
  %v118 = vadd.f32 %v117, 1.0
  %v119 = vrcp.pop %v118
  %v120 = vmul.f32 %v118, %v119
  %v121 = vsub.f32 1.0, %v120
  %v122 = vmul.f32 %v119, %v121
  %v123 = vadd.f32 %v119, %v122
  %vm124 = vweird.f32 %v118
  %vm125 = vweird.f32 %v119
  %vm126 = vmor %vm124, %vm125
  %v127 = vsel %vm126, %v119, %v123
  %v128 = vand.u32 2147483647, %v118
  %vm129 = vcmp.eq.f32.partialorder %v128, 8.507059e+37
  %v130 = vand.u32 %v118, 2147483648
  %v131 = vor.u32 1.1754944e-38, %v130
  %v132 = vsel %vm129, %v131, %v127
  %v133 = vmul.f32 1.0, %v132
  %v134 = vtanh.pop %v111
  %v135 = vmul.f32 %v133, 0.0
  %137 = vrot.lane.b32.xlu0 %v134, 80
  %v138 = vpop.permute.xlu0 %137
  %v140 = vmul.f32 %v133, %v138
  %142 = vrot.lane.b32.xlu0 %v140, 16
  %v143 = vpop.permute.xlu0 %142
  %v145 = vadd.f32 %v135, %v143
  %v146 = vtanh.pop %v145
  %148 = vrot.lane.b32.xlu0 %v146, 16
  %v149 = vpop.permute.xlu0 %148
  %v151 = vmul.f32 %v133, %v149
  %v152 = vxor.u32 %v114, 2147483648
  %v153 = vmul.f32 %v152, 1.442695
  %v154 = vpow.pop %v153
  %v155 = vadd.f32 %v154, 1.0
  %v156 = vrcp.pop %v155
  %v157 = vmul.f32 %v155, %v156
  %v158 = vsub.f32 1.0, %v157
  %v159 = vmul.f32 %v156, %v158
  %v160 = vadd.f32 %v156, %v159
  %vm161 = vweird.f32 %v155
  %vm162 = vweird.f32 %v156
  %vm163 = vmor %vm161, %vm162
  %v164 = vsel %vm163, %v156, %v160
  %v165 = vand.u32 2147483647, %v155
  %vm166 = vcmp.eq.f32.partialorder %v165, 8.507059e+37
  %v167 = vand.u32 %v155, 2147483648
  %v168 = vor.u32 1.1754944e-38, %v167
  %v169 = vsel %vm166, %v168, %v164
  %v170 = vmul.f32 1.0, %v169
  %v171 = vtanh.pop %v114
  %v172 = vmul.f32 %v170, 0.0
  %174 = vrot.lane.b32.xlu0 %v171, 80
  %v175 = vpop.permute.xlu0 %174
  %v177 = vmul.f32 %v170, %v175
  %179 = vrot.lane.b32.xlu0 %v177, 16
  %v180 = vpop.permute.xlu0 %179
  %v182 = vadd.f32 %v172, %v180
  %v183 = vtanh.pop %v182
  %185 = vrot.lane.b32.xlu0 %v183, 16
  %v186 = vpop.permute.xlu0 %185
  %v188 = vmul.f32 %v170, %v186
  %190 = vrot.lane.b32.xlu0 %v151, 96
  %v191 = vpop.permute.xlu0 %190
  %vm193 = vcmask 123904
  %194 = vst.msk [vmem:[%s4] sm:$0x3] %vm193, %v191
  %196 = vrot.lane.b32.xlu0 %v188, 48
  %v197 = vpop.permute.xlu0 %196
  %s199 = scalar_lea.vmem %s4, 14
  %vm200 = vcmask 255104
  %201 = vst.msk [vmem:[%s199] sm:$0x3] %vm200, %v197
  %v202 = vsel %vm37, %v191, %v197
  %v203 = vpack.c.bf16 %v202, %v202
  %v205 = vsel %vm93, %v203, 0
  %207 = vmatpush.bf16.msra.mxu0 0
  %208 = vmatpush.bf16.msra.mxu0 0
  %209 = vmatpush.bf16.msra.mxu0 0
  %210 = vmatpush.bf16.msra.mxu0 0
  %211 = vmatpush.bf16.msra.mxu0 0
  %212 = vmatpush.bf16.msra.mxu0 0
  %213 = vmatpush.bf16.msra.mxu0 %v90
  %214 = vmatpush.bf16.msra.mxu0 %v89
  %215 = vmatmul.bf16.gmra.mxu0 %v205
  %v216 = vpop.f32.mrf.mxu0
  %v217 = vadd.f32 0.0, %v216
  %v218 = vpop.f32.mrf.mxu0
  %219 = vdwg.mxu0
  %s220 = scalar_lea.vmem [#allocation2], 2
  %v221 = vld [vmem:[%s220] sm:$0x3]
  %v222 = vadd.f32 %v221, %v217
  %s223 = scalar_lea.vmem [#allocation2], 12
  %v224 = vld [vmem:[%s223] sm:$0x3]
  %v225 = vadd.f32 %v224, %v217
  %v226 = vxor.u32 %v222, 2147483648
  %v227 = vmul.f32 %v226, 1.442695
  %v228 = vpow.pop %v227
  %v229 = vadd.f32 %v228, 1.0
  %v230 = vrcp.pop %v229
  %v231 = vmul.f32 %v229, %v230
  %v232 = vsub.f32 1.0, %v231
  %v233 = vmul.f32 %v230, %v232
  %v234 = vadd.f32 %v230, %v233
  %vm235 = vweird.f32 %v229
  %vm236 = vweird.f32 %v230
  %vm237 = vmor %vm235, %vm236
  %v238 = vsel %vm237, %v230, %v234
  %v239 = vand.u32 2147483647, %v229
  %vm240 = vcmp.eq.f32.partialorder %v239, 8.507059e+37
  %v241 = vand.u32 %v229, 2147483648
  %v242 = vor.u32 1.1754944e-38, %v241
  %v243 = vsel %vm240, %v242, %v238
  %v244 = vmul.f32 1.0, %v243
  %v245 = vtanh.pop %v222
  %v246 = vmul.f32 %v244, %v145
  %248 = vrot.lane.b32.xlu0 %v245, 80
  %v249 = vpop.permute.xlu0 %248
  %v251 = vmul.f32 %v244, %v249
  %253 = vrot.lane.b32.xlu0 %v251, 16
  %v254 = vpop.permute.xlu0 %253
  %v256 = vadd.f32 %v246, %v254
  %v257 = vtanh.pop %v256
  %259 = vrot.lane.b32.xlu0 %v257, 16
  %v260 = vpop.permute.xlu0 %259
  %v262 = vmul.f32 %v244, %v260
  %v263 = vxor.u32 %v225, 2147483648
  %v264 = vmul.f32 %v263, 1.442695
  %v265 = vpow.pop %v264
  %v266 = vadd.f32 %v265, 1.0
  %v267 = vrcp.pop %v266
  %v268 = vmul.f32 %v266, %v267
  %v269 = vsub.f32 1.0, %v268
  %v270 = vmul.f32 %v267, %v269
  %v271 = vadd.f32 %v267, %v270
  %vm272 = vweird.f32 %v266
  %vm273 = vweird.f32 %v267
  %vm274 = vmor %vm272, %vm273
  %v275 = vsel %vm274, %v267, %v271
  %v276 = vand.u32 2147483647, %v266
  %vm277 = vcmp.eq.f32.partialorder %v276, 8.507059e+37
  %v278 = vand.u32 %v266, 2147483648
  %v279 = vor.u32 1.1754944e-38, %v278
  %v280 = vsel %vm277, %v279, %v275
  %v281 = vmul.f32 1.0, %v280
  %v282 = vtanh.pop %v225
  %v283 = vmul.f32 %v281, %v182
  %285 = vrot.lane.b32.xlu0 %v282, 80
  %v286 = vpop.permute.xlu0 %285
  %v288 = vmul.f32 %v281, %v286
  %290 = vrot.lane.b32.xlu0 %v288, 16
  %v291 = vpop.permute.xlu0 %290
  %v293 = vadd.f32 %v283, %v291
  %v294 = vtanh.pop %v293
  %296 = vrot.lane.b32.xlu0 %v294, 16
  %v297 = vpop.permute.xlu0 %296
  %v299 = vmul.f32 %v281, %v297
  %301 = vrot.lane.b32.xlu0 %v262, 96
  %v302 = vpop.permute.xlu0 %301
  %s304 = scalar_lea.vmem %s4, 2
  %305 = vst.msk [vmem:[%s304] sm:$0x3] %vm193, %v302
  %307 = vrot.lane.b32.xlu0 %v299, 48
  %v308 = vpop.permute.xlu0 %307
  %s310 = scalar_lea.vmem %s4, 12
  %311 = vst.msk [vmem:[%s310] sm:$0x3] %vm200, %v308
  %v312 = vsel %vm37, %v302, %v308
  %v313 = vpack.c.bf16 %v312, %v312
  %v315 = vsel %vm93, %v313, 0
  %317 = vmatpush.bf16.msra.mxu0 0
  %318 = vmatpush.bf16.msra.mxu0 0
  %319 = vmatpush.bf16.msra.mxu0 0
  %320 = vmatpush.bf16.msra.mxu0 0
  %321 = vmatpush.bf16.msra.mxu0 0
  %322 = vmatpush.bf16.msra.mxu0 0
  %323 = vmatpush.bf16.msra.mxu0 %v90
  %324 = vmatpush.bf16.msra.mxu0 %v89
  %325 = vmatmul.bf16.gmra.mxu0 %v315
  %v326 = vpop.f32.mrf.mxu0
  %v327 = vadd.f32 0.0, %v326
  %v328 = vpop.f32.mrf.mxu0
  %329 = vdwg.mxu0
  %s330 = scalar_lea.vmem [#allocation2], 4
  %v331 = vld [vmem:[%s330] sm:$0x3]
  %v332 = vadd.f32 %v331, %v327
  %s333 = scalar_lea.vmem [#allocation2], 10
  %v334 = vld [vmem:[%s333] sm:$0x3]
  %v335 = vadd.f32 %v334, %v327
  %v336 = vxor.u32 %v332, 2147483648
  %v337 = vmul.f32 %v336, 1.442695
  %v338 = vpow.pop %v337
  %v339 = vadd.f32 %v338, 1.0
  %v340 = vrcp.pop %v339
  %v341 = vmul.f32 %v339, %v340
  %v342 = vsub.f32 1.0, %v341
  %v343 = vmul.f32 %v340, %v342
  %v344 = vadd.f32 %v340, %v343
  %vm345 = vweird.f32 %v339
  %vm346 = vweird.f32 %v340
  %vm347 = vmor %vm345, %vm346
  %v348 = vsel %vm347, %v340, %v344
  %v349 = vand.u32 2147483647, %v339
  %vm350 = vcmp.eq.f32.partialorder %v349, 8.507059e+37
  %v351 = vand.u32 %v339, 2147483648
  %v352 = vor.u32 1.1754944e-38, %v351
  %v353 = vsel %vm350, %v352, %v348
  %v354 = vmul.f32 1.0, %v353
  %v355 = vtanh.pop %v332
  %v356 = vmul.f32 %v354, %v256
  %358 = vrot.lane.b32.xlu0 %v355, 80
  %v359 = vpop.permute.xlu0 %358
  %v361 = vmul.f32 %v354, %v359
  %363 = vrot.lane.b32.xlu0 %v361, 16
  %v364 = vpop.permute.xlu0 %363
  %v366 = vadd.f32 %v356, %v364
  %v367 = vtanh.pop %v366
  %369 = vrot.lane.b32.xlu0 %v367, 16
  %v370 = vpop.permute.xlu0 %369
  %v372 = vmul.f32 %v354, %v370
  %v373 = vxor.u32 %v335, 2147483648
  %v374 = vmul.f32 %v373, 1.442695
  %v375 = vpow.pop %v374
  %v376 = vadd.f32 %v375, 1.0
  %v377 = vrcp.pop %v376
  %v378 = vmul.f32 %v376, %v377
  %v379 = vsub.f32 1.0, %v378
  %v380 = vmul.f32 %v377, %v379
  %v381 = vadd.f32 %v377, %v380
  %vm382 = vweird.f32 %v376
  %vm383 = vweird.f32 %v377
  %vm384 = vmor %vm382, %vm383
  %v385 = vsel %vm384, %v377, %v381
  %v386 = vand.u32 2147483647, %v376
  %vm387 = vcmp.eq.f32.partialorder %v386, 8.507059e+37
  %v388 = vand.u32 %v376, 2147483648
  %v389 = vor.u32 1.1754944e-38, %v388
  %v390 = vsel %vm387, %v389, %v385
  %v391 = vmul.f32 1.0, %v390
  %v392 = vtanh.pop %v335
  %v393 = vmul.f32 %v391, %v293
  %395 = vrot.lane.b32.xlu0 %v392, 80
  %v396 = vpop.permute.xlu0 %395
  %v398 = vmul.f32 %v391, %v396
  %400 = vrot.lane.b32.xlu0 %v398, 16
  %v401 = vpop.permute.xlu0 %400
  %v403 = vadd.f32 %v393, %v401
  %v404 = vtanh.pop %v403
  %406 = vrot.lane.b32.xlu0 %v404, 16
  %v407 = vpop.permute.xlu0 %406
  %v409 = vmul.f32 %v391, %v407
  %411 = vrot.lane.b32.xlu0 %v372, 96
  %v412 = vpop.permute.xlu0 %411
  %s414 = scalar_lea.vmem %s4, 4
  %415 = vst.msk [vmem:[%s414] sm:$0x3] %vm193, %v412
  %417 = vrot.lane.b32.xlu0 %v409, 48
  %v418 = vpop.permute.xlu0 %417
  %s420 = scalar_lea.vmem %s4, 10
  %421 = vst.msk [vmem:[%s420] sm:$0x3] %vm200, %v418
  %v422 = vsel %vm37, %v412, %v418
  %v423 = vpack.c.bf16 %v422, %v422
  %v425 = vsel %vm93, %v423, 0
  %427 = vmatpush.bf16.msra.mxu0 0
  %428 = vmatpush.bf16.msra.mxu0 0
  %429 = vmatpush.bf16.msra.mxu0 0
  %430 = vmatpush.bf16.msra.mxu0 0
  %431 = vmatpush.bf16.msra.mxu0 0
  %432 = vmatpush.bf16.msra.mxu0 0
  %433 = vmatpush.bf16.msra.mxu0 %v90
  %434 = vmatpush.bf16.msra.mxu0 %v89
  %435 = vmatmul.bf16.gmra.mxu0 %v425
  %v436 = vpop.f32.mrf.mxu0
  %v437 = vadd.f32 0.0, %v436
  %v438 = vpop.f32.mrf.mxu0
  %439 = vdwg.mxu0
  %s440 = scalar_lea.vmem [#allocation2], 6
  %v441 = vld [vmem:[%s440] sm:$0x3]
  %v442 = vadd.f32 %v441, %v437
  %s443 = scalar_lea.vmem [#allocation2], 8
  %v444 = vld [vmem:[%s443] sm:$0x3]
  %v445 = vadd.f32 %v444, %v437
  %v446 = vxor.u32 %v442, 2147483648
  %v447 = vmul.f32 %v446, 1.442695
  %v448 = vpow.pop %v447
  %v449 = vadd.f32 %v448, 1.0
  %v450 = vrcp.pop %v449
  %v451 = vmul.f32 %v449, %v450
  %v452 = vsub.f32 1.0, %v451
  %v453 = vmul.f32 %v450, %v452
  %v454 = vadd.f32 %v450, %v453
  %vm455 = vweird.f32 %v449
  %vm456 = vweird.f32 %v450
  %vm457 = vmor %vm455, %vm456
  %v458 = vsel %vm457, %v450, %v454
  %v459 = vand.u32 2147483647, %v449
  %vm460 = vcmp.eq.f32.partialorder %v459, 8.507059e+37
  %v461 = vand.u32 %v449, 2147483648
  %v462 = vor.u32 1.1754944e-38, %v461
  %v463 = vsel %vm460, %v462, %v458
  %v464 = vmul.f32 1.0, %v463
  %v465 = vtanh.pop %v442
  %v466 = vmul.f32 %v464, %v366
  %468 = vrot.lane.b32.xlu0 %v465, 80
  %v469 = vpop.permute.xlu0 %468
  %v471 = vmul.f32 %v464, %v469
  %473 = vrot.lane.b32.xlu0 %v471, 16
  %v474 = vpop.permute.xlu0 %473
  %v476 = vadd.f32 %v466, %v474
  %v477 = vtanh.pop %v476
  %479 = vrot.lane.b32.xlu0 %v477, 16
  %v480 = vpop.permute.xlu0 %479
  %v482 = vmul.f32 %v464, %v480
  %v483 = vxor.u32 %v445, 2147483648
  %v484 = vmul.f32 %v483, 1.442695
  %v485 = vpow.pop %v484
  %v486 = vadd.f32 %v485, 1.0
  %v487 = vrcp.pop %v486
  %v488 = vmul.f32 %v486, %v487
  %v489 = vsub.f32 1.0, %v488
  %v490 = vmul.f32 %v487, %v489
  %v491 = vadd.f32 %v487, %v490
  %vm492 = vweird.f32 %v486
  %vm493 = vweird.f32 %v487
  %vm494 = vmor %vm492, %vm493
  %v495 = vsel %vm494, %v487, %v491
  %v496 = vand.u32 2147483647, %v486
  %vm497 = vcmp.eq.f32.partialorder %v496, 8.507059e+37
  %v498 = vand.u32 %v486, 2147483648
  %v499 = vor.u32 1.1754944e-38, %v498
  %v500 = vsel %vm497, %v499, %v495
  %v501 = vmul.f32 1.0, %v500
  %v502 = vtanh.pop %v445
  %v503 = vmul.f32 %v501, %v403
  %505 = vrot.lane.b32.xlu0 %v502, 80
  %v506 = vpop.permute.xlu0 %505
  %v508 = vmul.f32 %v501, %v506
  %510 = vrot.lane.b32.xlu0 %v508, 16
  %v511 = vpop.permute.xlu0 %510
  %v513 = vadd.f32 %v503, %v511
  %v514 = vtanh.pop %v513
  %516 = vrot.lane.b32.xlu0 %v514, 16
  %v517 = vpop.permute.xlu0 %516
  %v519 = vmul.f32 %v501, %v517
  %521 = vrot.lane.b32.xlu0 %v482, 96
  %v522 = vpop.permute.xlu0 %521
  %s524 = scalar_lea.vmem %s4, 6
  %525 = vst.msk [vmem:[%s524] sm:$0x3] %vm193, %v522
  %527 = vrot.lane.b32.xlu0 %v519, 48
  %v528 = vpop.permute.xlu0 %527
  %s530 = scalar_lea.vmem %s4, 8
  %531 = vst.msk [vmem:[%s530] sm:$0x3] %vm200, %v528
  %v532 = vsel %vm37, %v522, %v528
  %v533 = vpack.c.bf16 %v532, %v532
  %v535 = vsel %vm93, %v533, 0
  %537 = vmatpush.bf16.msra.mxu0 0
  %538 = vmatpush.bf16.msra.mxu0 0
  %539 = vmatpush.bf16.msra.mxu0 0
  %540 = vmatpush.bf16.msra.mxu0 0
  %541 = vmatpush.bf16.msra.mxu0 0
  %542 = vmatpush.bf16.msra.mxu0 0
  %543 = vmatpush.bf16.msra.mxu0 %v90
  %544 = vmatpush.bf16.msra.mxu0 %v89
  %545 = vmatmul.bf16.gmra.mxu0 %v535
  %v546 = vpop.f32.mrf.mxu0
  %v547 = vadd.f32 0.0, %v546
  %v548 = vpop.f32.mrf.mxu0
  %549 = vdwg.mxu0
  %v550 = vld [vmem:[%s443] sm:$0x3]
  %v551 = vadd.f32 %v550, %v547
  %v552 = vld [vmem:[%s440] sm:$0x3]
  %v553 = vadd.f32 %v552, %v547
  %v554 = vxor.u32 %v551, 2147483648
  %v555 = vmul.f32 %v554, 1.442695
  %v556 = vpow.pop %v555
  %v557 = vadd.f32 %v556, 1.0
  %v558 = vrcp.pop %v557
  %v559 = vmul.f32 %v557, %v558
  %v560 = vsub.f32 1.0, %v559
  %v561 = vmul.f32 %v558, %v560
  %v562 = vadd.f32 %v558, %v561
  %vm563 = vweird.f32 %v557
  %vm564 = vweird.f32 %v558
  %vm565 = vmor %vm563, %vm564
  %v566 = vsel %vm565, %v558, %v562
  %v567 = vand.u32 2147483647, %v557
  %vm568 = vcmp.eq.f32.partialorder %v567, 8.507059e+37
  %v569 = vand.u32 %v557, 2147483648
  %v570 = vor.u32 1.1754944e-38, %v569
  %v571 = vsel %vm568, %v570, %v566
  %v572 = vmul.f32 1.0, %v571
  %v573 = vtanh.pop %v551
  %v574 = vmul.f32 %v572, %v476
  %576 = vrot.lane.b32.xlu0 %v573, 80
  %v577 = vpop.permute.xlu0 %576
  %v579 = vmul.f32 %v572, %v577
  %581 = vrot.lane.b32.xlu0 %v579, 16
  %v582 = vpop.permute.xlu0 %581
  %v584 = vadd.f32 %v574, %v582
  %v585 = vtanh.pop %v584
  %587 = vrot.lane.b32.xlu0 %v585, 16
  %v588 = vpop.permute.xlu0 %587
  %v590 = vmul.f32 %v572, %v588
  %v591 = vxor.u32 %v553, 2147483648
  %v592 = vmul.f32 %v591, 1.442695
  %v593 = vpow.pop %v592
  %v594 = vadd.f32 %v593, 1.0
  %v595 = vrcp.pop %v594
  %v596 = vmul.f32 %v594, %v595
  %v597 = vsub.f32 1.0, %v596
  %v598 = vmul.f32 %v595, %v597
  %v599 = vadd.f32 %v595, %v598
  %vm600 = vweird.f32 %v594
  %vm601 = vweird.f32 %v595
  %vm602 = vmor %vm600, %vm601
  %v603 = vsel %vm602, %v595, %v599
  %v604 = vand.u32 2147483647, %v594
  %vm605 = vcmp.eq.f32.partialorder %v604, 8.507059e+37
  %v606 = vand.u32 %v594, 2147483648
  %v607 = vor.u32 1.1754944e-38, %v606
  %v608 = vsel %vm605, %v607, %v603
  %v609 = vmul.f32 1.0, %v608
  %v610 = vtanh.pop %v553
  %v611 = vmul.f32 %v609, %v513
  %613 = vrot.lane.b32.xlu0 %v610, 80
  %v614 = vpop.permute.xlu0 %613
  %v616 = vmul.f32 %v609, %v614
  %618 = vrot.lane.b32.xlu0 %v616, 16
  %v619 = vpop.permute.xlu0 %618
  %v621 = vadd.f32 %v611, %v619
  %v622 = vtanh.pop %v621
  %624 = vrot.lane.b32.xlu0 %v622, 16
  %v625 = vpop.permute.xlu0 %624
  %v627 = vmul.f32 %v609, %v625
  %629 = vrot.lane.b32.xlu0 %v590, 96
  %v630 = vpop.permute.xlu0 %629
  %632 = vst.msk [vmem:[%s530] sm:$0x3] %vm193, %v630
  %634 = vrot.lane.b32.xlu0 %v627, 48
  %v635 = vpop.permute.xlu0 %634
  %637 = vst.msk [vmem:[%s524] sm:$0x3] %vm200, %v635
  %v638 = vsel %vm37, %v630, %v635
  %v639 = vpack.c.bf16 %v638, %v638
  %v641 = vsel %vm93, %v639, 0
  %643 = vmatpush.bf16.msra.mxu0 0
  %644 = vmatpush.bf16.msra.mxu0 0
  %645 = vmatpush.bf16.msra.mxu0 0
  %646 = vmatpush.bf16.msra.mxu0 0
  %647 = vmatpush.bf16.msra.mxu0 0
  %648 = vmatpush.bf16.msra.mxu0 0
  %649 = vmatpush.bf16.msra.mxu0 %v90
  %650 = vmatpush.bf16.msra.mxu0 %v89
  %651 = vmatmul.bf16.gmra.mxu0 %v641
  %v652 = vpop.f32.mrf.mxu0
  %v653 = vadd.f32 0.0, %v652
  %v654 = vpop.f32.mrf.mxu0
  %655 = vdwg.mxu0
  %v656 = vld [vmem:[%s333] sm:$0x3]
  %v657 = vadd.f32 %v656, %v653
  %v658 = vld [vmem:[%s330] sm:$0x3]
  %v659 = vadd.f32 %v658, %v653
  %v660 = vxor.u32 %v657, 2147483648
  %v661 = vmul.f32 %v660, 1.442695
  %v662 = vpow.pop %v661
  %v663 = vadd.f32 %v662, 1.0
  %v664 = vrcp.pop %v663
  %v665 = vmul.f32 %v663, %v664
  %v666 = vsub.f32 1.0, %v665
  %v667 = vmul.f32 %v664, %v666
  %v668 = vadd.f32 %v664, %v667
  %vm669 = vweird.f32 %v663
  %vm670 = vweird.f32 %v664
  %vm671 = vmor %vm669, %vm670
  %v672 = vsel %vm671, %v664, %v668
  %v673 = vand.u32 2147483647, %v663
  %vm674 = vcmp.eq.f32.partialorder %v673, 8.507059e+37
  %v675 = vand.u32 %v663, 2147483648
  %v676 = vor.u32 1.1754944e-38, %v675
  %v677 = vsel %vm674, %v676, %v672
  %v678 = vmul.f32 1.0, %v677
  %v679 = vtanh.pop %v657
  %v680 = vmul.f32 %v678, %v584
  %682 = vrot.lane.b32.xlu0 %v679, 80
  %v683 = vpop.permute.xlu0 %682
  %v685 = vmul.f32 %v678, %v683
  %687 = vrot.lane.b32.xlu0 %v685, 16
  %v688 = vpop.permute.xlu0 %687
  %v690 = vadd.f32 %v680, %v688
  %v691 = vtanh.pop %v690
  %693 = vrot.lane.b32.xlu0 %v691, 16
  %v694 = vpop.permute.xlu0 %693
  %v696 = vmul.f32 %v678, %v694
  %v697 = vxor.u32 %v659, 2147483648
  %v698 = vmul.f32 %v697, 1.442695
  %v699 = vpow.pop %v698
  %v700 = vadd.f32 %v699, 1.0
  %v701 = vrcp.pop %v700
  %v702 = vmul.f32 %v700, %v701
  %v703 = vsub.f32 1.0, %v702
  %v704 = vmul.f32 %v701, %v703
  %v705 = vadd.f32 %v701, %v704
  %vm706 = vweird.f32 %v700
  %vm707 = vweird.f32 %v701
  %vm708 = vmor %vm706, %vm707
  %v709 = vsel %vm708, %v701, %v705
  %v710 = vand.u32 2147483647, %v700
  %vm711 = vcmp.eq.f32.partialorder %v710, 8.507059e+37
  %v712 = vand.u32 %v700, 2147483648
  %v713 = vor.u32 1.1754944e-38, %v712
  %v714 = vsel %vm711, %v713, %v709
  %v715 = vmul.f32 1.0, %v714
  %v716 = vtanh.pop %v659
  %v717 = vmul.f32 %v715, %v621
  %719 = vrot.lane.b32.xlu0 %v716, 80
  %v720 = vpop.permute.xlu0 %719
  %v722 = vmul.f32 %v715, %v720
  %724 = vrot.lane.b32.xlu0 %v722, 16
  %v725 = vpop.permute.xlu0 %724
  %v727 = vadd.f32 %v717, %v725
  %v728 = vtanh.pop %v727
  %730 = vrot.lane.b32.xlu0 %v728, 16
  %v731 = vpop.permute.xlu0 %730
  %v733 = vmul.f32 %v715, %v731
  %735 = vrot.lane.b32.xlu0 %v696, 96
  %v736 = vpop.permute.xlu0 %735
  %738 = vst.msk [vmem:[%s420] sm:$0x3] %vm193, %v736
  %740 = vrot.lane.b32.xlu0 %v733, 48
  %v741 = vpop.permute.xlu0 %740
  %743 = vst.msk [vmem:[%s414] sm:$0x3] %vm200, %v741
  %v744 = vsel %vm37, %v736, %v741
  %v745 = vpack.c.bf16 %v744, %v744
  %v747 = vsel %vm93, %v745, 0
  %749 = vmatpush.bf16.msra.mxu0 0
  %750 = vmatpush.bf16.msra.mxu0 0
  %751 = vmatpush.bf16.msra.mxu0 0
  %752 = vmatpush.bf16.msra.mxu0 0
  %753 = vmatpush.bf16.msra.mxu0 0
  %754 = vmatpush.bf16.msra.mxu0 0
  %755 = vmatpush.bf16.msra.mxu0 %v90
  %756 = vmatpush.bf16.msra.mxu0 %v89
  %757 = vmatmul.bf16.gmra.mxu0 %v747
  %v758 = vpop.f32.mrf.mxu0
  %v759 = vadd.f32 0.0, %v758
  %v760 = vpop.f32.mrf.mxu0
  %761 = vdwg.mxu0
  %v762 = vld [vmem:[%s223] sm:$0x3]
  %v763 = vadd.f32 %v762, %v759
  %v764 = vld [vmem:[%s220] sm:$0x3]
  %v765 = vadd.f32 %v764, %v759
  %v766 = vxor.u32 %v763, 2147483648
  %v767 = vmul.f32 %v766, 1.442695
  %v768 = vpow.pop %v767
  %v769 = vadd.f32 %v768, 1.0
  %v770 = vrcp.pop %v769
  %v771 = vmul.f32 %v769, %v770
  %v772 = vsub.f32 1.0, %v771
  %v773 = vmul.f32 %v770, %v772
  %v774 = vadd.f32 %v770, %v773
  %vm775 = vweird.f32 %v769
  %vm776 = vweird.f32 %v770
  %vm777 = vmor %vm775, %vm776
  %v778 = vsel %vm777, %v770, %v774
  %v779 = vand.u32 2147483647, %v769
  %vm780 = vcmp.eq.f32.partialorder %v779, 8.507059e+37
  %v781 = vand.u32 %v769, 2147483648
  %v782 = vor.u32 1.1754944e-38, %v781
  %v783 = vsel %vm780, %v782, %v778
  %v784 = vmul.f32 1.0, %v783
  %v785 = vtanh.pop %v763
  %v786 = vmul.f32 %v784, %v690
  %788 = vrot.lane.b32.xlu0 %v785, 80
  %v789 = vpop.permute.xlu0 %788
  %v791 = vmul.f32 %v784, %v789
  %793 = vrot.lane.b32.xlu0 %v791, 16
  %v794 = vpop.permute.xlu0 %793
  %v796 = vadd.f32 %v786, %v794
  %v797 = vtanh.pop %v796
  %799 = vrot.lane.b32.xlu0 %v797, 16
  %v800 = vpop.permute.xlu0 %799
  %v802 = vmul.f32 %v784, %v800
  %v803 = vxor.u32 %v765, 2147483648
  %v804 = vmul.f32 %v803, 1.442695
  %v805 = vpow.pop %v804
  %v806 = vadd.f32 %v805, 1.0
  %v807 = vrcp.pop %v806
  %v808 = vmul.f32 %v806, %v807
  %v809 = vsub.f32 1.0, %v808
  %v810 = vmul.f32 %v807, %v809
  %v811 = vadd.f32 %v807, %v810
  %vm812 = vweird.f32 %v806
  %vm813 = vweird.f32 %v807
  %vm814 = vmor %vm812, %vm813
  %v815 = vsel %vm814, %v807, %v811
  %v816 = vand.u32 2147483647, %v806
  %vm817 = vcmp.eq.f32.partialorder %v816, 8.507059e+37
  %v818 = vand.u32 %v806, 2147483648
  %v819 = vor.u32 1.1754944e-38, %v818
  %v820 = vsel %vm817, %v819, %v815
  %v821 = vmul.f32 1.0, %v820
  %v822 = vtanh.pop %v765
  %v823 = vmul.f32 %v821, %v727
  %825 = vrot.lane.b32.xlu0 %v822, 80
  %v826 = vpop.permute.xlu0 %825
  %v828 = vmul.f32 %v821, %v826
  %830 = vrot.lane.b32.xlu0 %v828, 16
  %v831 = vpop.permute.xlu0 %830
  %v833 = vadd.f32 %v823, %v831
  %v834 = vtanh.pop %v833
  %836 = vrot.lane.b32.xlu0 %v834, 16
  %v837 = vpop.permute.xlu0 %836
  %v839 = vmul.f32 %v821, %v837
  %841 = vrot.lane.b32.xlu0 %v802, 96
  %v842 = vpop.permute.xlu0 %841
  %844 = vst.msk [vmem:[%s310] sm:$0x3] %vm193, %v842
  %846 = vrot.lane.b32.xlu0 %v839, 48
  %v847 = vpop.permute.xlu0 %846
  %849 = vst.msk [vmem:[%s304] sm:$0x3] %vm200, %v847
  %v850 = vsel %vm37, %v842, %v847
  %v851 = vpack.c.bf16 %v850, %v850
  %v853 = vsel %vm93, %v851, 0
  %855 = vmatpush.bf16.msra.mxu0 0
  %856 = vmatpush.bf16.msra.mxu0 0
  %857 = vmatpush.bf16.msra.mxu0 0
  %858 = vmatpush.bf16.msra.mxu0 0
  %859 = vmatpush.bf16.msra.mxu0 0
  %860 = vmatpush.bf16.msra.mxu0 0
  %861 = vmatpush.bf16.msra.mxu0 %v90
  %862 = vmatpush.bf16.msra.mxu0 %v89
  %863 = vmatmul.bf16.gmra.mxu0 %v853
  %v864 = vpop.f32.mrf.mxu0
  %v865 = vadd.f32 0.0, %v864
  %v866 = vpop.f32.mrf.mxu0
  %867 = vdwg.mxu0
  %v868 = vld [vmem:[%s112] sm:$0x3]
  %v869 = vadd.f32 %v868, %v865
  %v870 = vld [vmem:[#allocation2] sm:$0x3]
  %v871 = vadd.f32 %v870, %v865
  %v872 = vxor.u32 %v869, 2147483648
  %v873 = vmul.f32 %v872, 1.442695
  %v874 = vpow.pop %v873
  %v875 = vadd.f32 %v874, 1.0
  %v876 = vrcp.pop %v875
  %v877 = vmul.f32 %v875, %v876
  %v878 = vsub.f32 1.0, %v877
  %v879 = vmul.f32 %v876, %v878
  %v880 = vadd.f32 %v876, %v879
  %vm881 = vweird.f32 %v875
  %vm882 = vweird.f32 %v876
  %vm883 = vmor %vm881, %vm882
  %v884 = vsel %vm883, %v876, %v880
  %v885 = vand.u32 2147483647, %v875
  %vm886 = vcmp.eq.f32.partialorder %v885, 8.507059e+37
  %v887 = vand.u32 %v875, 2147483648
  %v888 = vor.u32 1.1754944e-38, %v887
  %v889 = vsel %vm886, %v888, %v884
  %v890 = vmul.f32 1.0, %v889
  %v891 = vtanh.pop %v869
  %v892 = vmul.f32 %v890, %v796
  %894 = vrot.lane.b32.xlu0 %v891, 80
  %v895 = vpop.permute.xlu0 %894
  %v897 = vmul.f32 %v890, %v895
  %899 = vrot.lane.b32.xlu0 %v897, 16
  %v900 = vpop.permute.xlu0 %899
  %v902 = vadd.f32 %v892, %v900
  %v903 = vtanh.pop %v902
  %905 = vrot.lane.b32.xlu0 %v903, 16
  %v906 = vpop.permute.xlu0 %905
  %v908 = vmul.f32 %v890, %v906
  %v909 = vxor.u32 %v871, 2147483648
  %v910 = vmul.f32 %v909, 1.442695
  %v911 = vpow.pop %v910
  %v912 = vadd.f32 %v911, 1.0
  %v913 = vrcp.pop %v912
  %v914 = vmul.f32 %v912, %v913
  %v915 = vsub.f32 1.0, %v914
  %v916 = vmul.f32 %v913, %v915
  %v917 = vadd.f32 %v913, %v916
  %vm918 = vweird.f32 %v912
  %vm919 = vweird.f32 %v913
  %vm920 = vmor %vm918, %vm919
  %v921 = vsel %vm920, %v913, %v917
  %v922 = vand.u32 2147483647, %v912
  %vm923 = vcmp.eq.f32.partialorder %v922, 8.507059e+37
  %v924 = vand.u32 %v912, 2147483648
  %v925 = vor.u32 1.1754944e-38, %v924
  %v926 = vsel %vm923, %v925, %v921
  %v927 = vmul.f32 1.0, %v926
  %v928 = vtanh.pop %v871
  %v929 = vmul.f32 %v927, %v833
  %931 = vrot.lane.b32.xlu0 %v928, 80
  %v932 = vpop.permute.xlu0 %931
  %v934 = vmul.f32 %v927, %v932
  %936 = vrot.lane.b32.xlu0 %v934, 16
  %v937 = vpop.permute.xlu0 %936
  %v939 = vadd.f32 %v929, %v937
  %v940 = vtanh.pop %v939
  %942 = vrot.lane.b32.xlu0 %v940, 16
  %v943 = vpop.permute.xlu0 %942
  %v945 = vmul.f32 %v927, %v943
  %947 = vrot.lane.b32.xlu0 %v908, 96
  %v948 = vpop.permute.xlu0 %947
  %950 = vst.msk [vmem:[%s199] sm:$0x3] %vm193, %v948
  %952 = vrot.lane.b32.xlu0 %v945, 48
  %v953 = vpop.permute.xlu0 %952
  %955 = vst.msk [vmem:[%s4] sm:$0x3] %vm200, %v953
  // Predicated region
  $region18: #{lstm_model_forward.3} parent=0 // pred_check
    _
  $region19: #{lstm_model_forward.3} parent=0 // pred_check_branch
    %957 = sbr.rel (0) target = $region21
  $region20: #{lstm_model_forward.3} parent=0 // pred_region
    _
  $region21: #{lstm_model_forward.3} parent=0 // pred_fallthru
    _
  // Predicated region
  $region22: #{lstm_model_forward.3} parent=0 // pred_check
    _
  $region23: #{lstm_model_forward.3} parent=0 // pred_check_branch
    %959 = sbr.rel (0) target = $region25
  $region24: #{lstm_model_forward.3} parent=0 // pred_region
    _
  $region25: #{lstm_model_forward.3} parent=0 // pred_fallthru
    _

// kernel: lstm_model_forward.4
$region0: #{lstm_model_forward.4}
  #allocation0 [shape = 'u32[]', space=smem, size = 0x4, offset = 0x4, fixed_abs, tag = 'smem constant byte address 0x4 - core index']
  #allocation1 [shape = 'u32[72,128]{1,0:T(1,128)}', space=vmem, size = 0x9000, scoped, tag = 'internal scratch']
  #allocation2 [shape = 'f32[8,2,128]{2,1,0:T(2,128)}', space=vmem, size = 0x2000, scoped, tag = 'scratch operand']
  %s0 = inlined_call_operand.vmem [shape: bf16[16,32], index: 0, kind: input, shape index: {}]
  %s1 = inlined_call_operand.vmem [shape: bf16[32,128], index: 1, kind: input, shape index: {}]
  %s2 = inlined_call_operand.vmem [shape: bf16[32,128], index: 2, kind: input, shape index: {}]
  %s3 = inlined_call_operand.vmem [shape: f32[1,128], index: 3, kind: input, shape index: {}]
  %s4 = inlined_call_operand.vmem [shape: f32[8,2,32], index: 4, kind: output, shape index: {}]
  %s5 = sld [smem:[#allocation0]]
  $region26: #{lstm_model_forward.4} parent=0
    _
  %s7 = ssub.s32 1, %s5
  %s8 = scalar_select 0, %s7, %s5
  // Predicated region
  $region2: #{lstm_model_forward.4} parent=0 // pred_check
    _
  $region3: #{lstm_model_forward.4} parent=0 // pred_check_branch
    %10 = sbr.rel (0) target = $region5
  $region4: #{lstm_model_forward.4} parent=0 // pred_region
    _
  $region5: #{lstm_model_forward.4} parent=0 // pred_fallthru
    _
  // Predicated region
  $region6: #{lstm_model_forward.4} parent=0 // pred_check
    _
  $region7: #{lstm_model_forward.4} parent=0 // pred_check_branch
    %12 = sbr.rel (0) target = $region9
  $region8: #{lstm_model_forward.4} parent=0 // pred_region
    _
  $region9: #{lstm_model_forward.4} parent=0 // pred_fallthru
    _
  // Predicated region
  $region10: #{lstm_model_forward.4} parent=0 // pred_check
    _
  $region11: #{lstm_model_forward.4} parent=0 // pred_check_branch
    %14 = sbr.rel (0) target = $region13
  $region12: #{lstm_model_forward.4} parent=0 // pred_region
    _
  $region13: #{lstm_model_forward.4} parent=0 // pred_fallthru
    _
  // Predicated region
  $region14: #{lstm_model_forward.4} parent=0 // pred_check
    _
  $region15: #{lstm_model_forward.4} parent=0 // pred_check_branch
    %16 = sbr.rel (0) target = $region17
  $region16: #{lstm_model_forward.4} parent=0 // pred_region
    _
  $region17: #{lstm_model_forward.4} parent=0 // pred_fallthru
    _
  %v18 = vld [vmem:[%s0] sm:$0xf]
  %v19 = vld [vmem:[%s0 + $0x4] sm:$0xf]
  %v20 = vld [vmem:[%s1] sm:$0xf]
  %v21 = vld [vmem:[%s1 + $0x4] sm:$0xf]
  %v22 = vld [vmem:[%s1 + $0x8] sm:$0xf]
  %v23 = vld [vmem:[%s1 + $0xc] sm:$0xf]
  %v24 = vld [vmem:[%s3] sm:$0x1]
  %v26 = vperm.slane %v24, 0
  %v30 = vunpack.c.l.b16 %v18
  %v31 = vunpack.c.l.b16 %v19
  %v32 = vpack.c.b16 %v31, %v30
  %v37 = vunpack.c.l.b16 %v20
  %v38 = vunpack.c.l.b16 %v21
  %v39 = vunpack.c.l.b16 %v22
  %v40 = vunpack.c.l.b16 %v23
  %v41 = vpack.c.b16 %v38, %v37
  %v42 = vpack.c.b16 %v40, %v39
  %vm45 = vcmask 261120
  %v47 = vsel %vm45, %v32, 0
  %49 = vmatpush.bf16.msra.mxu0 0
  %50 = vmatpush.bf16.msra.mxu0 0
  %51 = vmatpush.bf16.msra.mxu0 0
  %52 = vmatpush.bf16.msra.mxu0 0
  %53 = vmatpush.bf16.msra.mxu0 0
  %54 = vmatpush.bf16.msra.mxu0 0
  %55 = vmatpush.bf16.msra.mxu0 %v42
  %56 = vmatpush.bf16.msra.mxu0 %v41
  %57 = vmatmul.bf16.gmra.mxu0 %v47
  %v58 = vpop.f32.mrf.mxu0
  %v59 = vadd.f32 %v26, %v58
  %v60 = vpop.f32.mrf.mxu0
  %v61 = vadd.f32 %v26, %v60
  %62 = vdwg.mxu0
  %v65 = vrot.slane %v59, 2
  %v66 = vrot.slane %v59, 4
  %v67 = vrot.slane %v59, 6
  %v68 = vrot.slane %v61, 2
  %v69 = vrot.slane %v61, 4
  %v70 = vrot.slane %v61, 6
  %77 = vst [vmem:[#allocation2] sm:$0x3] %v59
  %78 = vst [vmem:[#allocation2 + $0x2] sm:$0x3] %v65
  %79 = vst [vmem:[#allocation2 + $0x4] sm:$0x3] %v66
  %80 = vst [vmem:[#allocation2 + $0x6] sm:$0x3] %v67
  %81 = vst [vmem:[#allocation2 + $0x8] sm:$0x3] %v61
  %82 = vst [vmem:[#allocation2 + $0xa] sm:$0x3] %v68
  %83 = vst [vmem:[#allocation2 + $0xc] sm:$0x3] %v69
  %84 = vst [vmem:[#allocation2 + $0xe] sm:$0x3] %v70
  %v85 = vld [vmem:[%s2] sm:$0xf]
  %v86 = vld [vmem:[%s2 + $0x4] sm:$0xf]
  %v87 = vld [vmem:[%s2 + $0x8] sm:$0xf]
  %v88 = vld [vmem:[%s2 + $0xc] sm:$0xf]
  %v93 = vunpack.c.l.b16 %v85
  %v94 = vunpack.c.l.b16 %v86
  %v95 = vunpack.c.l.b16 %v87
  %v96 = vunpack.c.l.b16 %v88
  %v97 = vpack.c.b16 %v94, %v93
  %v98 = vpack.c.b16 %v96, %v95
  %v102 = vsel %vm45, 0, 0
  %104 = vmatpush.bf16.msra.mxu0 0
  %105 = vmatpush.bf16.msra.mxu0 0
  %106 = vmatpush.bf16.msra.mxu0 0
  %107 = vmatpush.bf16.msra.mxu0 0
  %108 = vmatpush.bf16.msra.mxu0 0
  %109 = vmatpush.bf16.msra.mxu0 0
  %110 = vmatpush.bf16.msra.mxu0 %v98
  %111 = vmatpush.bf16.msra.mxu0 %v97
  %112 = vmatmul.bf16.gmra.mxu0 %v102
  %v113 = vpop.f32.mrf.mxu0
  %v114 = vadd.f32 0.0, %v113
  %v115 = vpop.f32.mrf.mxu0
  %116 = vdwg.mxu0
  %v117 = vld [vmem:[#allocation2] sm:$0x3]
  %v118 = vadd.f32 %v117, %v114
  %s119 = scalar_lea.vmem [#allocation2], 14
  %v120 = vld [vmem:[%s119] sm:$0x3]
  %v121 = vadd.f32 %v120, %v114
  %v122 = vxor.u32 %v118, 2147483648
  %v123 = vmul.f32 %v122, 1.442695
  %v124 = vpow.pop %v123
  %v125 = vadd.f32 %v124, 1.0
  %v126 = vrcp.pop %v125
  %v127 = vmul.f32 %v125, %v126
  %v128 = vsub.f32 1.0, %v127
  %v129 = vmul.f32 %v126, %v128
  %v130 = vadd.f32 %v126, %v129
  %vm131 = vweird.f32 %v125
  %vm132 = vweird.f32 %v126
  %vm133 = vmor %vm131, %vm132
  %v134 = vsel %vm133, %v126, %v130
  %v135 = vand.u32 2147483647, %v125
  %vm136 = vcmp.eq.f32.partialorder %v135, 8.507059e+37
  %v137 = vand.u32 %v125, 2147483648
  %v138 = vor.u32 1.1754944e-38, %v137
  %v139 = vsel %vm136, %v138, %v134
  %v140 = vmul.f32 1.0, %v139
  %v141 = vtanh.pop %v118
  %v142 = vmul.f32 %v140, 0.0
  %144 = vrot.lane.b32.xlu0 %v141, 80
  %v145 = vpop.permute.xlu0 %144
  %v147 = vmul.f32 %v140, %v145
  %149 = vrot.lane.b32.xlu0 %v147, 16
  %v150 = vpop.permute.xlu0 %149
  %v152 = vadd.f32 %v142, %v150
  %v153 = vtanh.pop %v152
  %155 = vrot.lane.b32.xlu0 %v153, 16
  %v156 = vpop.permute.xlu0 %155
  %v158 = vmul.f32 %v140, %v156
  %v159 = vxor.u32 %v121, 2147483648
  %v160 = vmul.f32 %v159, 1.442695
  %v161 = vpow.pop %v160
  %v162 = vadd.f32 %v161, 1.0
  %v163 = vrcp.pop %v162
  %v164 = vmul.f32 %v162, %v163
  %v165 = vsub.f32 1.0, %v164
  %v166 = vmul.f32 %v163, %v165
  %v167 = vadd.f32 %v163, %v166
  %vm168 = vweird.f32 %v162
  %vm169 = vweird.f32 %v163
  %vm170 = vmor %vm168, %vm169
  %v171 = vsel %vm170, %v163, %v167
  %v172 = vand.u32 2147483647, %v162
  %vm173 = vcmp.eq.f32.partialorder %v172, 8.507059e+37
  %v174 = vand.u32 %v162, 2147483648
  %v175 = vor.u32 1.1754944e-38, %v174
  %v176 = vsel %vm173, %v175, %v171
  %v177 = vmul.f32 1.0, %v176
  %v178 = vtanh.pop %v121
  %v179 = vmul.f32 %v177, 0.0
  %181 = vrot.lane.b32.xlu0 %v178, 80
  %v182 = vpop.permute.xlu0 %181
  %v184 = vmul.f32 %v177, %v182
  %186 = vrot.lane.b32.xlu0 %v184, 16
  %v187 = vpop.permute.xlu0 %186
  %v189 = vadd.f32 %v179, %v187
  %v190 = vtanh.pop %v189
  %192 = vrot.lane.b32.xlu0 %v190, 16
  %v193 = vpop.permute.xlu0 %192
  %v195 = vmul.f32 %v177, %v193
  %197 = vrot.lane.b32.xlu0 %v158, 96
  %v198 = vpop.permute.xlu0 %197
  %vm200 = vcmask 123904
  %201 = vst.msk [vmem:[%s4] sm:$0x3] %vm200, %v198
  %203 = vrot.lane.b32.xlu0 %v195, 48
  %v204 = vpop.permute.xlu0 %203
  %s206 = scalar_lea.vmem %s4, 14
  %vm207 = vcmask 255104
  %208 = vst.msk [vmem:[%s206] sm:$0x3] %vm207, %v204
  %vm209 = vcmask 130048
  %v210 = vsel %vm209, %v198, %v204
  %v211 = vpack.c.bf16 %v210, %v210
  %v213 = vsel %vm45, %v211, 0
  %215 = vmatpush.bf16.msra.mxu0 0
  %216 = vmatpush.bf16.msra.mxu0 0
  %217 = vmatpush.bf16.msra.mxu0 0
  %218 = vmatpush.bf16.msra.mxu0 0
  %219 = vmatpush.bf16.msra.mxu0 0
  %220 = vmatpush.bf16.msra.mxu0 0
  %221 = vmatpush.bf16.msra.mxu0 %v98
  %222 = vmatpush.bf16.msra.mxu0 %v97
  %223 = vmatmul.bf16.gmra.mxu0 %v213
  %v224 = vpop.f32.mrf.mxu0
  %v225 = vadd.f32 0.0, %v224
  %v226 = vpop.f32.mrf.mxu0
  %227 = vdwg.mxu0
  %s228 = scalar_lea.vmem [#allocation2], 2
  %v229 = vld [vmem:[%s228] sm:$0x3]
  %v230 = vadd.f32 %v229, %v225
  %s231 = scalar_lea.vmem [#allocation2], 12
  %v232 = vld [vmem:[%s231] sm:$0x3]
  %v233 = vadd.f32 %v232, %v225
  %v234 = vxor.u32 %v230, 2147483648
  %v235 = vmul.f32 %v234, 1.442695
  %v236 = vpow.pop %v235
  %v237 = vadd.f32 %v236, 1.0
  %v238 = vrcp.pop %v237
  %v239 = vmul.f32 %v237, %v238
  %v240 = vsub.f32 1.0, %v239
  %v241 = vmul.f32 %v238, %v240
  %v242 = vadd.f32 %v238, %v241
  %vm243 = vweird.f32 %v237
  %vm244 = vweird.f32 %v238
  %vm245 = vmor %vm243, %vm244
  %v246 = vsel %vm245, %v238, %v242
  %v247 = vand.u32 2147483647, %v237
  %vm248 = vcmp.eq.f32.partialorder %v247, 8.507059e+37
  %v249 = vand.u32 %v237, 2147483648
  %v250 = vor.u32 1.1754944e-38, %v249
  %v251 = vsel %vm248, %v250, %v246
  %v252 = vmul.f32 1.0, %v251
  %v253 = vtanh.pop %v230
  %v254 = vmul.f32 %v252, %v152
  %256 = vrot.lane.b32.xlu0 %v253, 80
  %v257 = vpop.permute.xlu0 %256
  %v259 = vmul.f32 %v252, %v257
  %261 = vrot.lane.b32.xlu0 %v259, 16
  %v262 = vpop.permute.xlu0 %261
  %v264 = vadd.f32 %v254, %v262
  %v265 = vtanh.pop %v264
  %267 = vrot.lane.b32.xlu0 %v265, 16
  %v268 = vpop.permute.xlu0 %267
  %v270 = vmul.f32 %v252, %v268
  %v271 = vxor.u32 %v233, 2147483648
  %v272 = vmul.f32 %v271, 1.442695
  %v273 = vpow.pop %v272
  %v274 = vadd.f32 %v273, 1.0
  %v275 = vrcp.pop %v274
  %v276 = vmul.f32 %v274, %v275
  %v277 = vsub.f32 1.0, %v276
  %v278 = vmul.f32 %v275, %v277
  %v279 = vadd.f32 %v275, %v278
  %vm280 = vweird.f32 %v274
  %vm281 = vweird.f32 %v275
  %vm282 = vmor %vm280, %vm281
  %v283 = vsel %vm282, %v275, %v279
  %v284 = vand.u32 2147483647, %v274
  %vm285 = vcmp.eq.f32.partialorder %v284, 8.507059e+37
  %v286 = vand.u32 %v274, 2147483648
  %v287 = vor.u32 1.1754944e-38, %v286
  %v288 = vsel %vm285, %v287, %v283
  %v289 = vmul.f32 1.0, %v288
  %v290 = vtanh.pop %v233
  %v291 = vmul.f32 %v289, %v189
  %293 = vrot.lane.b32.xlu0 %v290, 80
  %v294 = vpop.permute.xlu0 %293
  %v296 = vmul.f32 %v289, %v294
  %298 = vrot.lane.b32.xlu0 %v296, 16
  %v299 = vpop.permute.xlu0 %298
  %v301 = vadd.f32 %v291, %v299
  %v302 = vtanh.pop %v301
  %304 = vrot.lane.b32.xlu0 %v302, 16
  %v305 = vpop.permute.xlu0 %304
  %v307 = vmul.f32 %v289, %v305
  %309 = vrot.lane.b32.xlu0 %v270, 96
  %v310 = vpop.permute.xlu0 %309
  %s312 = scalar_lea.vmem %s4, 2
  %313 = vst.msk [vmem:[%s312] sm:$0x3] %vm200, %v310
  %315 = vrot.lane.b32.xlu0 %v307, 48
  %v316 = vpop.permute.xlu0 %315
  %s318 = scalar_lea.vmem %s4, 12
  %319 = vst.msk [vmem:[%s318] sm:$0x3] %vm207, %v316
  %v320 = vsel %vm209, %v310, %v316
  %v321 = vpack.c.bf16 %v320, %v320
  %v323 = vsel %vm45, %v321, 0
  %325 = vmatpush.bf16.msra.mxu0 0
  %326 = vmatpush.bf16.msra.mxu0 0
  %327 = vmatpush.bf16.msra.mxu0 0
  %328 = vmatpush.bf16.msra.mxu0 0
  %329 = vmatpush.bf16.msra.mxu0 0
  %330 = vmatpush.bf16.msra.mxu0 0
  %331 = vmatpush.bf16.msra.mxu0 %v98
  %332 = vmatpush.bf16.msra.mxu0 %v97
  %333 = vmatmul.bf16.gmra.mxu0 %v323
  %v334 = vpop.f32.mrf.mxu0
  %v335 = vadd.f32 0.0, %v334
  %v336 = vpop.f32.mrf.mxu0
  %337 = vdwg.mxu0
  %s338 = scalar_lea.vmem [#allocation2], 4
  %v339 = vld [vmem:[%s338] sm:$0x3]
  %v340 = vadd.f32 %v339, %v335
  %s341 = scalar_lea.vmem [#allocation2], 10
  %v342 = vld [vmem:[%s341] sm:$0x3]
  %v343 = vadd.f32 %v342, %v335
  %v344 = vxor.u32 %v340, 2147483648
  %v345 = vmul.f32 %v344, 1.442695
  %v346 = vpow.pop %v345
  %v347 = vadd.f32 %v346, 1.0
  %v348 = vrcp.pop %v347
  %v349 = vmul.f32 %v347, %v348
  %v350 = vsub.f32 1.0, %v349
  %v351 = vmul.f32 %v348, %v350
  %v352 = vadd.f32 %v348, %v351
  %vm353 = vweird.f32 %v347
  %vm354 = vweird.f32 %v348
  %vm355 = vmor %vm353, %vm354
  %v356 = vsel %vm355, %v348, %v352
  %v357 = vand.u32 2147483647, %v347
  %vm358 = vcmp.eq.f32.partialorder %v357, 8.507059e+37
  %v359 = vand.u32 %v347, 2147483648
  %v360 = vor.u32 1.1754944e-38, %v359
  %v361 = vsel %vm358, %v360, %v356
  %v362 = vmul.f32 1.0, %v361
  %v363 = vtanh.pop %v340
  %v364 = vmul.f32 %v362, %v264
  %366 = vrot.lane.b32.xlu0 %v363, 80
  %v367 = vpop.permute.xlu0 %366
  %v369 = vmul.f32 %v362, %v367
  %371 = vrot.lane.b32.xlu0 %v369, 16
  %v372 = vpop.permute.xlu0 %371
  %v374 = vadd.f32 %v364, %v372
  %v375 = vtanh.pop %v374
  %377 = vrot.lane.b32.xlu0 %v375, 16
  %v378 = vpop.permute.xlu0 %377
  %v380 = vmul.f32 %v362, %v378
  %v381 = vxor.u32 %v343, 2147483648
  %v382 = vmul.f32 %v381, 1.442695
  %v383 = vpow.pop %v382
  %v384 = vadd.f32 %v383, 1.0
  %v385 = vrcp.pop %v384
  %v386 = vmul.f32 %v384, %v385
  %v387 = vsub.f32 1.0, %v386
  %v388 = vmul.f32 %v385, %v387
  %v389 = vadd.f32 %v385, %v388
  %vm390 = vweird.f32 %v384
  %vm391 = vweird.f32 %v385
  %vm392 = vmor %vm390, %vm391
  %v393 = vsel %vm392, %v385, %v389
  %v394 = vand.u32 2147483647, %v384
  %vm395 = vcmp.eq.f32.partialorder %v394, 8.507059e+37
  %v396 = vand.u32 %v384, 2147483648
  %v397 = vor.u32 1.1754944e-38, %v396
  %v398 = vsel %vm395, %v397, %v393
  %v399 = vmul.f32 1.0, %v398
  %v400 = vtanh.pop %v343
  %v401 = vmul.f32 %v399, %v301
  %403 = vrot.lane.b32.xlu0 %v400, 80
  %v404 = vpop.permute.xlu0 %403
  %v406 = vmul.f32 %v399, %v404
  %408 = vrot.lane.b32.xlu0 %v406, 16
  %v409 = vpop.permute.xlu0 %408
  %v411 = vadd.f32 %v401, %v409
  %v412 = vtanh.pop %v411
  %414 = vrot.lane.b32.xlu0 %v412, 16
  %v415 = vpop.permute.xlu0 %414
  %v417 = vmul.f32 %v399, %v415
  %419 = vrot.lane.b32.xlu0 %v380, 96
  %v420 = vpop.permute.xlu0 %419
  %s422 = scalar_lea.vmem %s4, 4
  %423 = vst.msk [vmem:[%s422] sm:$0x3] %vm200, %v420
  %425 = vrot.lane.b32.xlu0 %v417, 48
  %v426 = vpop.permute.xlu0 %425
  %s428 = scalar_lea.vmem %s4, 10
  %429 = vst.msk [vmem:[%s428] sm:$0x3] %vm207, %v426
  %v430 = vsel %vm209, %v420, %v426
  %v431 = vpack.c.bf16 %v430, %v430
  %v433 = vsel %vm45, %v431, 0
  %435 = vmatpush.bf16.msra.mxu0 0
  %436 = vmatpush.bf16.msra.mxu0 0
  %437 = vmatpush.bf16.msra.mxu0 0
  %438 = vmatpush.bf16.msra.mxu0 0
  %439 = vmatpush.bf16.msra.mxu0 0
  %440 = vmatpush.bf16.msra.mxu0 0
  %441 = vmatpush.bf16.msra.mxu0 %v98
  %442 = vmatpush.bf16.msra.mxu0 %v97
  %443 = vmatmul.bf16.gmra.mxu0 %v433
  %v444 = vpop.f32.mrf.mxu0
  %v445 = vadd.f32 0.0, %v444
  %v446 = vpop.f32.mrf.mxu0
  %447 = vdwg.mxu0
  %s448 = scalar_lea.vmem [#allocation2], 6
  %v449 = vld [vmem:[%s448] sm:$0x3]
  %v450 = vadd.f32 %v449, %v445
  %s451 = scalar_lea.vmem [#allocation2], 8
  %v452 = vld [vmem:[%s451] sm:$0x3]
  %v453 = vadd.f32 %v452, %v445
  %v454 = vxor.u32 %v450, 2147483648
  %v455 = vmul.f32 %v454, 1.442695
  %v456 = vpow.pop %v455
  %v457 = vadd.f32 %v456, 1.0
  %v458 = vrcp.pop %v457
  %v459 = vmul.f32 %v457, %v458
  %v460 = vsub.f32 1.0, %v459
  %v461 = vmul.f32 %v458, %v460
  %v462 = vadd.f32 %v458, %v461
  %vm463 = vweird.f32 %v457
  %vm464 = vweird.f32 %v458
  %vm465 = vmor %vm463, %vm464
  %v466 = vsel %vm465, %v458, %v462
  %v467 = vand.u32 2147483647, %v457
  %vm468 = vcmp.eq.f32.partialorder %v467, 8.507059e+37
  %v469 = vand.u32 %v457, 2147483648
  %v470 = vor.u32 1.1754944e-38, %v469
  %v471 = vsel %vm468, %v470, %v466
  %v472 = vmul.f32 1.0, %v471
  %v473 = vtanh.pop %v450
  %v474 = vmul.f32 %v472, %v374
  %476 = vrot.lane.b32.xlu0 %v473, 80
  %v477 = vpop.permute.xlu0 %476
  %v479 = vmul.f32 %v472, %v477
  %481 = vrot.lane.b32.xlu0 %v479, 16
  %v482 = vpop.permute.xlu0 %481
  %v484 = vadd.f32 %v474, %v482
  %v485 = vtanh.pop %v484
  %487 = vrot.lane.b32.xlu0 %v485, 16
  %v488 = vpop.permute.xlu0 %487
  %v490 = vmul.f32 %v472, %v488
  %v491 = vxor.u32 %v453, 2147483648
  %v492 = vmul.f32 %v491, 1.442695
  %v493 = vpow.pop %v492
  %v494 = vadd.f32 %v493, 1.0
  %v495 = vrcp.pop %v494
  %v496 = vmul.f32 %v494, %v495
  %v497 = vsub.f32 1.0, %v496
  %v498 = vmul.f32 %v495, %v497
  %v499 = vadd.f32 %v495, %v498
  %vm500 = vweird.f32 %v494
  %vm501 = vweird.f32 %v495
  %vm502 = vmor %vm500, %vm501
  %v503 = vsel %vm502, %v495, %v499
  %v504 = vand.u32 2147483647, %v494
  %vm505 = vcmp.eq.f32.partialorder %v504, 8.507059e+37
  %v506 = vand.u32 %v494, 2147483648
  %v507 = vor.u32 1.1754944e-38, %v506
  %v508 = vsel %vm505, %v507, %v503
  %v509 = vmul.f32 1.0, %v508
  %v510 = vtanh.pop %v453
  %v511 = vmul.f32 %v509, %v411
  %513 = vrot.lane.b32.xlu0 %v510, 80
  %v514 = vpop.permute.xlu0 %513
  %v516 = vmul.f32 %v509, %v514
  %518 = vrot.lane.b32.xlu0 %v516, 16
  %v519 = vpop.permute.xlu0 %518
  %v521 = vadd.f32 %v511, %v519
  %v522 = vtanh.pop %v521
  %524 = vrot.lane.b32.xlu0 %v522, 16
  %v525 = vpop.permute.xlu0 %524
  %v527 = vmul.f32 %v509, %v525
  %529 = vrot.lane.b32.xlu0 %v490, 96
  %v530 = vpop.permute.xlu0 %529
  %s532 = scalar_lea.vmem %s4, 6
  %533 = vst.msk [vmem:[%s532] sm:$0x3] %vm200, %v530
  %535 = vrot.lane.b32.xlu0 %v527, 48
  %v536 = vpop.permute.xlu0 %535
  %s538 = scalar_lea.vmem %s4, 8
  %539 = vst.msk [vmem:[%s538] sm:$0x3] %vm207, %v536
  %v540 = vsel %vm209, %v530, %v536
  %v541 = vpack.c.bf16 %v540, %v540
  %v543 = vsel %vm45, %v541, 0
  %545 = vmatpush.bf16.msra.mxu0 0
  %546 = vmatpush.bf16.msra.mxu0 0
  %547 = vmatpush.bf16.msra.mxu0 0
  %548 = vmatpush.bf16.msra.mxu0 0
  %549 = vmatpush.bf16.msra.mxu0 0
  %550 = vmatpush.bf16.msra.mxu0 0
  %551 = vmatpush.bf16.msra.mxu0 %v98
  %552 = vmatpush.bf16.msra.mxu0 %v97
  %553 = vmatmul.bf16.gmra.mxu0 %v543
  %v554 = vpop.f32.mrf.mxu0
  %v555 = vadd.f32 0.0, %v554
  %v556 = vpop.f32.mrf.mxu0
  %557 = vdwg.mxu0
  %v558 = vld [vmem:[%s451] sm:$0x3]
  %v559 = vadd.f32 %v558, %v555
  %v560 = vld [vmem:[%s448] sm:$0x3]
  %v561 = vadd.f32 %v560, %v555
  %v562 = vxor.u32 %v559, 2147483648
  %v563 = vmul.f32 %v562, 1.442695
  %v564 = vpow.pop %v563
  %v565 = vadd.f32 %v564, 1.0
  %v566 = vrcp.pop %v565
  %v567 = vmul.f32 %v565, %v566
  %v568 = vsub.f32 1.0, %v567
  %v569 = vmul.f32 %v566, %v568
  %v570 = vadd.f32 %v566, %v569
  %vm571 = vweird.f32 %v565
  %vm572 = vweird.f32 %v566
  %vm573 = vmor %vm571, %vm572
  %v574 = vsel %vm573, %v566, %v570
  %v575 = vand.u32 2147483647, %v565
  %vm576 = vcmp.eq.f32.partialorder %v575, 8.507059e+37
  %v577 = vand.u32 %v565, 2147483648
  %v578 = vor.u32 1.1754944e-38, %v577
  %v579 = vsel %vm576, %v578, %v574
  %v580 = vmul.f32 1.0, %v579
  %v581 = vtanh.pop %v559
  %v582 = vmul.f32 %v580, %v484
  %584 = vrot.lane.b32.xlu0 %v581, 80
  %v585 = vpop.permute.xlu0 %584
  %v587 = vmul.f32 %v580, %v585
  %589 = vrot.lane.b32.xlu0 %v587, 16
  %v590 = vpop.permute.xlu0 %589
  %v592 = vadd.f32 %v582, %v590
  %v593 = vtanh.pop %v592
  %595 = vrot.lane.b32.xlu0 %v593, 16
  %v596 = vpop.permute.xlu0 %595
  %v598 = vmul.f32 %v580, %v596
  %v599 = vxor.u32 %v561, 2147483648
  %v600 = vmul.f32 %v599, 1.442695
  %v601 = vpow.pop %v600
  %v602 = vadd.f32 %v601, 1.0
  %v603 = vrcp.pop %v602
  %v604 = vmul.f32 %v602, %v603
  %v605 = vsub.f32 1.0, %v604
  %v606 = vmul.f32 %v603, %v605
  %v607 = vadd.f32 %v603, %v606
  %vm608 = vweird.f32 %v602
  %vm609 = vweird.f32 %v603
  %vm610 = vmor %vm608, %vm609
  %v611 = vsel %vm610, %v603, %v607
  %v612 = vand.u32 2147483647, %v602
  %vm613 = vcmp.eq.f32.partialorder %v612, 8.507059e+37
  %v614 = vand.u32 %v602, 2147483648
  %v615 = vor.u32 1.1754944e-38, %v614
  %v616 = vsel %vm613, %v615, %v611
  %v617 = vmul.f32 1.0, %v616
  %v618 = vtanh.pop %v561
  %v619 = vmul.f32 %v617, %v521
  %621 = vrot.lane.b32.xlu0 %v618, 80
  %v622 = vpop.permute.xlu0 %621
  %v624 = vmul.f32 %v617, %v622
  %626 = vrot.lane.b32.xlu0 %v624, 16
  %v627 = vpop.permute.xlu0 %626
  %v629 = vadd.f32 %v619, %v627
  %v630 = vtanh.pop %v629
  %632 = vrot.lane.b32.xlu0 %v630, 16
  %v633 = vpop.permute.xlu0 %632
  %v635 = vmul.f32 %v617, %v633
  %637 = vrot.lane.b32.xlu0 %v598, 96
  %v638 = vpop.permute.xlu0 %637
  %640 = vst.msk [vmem:[%s538] sm:$0x3] %vm200, %v638
  %642 = vrot.lane.b32.xlu0 %v635, 48
  %v643 = vpop.permute.xlu0 %642
  %645 = vst.msk [vmem:[%s532] sm:$0x3] %vm207, %v643
  %v646 = vsel %vm209, %v638, %v643
  %v647 = vpack.c.bf16 %v646, %v646
  %v649 = vsel %vm45, %v647, 0
  %651 = vmatpush.bf16.msra.mxu0 0
  %652 = vmatpush.bf16.msra.mxu0 0
  %653 = vmatpush.bf16.msra.mxu0 0
  %654 = vmatpush.bf16.msra.mxu0 0
  %655 = vmatpush.bf16.msra.mxu0 0
  %656 = vmatpush.bf16.msra.mxu0 0
  %657 = vmatpush.bf16.msra.mxu0 %v98
  %658 = vmatpush.bf16.msra.mxu0 %v97
  %659 = vmatmul.bf16.gmra.mxu0 %v649
  %v660 = vpop.f32.mrf.mxu0
  %v661 = vadd.f32 0.0, %v660
  %v662 = vpop.f32.mrf.mxu0
  %663 = vdwg.mxu0
  %v664 = vld [vmem:[%s341] sm:$0x3]
  %v665 = vadd.f32 %v664, %v661
  %v666 = vld [vmem:[%s338] sm:$0x3]
  %v667 = vadd.f32 %v666, %v661
  %v668 = vxor.u32 %v665, 2147483648
  %v669 = vmul.f32 %v668, 1.442695
  %v670 = vpow.pop %v669
  %v671 = vadd.f32 %v670, 1.0
  %v672 = vrcp.pop %v671
  %v673 = vmul.f32 %v671, %v672
  %v674 = vsub.f32 1.0, %v673
  %v675 = vmul.f32 %v672, %v674
  %v676 = vadd.f32 %v672, %v675
  %vm677 = vweird.f32 %v671
  %vm678 = vweird.f32 %v672
  %vm679 = vmor %vm677, %vm678
  %v680 = vsel %vm679, %v672, %v676
  %v681 = vand.u32 2147483647, %v671
  %vm682 = vcmp.eq.f32.partialorder %v681, 8.507059e+37
  %v683 = vand.u32 %v671, 2147483648
  %v684 = vor.u32 1.1754944e-38, %v683
  %v685 = vsel %vm682, %v684, %v680
  %v686 = vmul.f32 1.0, %v685
  %v687 = vtanh.pop %v665
  %v688 = vmul.f32 %v686, %v592
  %690 = vrot.lane.b32.xlu0 %v687, 80
  %v691 = vpop.permute.xlu0 %690
  %v693 = vmul.f32 %v686, %v691
  %695 = vrot.lane.b32.xlu0 %v693, 16
  %v696 = vpop.permute.xlu0 %695
  %v698 = vadd.f32 %v688, %v696
  %v699 = vtanh.pop %v698
  %701 = vrot.lane.b32.xlu0 %v699, 16
  %v702 = vpop.permute.xlu0 %701
  %v704 = vmul.f32 %v686, %v702
  %v705 = vxor.u32 %v667, 2147483648
  %v706 = vmul.f32 %v705, 1.442695
  %v707 = vpow.pop %v706
  %v708 = vadd.f32 %v707, 1.0
  %v709 = vrcp.pop %v708
  %v710 = vmul.f32 %v708, %v709
  %v711 = vsub.f32 1.0, %v710
  %v712 = vmul.f32 %v709, %v711
  %v713 = vadd.f32 %v709, %v712
  %vm714 = vweird.f32 %v708
  %vm715 = vweird.f32 %v709
  %vm716 = vmor %vm714, %vm715
  %v717 = vsel %vm716, %v709, %v713
  %v718 = vand.u32 2147483647, %v708
  %vm719 = vcmp.eq.f32.partialorder %v718, 8.507059e+37
  %v720 = vand.u32 %v708, 2147483648
  %v721 = vor.u32 1.1754944e-38, %v720
  %v722 = vsel %vm719, %v721, %v717
  %v723 = vmul.f32 1.0, %v722
  %v724 = vtanh.pop %v667
  %v725 = vmul.f32 %v723, %v629
  %727 = vrot.lane.b32.xlu0 %v724, 80
  %v728 = vpop.permute.xlu0 %727
  %v730 = vmul.f32 %v723, %v728
  %732 = vrot.lane.b32.xlu0 %v730, 16
  %v733 = vpop.permute.xlu0 %732
  %v735 = vadd.f32 %v725, %v733
  %v736 = vtanh.pop %v735
  %738 = vrot.lane.b32.xlu0 %v736, 16
  %v739 = vpop.permute.xlu0 %738
  %v741 = vmul.f32 %v723, %v739
  %743 = vrot.lane.b32.xlu0 %v704, 96
  %v744 = vpop.permute.xlu0 %743
  %746 = vst.msk [vmem:[%s428] sm:$0x3] %vm200, %v744
  %748 = vrot.lane.b32.xlu0 %v741, 48
  %v749 = vpop.permute.xlu0 %748
  %751 = vst.msk [vmem:[%s422] sm:$0x3] %vm207, %v749
  %v752 = vsel %vm209, %v744, %v749
  %v753 = vpack.c.bf16 %v752, %v752
  %v755 = vsel %vm45, %v753, 0
  %757 = vmatpush.bf16.msra.mxu0 0
  %758 = vmatpush.bf16.msra.mxu0 0
  %759 = vmatpush.bf16.msra.mxu0 0
  %760 = vmatpush.bf16.msra.mxu0 0
  %761 = vmatpush.bf16.msra.mxu0 0
  %762 = vmatpush.bf16.msra.mxu0 0
  %763 = vmatpush.bf16.msra.mxu0 %v98
  %764 = vmatpush.bf16.msra.mxu0 %v97
  %765 = vmatmul.bf16.gmra.mxu0 %v755
  %v766 = vpop.f32.mrf.mxu0
  %v767 = vadd.f32 0.0, %v766
  %v768 = vpop.f32.mrf.mxu0
  %769 = vdwg.mxu0
  %v770 = vld [vmem:[%s231] sm:$0x3]
  %v771 = vadd.f32 %v770, %v767
  %v772 = vld [vmem:[%s228] sm:$0x3]
  %v773 = vadd.f32 %v772, %v767
  %v774 = vxor.u32 %v771, 2147483648
  %v775 = vmul.f32 %v774, 1.442695
  %v776 = vpow.pop %v775
  %v777 = vadd.f32 %v776, 1.0
  %v778 = vrcp.pop %v777
  %v779 = vmul.f32 %v777, %v778
  %v780 = vsub.f32 1.0, %v779
  %v781 = vmul.f32 %v778, %v780
  %v782 = vadd.f32 %v778, %v781
  %vm783 = vweird.f32 %v777
  %vm784 = vweird.f32 %v778
  %vm785 = vmor %vm783, %vm784
  %v786 = vsel %vm785, %v778, %v782
  %v787 = vand.u32 2147483647, %v777
  %vm788 = vcmp.eq.f32.partialorder %v787, 8.507059e+37
  %v789 = vand.u32 %v777, 2147483648
  %v790 = vor.u32 1.1754944e-38, %v789
  %v791 = vsel %vm788, %v790, %v786
  %v792 = vmul.f32 1.0, %v791
  %v793 = vtanh.pop %v771
  %v794 = vmul.f32 %v792, %v698
  %796 = vrot.lane.b32.xlu0 %v793, 80
  %v797 = vpop.permute.xlu0 %796
  %v799 = vmul.f32 %v792, %v797
  %801 = vrot.lane.b32.xlu0 %v799, 16
  %v802 = vpop.permute.xlu0 %801
  %v804 = vadd.f32 %v794, %v802
  %v805 = vtanh.pop %v804
  %807 = vrot.lane.b32.xlu0 %v805, 16
  %v808 = vpop.permute.xlu0 %807
  %v810 = vmul.f32 %v792, %v808
  %v811 = vxor.u32 %v773, 2147483648
  %v812 = vmul.f32 %v811, 1.442695
  %v813 = vpow.pop %v812
  %v814 = vadd.f32 %v813, 1.0
  %v815 = vrcp.pop %v814
  %v816 = vmul.f32 %v814, %v815
  %v817 = vsub.f32 1.0, %v816
  %v818 = vmul.f32 %v815, %v817
  %v819 = vadd.f32 %v815, %v818
  %vm820 = vweird.f32 %v814
  %vm821 = vweird.f32 %v815
  %vm822 = vmor %vm820, %vm821
  %v823 = vsel %vm822, %v815, %v819
  %v824 = vand.u32 2147483647, %v814
  %vm825 = vcmp.eq.f32.partialorder %v824, 8.507059e+37
  %v826 = vand.u32 %v814, 2147483648
  %v827 = vor.u32 1.1754944e-38, %v826
  %v828 = vsel %vm825, %v827, %v823
  %v829 = vmul.f32 1.0, %v828
  %v830 = vtanh.pop %v773
  %v831 = vmul.f32 %v829, %v735
  %833 = vrot.lane.b32.xlu0 %v830, 80
  %v834 = vpop.permute.xlu0 %833
  %v836 = vmul.f32 %v829, %v834
  %838 = vrot.lane.b32.xlu0 %v836, 16
  %v839 = vpop.permute.xlu0 %838
  %v841 = vadd.f32 %v831, %v839
  %v842 = vtanh.pop %v841
  %844 = vrot.lane.b32.xlu0 %v842, 16
  %v845 = vpop.permute.xlu0 %844
  %v847 = vmul.f32 %v829, %v845
  %849 = vrot.lane.b32.xlu0 %v810, 96
  %v850 = vpop.permute.xlu0 %849
  %852 = vst.msk [vmem:[%s318] sm:$0x3] %vm200, %v850
  %854 = vrot.lane.b32.xlu0 %v847, 48
  %v855 = vpop.permute.xlu0 %854
  %857 = vst.msk [vmem:[%s312] sm:$0x3] %vm207, %v855
  %v858 = vsel %vm209, %v850, %v855
  %v859 = vpack.c.bf16 %v858, %v858
  %v861 = vsel %vm45, %v859, 0
  %863 = vmatpush.bf16.msra.mxu0 0
  %864 = vmatpush.bf16.msra.mxu0 0
  %865 = vmatpush.bf16.msra.mxu0 0
  %866 = vmatpush.bf16.msra.mxu0 0
  %867 = vmatpush.bf16.msra.mxu0 0
  %868 = vmatpush.bf16.msra.mxu0 0
  %869 = vmatpush.bf16.msra.mxu0 %v98
  %870 = vmatpush.bf16.msra.mxu0 %v97
  %871 = vmatmul.bf16.gmra.mxu0 %v861
  %v872 = vpop.f32.mrf.mxu0
  %v873 = vadd.f32 0.0, %v872
  %v874 = vpop.f32.mrf.mxu0
  %875 = vdwg.mxu0
  %v876 = vld [vmem:[%s119] sm:$0x3]
  %v877 = vadd.f32 %v876, %v873
  %v878 = vld [vmem:[#allocation2] sm:$0x3]
  %v879 = vadd.f32 %v878, %v873
  %v880 = vxor.u32 %v877, 2147483648
  %v881 = vmul.f32 %v880, 1.442695
  %v882 = vpow.pop %v881
  %v883 = vadd.f32 %v882, 1.0
  %v884 = vrcp.pop %v883
  %v885 = vmul.f32 %v883, %v884
  %v886 = vsub.f32 1.0, %v885
  %v887 = vmul.f32 %v884, %v886
  %v888 = vadd.f32 %v884, %v887
  %vm889 = vweird.f32 %v883
  %vm890 = vweird.f32 %v884
  %vm891 = vmor %vm889, %vm890
  %v892 = vsel %vm891, %v884, %v888
  %v893 = vand.u32 2147483647, %v883
  %vm894 = vcmp.eq.f32.partialorder %v893, 8.507059e+37
  %v895 = vand.u32 %v883, 2147483648
  %v896 = vor.u32 1.1754944e-38, %v895
  %v897 = vsel %vm894, %v896, %v892
  %v898 = vmul.f32 1.0, %v897
  %v899 = vtanh.pop %v877
  %v900 = vmul.f32 %v898, %v804
  %902 = vrot.lane.b32.xlu0 %v899, 80
  %v903 = vpop.permute.xlu0 %902
  %v905 = vmul.f32 %v898, %v903
  %907 = vrot.lane.b32.xlu0 %v905, 16
  %v908 = vpop.permute.xlu0 %907
  %v910 = vadd.f32 %v900, %v908
  %v911 = vtanh.pop %v910
  %913 = vrot.lane.b32.xlu0 %v911, 16
  %v914 = vpop.permute.xlu0 %913
  %v916 = vmul.f32 %v898, %v914
  %v917 = vxor.u32 %v879, 2147483648
  %v918 = vmul.f32 %v917, 1.442695
  %v919 = vpow.pop %v918
  %v920 = vadd.f32 %v919, 1.0
  %v921 = vrcp.pop %v920
  %v922 = vmul.f32 %v920, %v921
  %v923 = vsub.f32 1.0, %v922
  %v924 = vmul.f32 %v921, %v923
  %v925 = vadd.f32 %v921, %v924
  %vm926 = vweird.f32 %v920
  %vm927 = vweird.f32 %v921
  %vm928 = vmor %vm926, %vm927
  %v929 = vsel %vm928, %v921, %v925
  %v930 = vand.u32 2147483647, %v920
  %vm931 = vcmp.eq.f32.partialorder %v930, 8.507059e+37
  %v932 = vand.u32 %v920, 2147483648
  %v933 = vor.u32 1.1754944e-38, %v932
  %v934 = vsel %vm931, %v933, %v929
  %v935 = vmul.f32 1.0, %v934
  %v936 = vtanh.pop %v879
  %v937 = vmul.f32 %v935, %v841
  %939 = vrot.lane.b32.xlu0 %v936, 80
  %v940 = vpop.permute.xlu0 %939
  %v942 = vmul.f32 %v935, %v940
  %944 = vrot.lane.b32.xlu0 %v942, 16
  %v945 = vpop.permute.xlu0 %944
  %v947 = vadd.f32 %v937, %v945
  %v948 = vtanh.pop %v947
  %950 = vrot.lane.b32.xlu0 %v948, 16
  %v951 = vpop.permute.xlu0 %950
  %v953 = vmul.f32 %v935, %v951
  %955 = vrot.lane.b32.xlu0 %v916, 96
  %v956 = vpop.permute.xlu0 %955
  %958 = vst.msk [vmem:[%s206] sm:$0x3] %vm200, %v956
  %960 = vrot.lane.b32.xlu0 %v953, 48
  %v961 = vpop.permute.xlu0 %960
  %963 = vst.msk [vmem:[%s4] sm:$0x3] %vm207, %v961
  // Predicated region
  $region18: #{lstm_model_forward.4} parent=0 // pred_check
    _
  $region19: #{lstm_model_forward.4} parent=0 // pred_check_branch
    %965 = sbr.rel (0) target = $region21
  $region20: #{lstm_model_forward.4} parent=0 // pred_region
    _
  $region21: #{lstm_model_forward.4} parent=0 // pred_fallthru
    _
  // Predicated region
  $region22: #{lstm_model_forward.4} parent=0 // pred_check
    _
  $region23: #{lstm_model_forward.4} parent=0 // pred_check_branch
    %967 = sbr.rel (0) target = $region25
  $region24: #{lstm_model_forward.4} parent=0 // pred_region
    _
  $region25: #{lstm_model_forward.4} parent=0 // pred_fallthru
    _

// kernel: lstm_model_forward.5
$region0: #{lstm_model_forward.5}
  #allocation0 [shape = 'u32[]', space=smem, size = 0x4, offset = 0x4, fixed_abs, tag = 'smem constant byte address 0x4 - core index']
  #allocation1 [shape = 'u32[72,128]{1,0:T(1,128)}', space=vmem, size = 0x9000, scoped, tag = 'internal scratch']
  %s0 = inlined_call_operand.vmem [shape: bf16[2,8,32], index: 0, kind: input, shape index: {}, may-alias: {0,1}]
  %s1 = inlined_call_operand.vmem [shape: bf16[2,8,32], index: 1, kind: input, shape index: {}, may-alias: {0,1}]
  %s2 = inlined_call_operand.vmem [shape: f32[2,8], index: 2, kind: input, shape index: {}]
  %s3 = inlined_call_operand.vmem [shape: bf16[32,32], index: 3, kind: input, shape index: {}]
  %s4 = inlined_call_operand.vmem [shape: f32[1,32], index: 4, kind: input, shape index: {}]
  %s5 = inlined_call_operand.vmem [shape: bf16[32,32], index: 5, kind: input, shape index: {}]
  %s6 = inlined_call_operand.vmem [shape: f32[1,32], index: 6, kind: input, shape index: {}]
  %s7 = inlined_call_operand.vmem [shape: bf16[32,7], index: 7, kind: input, shape index: {}]
  %s8 = inlined_call_operand.vmem [shape: f32[1,7], index: 8, kind: input, shape index: {}]
  %s9 = inlined_call_operand.vmem [shape: f32[2,8,7], index: 9, kind: output, shape index: {0}]
  %s10 = inlined_call_operand.vmem [shape: f32[2,8,8], index: 10, kind: output, shape index: {1}]
  %11 = xla_tuple %s9, %s10
  %s12 = sld [smem:[#allocation0]]
  $region54: #{lstm_model_forward.5} parent=0
    _
  %s14 = ssub.s32 1, %s12
  %s15 = scalar_select 0, %s14, %s12
  // Predicated region
  $region2: #{lstm_model_forward.5} parent=0 // pred_check
    _
  $region3: #{lstm_model_forward.5} parent=0 // pred_check_branch
    %17 = sbr.rel (0) target = $region5
  $region4: #{lstm_model_forward.5} parent=0 // pred_region
    _
  $region5: #{lstm_model_forward.5} parent=0 // pred_fallthru
    _
  // Predicated region
  $region6: #{lstm_model_forward.5} parent=0 // pred_check
    _
  $region7: #{lstm_model_forward.5} parent=0 // pred_check_branch
    %19 = sbr.rel (0) target = $region9
  $region8: #{lstm_model_forward.5} parent=0 // pred_region
    _
  $region9: #{lstm_model_forward.5} parent=0 // pred_fallthru
    _
  // Predicated region
  $region10: #{lstm_model_forward.5} parent=0 // pred_check
    _
  $region11: #{lstm_model_forward.5} parent=0 // pred_check_branch
    %21 = sbr.rel (0) target = $region13
  $region12: #{lstm_model_forward.5} parent=0 // pred_region
    _
  $region13: #{lstm_model_forward.5} parent=0 // pred_fallthru
    _
  // Predicated region
  $region14: #{lstm_model_forward.5} parent=0 // pred_check
    _
  $region15: #{lstm_model_forward.5} parent=0 // pred_check_branch
    %23 = sbr.rel (0) target = $region17
  $region16: #{lstm_model_forward.5} parent=0 // pred_region
    _
  $region17: #{lstm_model_forward.5} parent=0 // pred_fallthru
    _
  // Predicated region
  $region18: #{lstm_model_forward.5} parent=0 // pred_check
    _
  $region19: #{lstm_model_forward.5} parent=0 // pred_check_branch
    %25 = sbr.rel (0) target = $region21
  $region20: #{lstm_model_forward.5} parent=0 // pred_region
    _
  $region21: #{lstm_model_forward.5} parent=0 // pred_fallthru
    _
  // Predicated region
  $region22: #{lstm_model_forward.5} parent=0 // pred_check
    _
  $region23: #{lstm_model_forward.5} parent=0 // pred_check_branch
    %27 = sbr.rel (0) target = $region25
  $region24: #{lstm_model_forward.5} parent=0 // pred_region
    _
  $region25: #{lstm_model_forward.5} parent=0 // pred_fallthru
    _
  // Predicated region
  $region26: #{lstm_model_forward.5} parent=0 // pred_check
    _
  $region27: #{lstm_model_forward.5} parent=0 // pred_check_branch
    %29 = sbr.rel (0) target = $region29
  $region28: #{lstm_model_forward.5} parent=0 // pred_region
    _
  $region29: #{lstm_model_forward.5} parent=0 // pred_fallthru
    _
  // Predicated region
  $region30: #{lstm_model_forward.5} parent=0 // pred_check
    _
  $region31: #{lstm_model_forward.5} parent=0 // pred_check_branch
    %31 = sbr.rel (0) target = $region33
  $region32: #{lstm_model_forward.5} parent=0 // pred_region
    _
  $region33: #{lstm_model_forward.5} parent=0 // pred_fallthru
    _
  // Predicated region
  $region34: #{lstm_model_forward.5} parent=0 // pred_check
    _
  $region35: #{lstm_model_forward.5} parent=0 // pred_check_branch
    %33 = sbr.rel (0) target = $region37
  $region36: #{lstm_model_forward.5} parent=0 // pred_region
    _
  $region37: #{lstm_model_forward.5} parent=0 // pred_fallthru
    _
  %v35 = vld [vmem:[%s0] sm:$0xf]
  %v36 = vld [vmem:[%s0 + $0x4] sm:$0xf]
  %v37 = vld [vmem:[%s1] sm:$0xf]
  %v38 = vld [vmem:[%s1 + $0x4] sm:$0xf]
  %v39 = vld [vmem:[%s2] sm:$0x3]
  %v41 = vrot.slane %v39, 1
  %v43 = vld [vmem:[%s3] sm:$0xf]
  %v44 = vld [vmem:[%s3 + $0x4] sm:$0xf]
  %v45 = vld [vmem:[%s3 + $0x8] sm:$0xf]
  %v46 = vld [vmem:[%s3 + $0xc] sm:$0xf]
  %v47 = vld [vmem:[%s4] sm:$0x1]
  %v49 = vperm.slane %v47, 0
  %v53 = vunpack.c.l.b16 %v37
  %v54 = vunpack.c.l.b16 %v38
  %v55 = vpack.c.b16 %v54, %v53
  %v60 = vunpack.c.l.b16 %v43
  %v61 = vunpack.c.l.b16 %v44
  %v62 = vunpack.c.l.b16 %v45
  %v63 = vunpack.c.l.b16 %v46
  %v64 = vpack.c.b16 %v61, %v60
  %v65 = vpack.c.b16 %v63, %v62
  %vm68 = vcmask 261120
  %v70 = vsel %vm68, %v55, 0
  %72 = vmatpush.bf16.msra.mxu0 0
  %73 = vmatpush.bf16.msra.mxu0 0
  %74 = vmatpush.bf16.msra.mxu0 0
  %75 = vmatpush.bf16.msra.mxu0 0
  %76 = vmatpush.bf16.msra.mxu0 0
  %77 = vmatpush.bf16.msra.mxu0 0
  %78 = vmatpush.bf16.msra.mxu0 %v65
  %79 = vmatpush.bf16.msra.mxu0 %v64
  %80 = vmatmul.bf16.gmra.mxu0 %v70
  %v81 = vpop.f32.mrf.mxu0
  %v82 = vadd.f32 %v49, %v81
  %v83 = vpop.f32.mrf.mxu0
  %v84 = vadd.f32 %v49, %v83
  %85 = vdwg.mxu0
  %v86 = vpack.c.bf16 %v82, %v82
  %v87 = vpack.c.bf16 %v84, %v84
  %v89 = vsel %vm68, %v86, 0
  %v92 = vsel %vm68, %v35, 0
  %94 = vmatpush.bf16.xpose.msra.mxu0 0
  %95 = vmatpush.bf16.xpose.msra.mxu0 0
  %96 = vmatpush.bf16.xpose.msra.mxu0 0
  %97 = vmatpush.bf16.xpose.msra.mxu0 0
  %98 = vmatpush.bf16.xpose.msra.mxu0 0
  %99 = vmatpush.bf16.xpose.msra.mxu0 0
  %100 = vmatpush.bf16.xpose.msra.mxu0 0
  %101 = vmatpush.bf16.xpose.msra.mxu0 %v92
  %102 = vmatmul.bf16.gmra.mxu0 %v89
  %v103 = vpop.f32.mrf.mxu0
  %v104 = vadd.f32 0.0, %v103
  %v105 = vpop.f32.mrf.mxu0
  %106 = vdwg.mxu0
  %v108 = vsel %vm68, %v87, 0
  %v111 = vsel %vm68, %v36, 0
  %113 = vmatpush.bf16.xpose.msra.mxu0 0
  %114 = vmatpush.bf16.xpose.msra.mxu0 0
  %115 = vmatpush.bf16.xpose.msra.mxu0 0
  %116 = vmatpush.bf16.xpose.msra.mxu0 0
  %117 = vmatpush.bf16.xpose.msra.mxu0 0
  %118 = vmatpush.bf16.xpose.msra.mxu0 0
  %119 = vmatpush.bf16.xpose.msra.mxu0 0
  %120 = vmatpush.bf16.xpose.msra.mxu0 %v111
  %121 = vmatmul.bf16.gmra.mxu0 %v108
  %v122 = vpop.f32.mrf.mxu0
  %v123 = vadd.f32 0.0, %v122
  %v124 = vpop.f32.mrf.mxu0
  %125 = vdwg.mxu0
  %v126 = vmul.f32 %v39, %v39
  %v127 = vmul.f32 %v41, %v41
  %v130 = vperm.slane %v126, 0
  %v131 = vperm.slane %v127, 0
  %v134 = vmul.f32 %v104, %v130
  %v135 = vmul.f32 %v123, %v131
  %v136 = vtanh.pop %v134
  %v137 = vtanh.pop %v135
  %vm138 = vcmp.gt.f32.partialorder %v39, 0.0
  %vm139 = vcmp.gt.f32.partialorder %v41, 0.0
  %v140 = vsel %vm138, 1, 0
  %v141 = vsel %vm139, 1, 0
  %v142 = vperm.slane %v140, 0
  %v143 = vperm.slane %v141, 0
  %vm144 = vcmp.eq.s32.totalorder %v142, 1
  %vm145 = vcmp.eq.s32.totalorder %v143, 1
  %v146 = vsel %vm144, %v136, -1e+30
  %v147 = vsel %vm145, %v137, -1e+30
  %vm148 = vcmask 64512
  %v149 = vsel %vm148, %v146, -inf
  %150 = vmax.xlane.f32.xlu0 %v149
  %v151 = vpop.xlane.xlu0 %150
  %v152 = vsel %vm148, %v147, -inf
  %153 = vmax.xlane.f32.xlu0 %v152
  %v154 = vpop.xlane.xlu0 %153
  %v155 = vsub.f32 %v146, %v151
  %v156 = vsub.f32 %v147, %v154
  %v157 = vmul.f32 %v155, 1.442695
  %v158 = vpow.pop %v157
  %v159 = vmul.f32 %v156, 1.442695
  %v160 = vpow.pop %v159
  %v161 = vsel %vm148, %v158, 0.0
  %162 = vadd.xlane.f32.xlu0 %v161
  %v163 = vpop.xlane.xlu0 %162
  %v164 = vsel %vm148, %v160, 0.0
  %165 = vadd.xlane.f32.xlu0 %v164
  %v166 = vpop.xlane.xlu0 %165
  %v167 = vrcp.pop %v163
  %v168 = vmul.f32 %v163, %v167
  %v169 = vsub.f32 1.0, %v168
  %v170 = vmul.f32 %v167, %v169
  %v171 = vadd.f32 %v167, %v170
  %vm172 = vweird.f32 %v163
  %vm173 = vweird.f32 %v167
  %vm174 = vmor %vm172, %vm173
  %v175 = vsel %vm174, %v167, %v171
  %v176 = vand.u32 2147483647, %v163
  %vm177 = vcmp.eq.f32.partialorder %v176, 8.507059e+37
  %v178 = vand.u32 %v163, 2147483648
  %v179 = vor.u32 1.1754944e-38, %v178
  %v180 = vsel %vm177, %v179, %v175
  %v181 = vmul.f32 %v158, %v180
  %v182 = vrcp.pop %v166
  %v183 = vmul.f32 %v166, %v182
  %v184 = vsub.f32 1.0, %v183
  %v185 = vmul.f32 %v182, %v184
  %v186 = vadd.f32 %v182, %v185
  %vm187 = vweird.f32 %v166
  %vm188 = vweird.f32 %v182
  %vm189 = vmor %vm187, %vm188
  %v190 = vsel %vm189, %v182, %v186
  %v191 = vand.u32 2147483647, %v166
  %vm192 = vcmp.eq.f32.partialorder %v191, 8.507059e+37
  %v193 = vand.u32 %v166, 2147483648
  %v194 = vor.u32 1.1754944e-38, %v193
  %v195 = vsel %vm192, %v194, %v190
  %v196 = vmul.f32 %v160, %v195
  %v197 = vpack.c.bf16 %v181, %v181
  %v198 = vpack.c.bf16 %v196, %v196
  %v200 = vsel %vm148, %v197, 0
  %vm202 = vcmask 1043456
  %v203 = vsel %vm202, %v35, 0
  %205 = vmatpush.bf16.msra.mxu0 0
  %206 = vmatpush.bf16.msra.mxu0 0
  %207 = vmatpush.bf16.msra.mxu0 0
  %208 = vmatpush.bf16.msra.mxu0 0
  %209 = vmatpush.bf16.msra.mxu0 0
  %210 = vmatpush.bf16.msra.mxu0 0
  %211 = vmatpush.bf16.msra.mxu0 0
  %212 = vmatpush.bf16.msra.mxu0 %v203
  %213 = vmatmul.bf16.gmra.mxu0 %v200
  %v214 = vpop.f32.mrf.mxu0
  %v215 = vadd.f32 0.0, %v214
  %v216 = vpop.f32.mrf.mxu0
  %217 = vdwg.mxu0
  %v219 = vsel %vm148, %v198, 0
  %v221 = vsel %vm202, %v36, 0
  %223 = vmatpush.bf16.msra.mxu0 0
  %224 = vmatpush.bf16.msra.mxu0 0
  %225 = vmatpush.bf16.msra.mxu0 0
  %226 = vmatpush.bf16.msra.mxu0 0
  %227 = vmatpush.bf16.msra.mxu0 0
  %228 = vmatpush.bf16.msra.mxu0 0
  %229 = vmatpush.bf16.msra.mxu0 0
  %230 = vmatpush.bf16.msra.mxu0 %v221
  %231 = vmatmul.bf16.gmra.mxu0 %v219
  %v232 = vpop.f32.mrf.mxu0
  %v233 = vadd.f32 0.0, %v232
  %v234 = vpop.f32.mrf.mxu0
  %235 = vdwg.mxu0
  %v236 = vpack.c.bf16 %v233, %v215
  %v237 = vld [vmem:[%s5] sm:$0xf]
  %v238 = vld [vmem:[%s5 + $0x4] sm:$0xf]
  %v239 = vld [vmem:[%s5 + $0x8] sm:$0xf]
  %v240 = vld [vmem:[%s5 + $0xc] sm:$0xf]
  %v241 = vld [vmem:[%s6] sm:$0x1]
  %v243 = vperm.slane %v241, 0
  %v249 = vunpack.c.l.b16 %v237
  %v250 = vunpack.c.l.b16 %v238
  %v251 = vunpack.c.l.b16 %v239
  %v252 = vunpack.c.l.b16 %v240
  %v253 = vpack.c.b16 %v250, %v249
  %v254 = vpack.c.b16 %v252, %v251
  %v258 = vsel %vm68, %v236, 0
  %260 = vmatpush.bf16.msra.mxu0 0
  %261 = vmatpush.bf16.msra.mxu0 0
  %262 = vmatpush.bf16.msra.mxu0 0
  %263 = vmatpush.bf16.msra.mxu0 0
  %264 = vmatpush.bf16.msra.mxu0 0
  %265 = vmatpush.bf16.msra.mxu0 0
  %266 = vmatpush.bf16.msra.mxu0 %v254
  %267 = vmatpush.bf16.msra.mxu0 %v253
  %268 = vmatmul.bf16.gmra.mxu0 %v258
  %v269 = vpop.f32.mrf.mxu0
  %v270 = vadd.f32 %v243, %v269
  %v271 = vpop.f32.mrf.mxu0
  %v272 = vadd.f32 %v243, %v271
  %273 = vdwg.mxu0
  %v274 = vmax.f32 %v270, 0.0
  %v275 = vmax.f32 %v272, 0.0
  %v276 = vpack.c.bf16 %v275, %v274
  %v277 = vld [vmem:[%s7] sm:$0xf]
  %v278 = vld [vmem:[%s7 + $0x4] sm:$0xf]
  %v279 = vld [vmem:[%s7 + $0x8] sm:$0xf]
  %v280 = vld [vmem:[%s7 + $0xc] sm:$0xf]
  %v281 = vld [vmem:[%s8] sm:$0x1]
  %v283 = vperm.slane %v281, 0
  %v289 = vunpack.c.l.b16 %v277
  %v290 = vunpack.c.l.b16 %v278
  %v291 = vunpack.c.l.b16 %v279
  %v292 = vunpack.c.l.b16 %v280
  %v293 = vpack.c.b16 %v290, %v289
  %v294 = vpack.c.b16 %v292, %v291
  %v298 = vsel %vm68, %v276, 0
  %300 = vmatpush.bf16.msra.mxu0 0
  %301 = vmatpush.bf16.msra.mxu0 0
  %302 = vmatpush.bf16.msra.mxu0 0
  %303 = vmatpush.bf16.msra.mxu0 0
  %304 = vmatpush.bf16.msra.mxu0 0
  %305 = vmatpush.bf16.msra.mxu0 0
  %306 = vmatpush.bf16.msra.mxu0 %v294
  %307 = vmatpush.bf16.msra.mxu0 %v293
  %308 = vmatmul.bf16.gmra.mxu0 %v298
  %v309 = vpop.f32.mrf.mxu0
  %v310 = vadd.f32 %v283, %v309
  %v311 = vpop.f32.mrf.mxu0
  %v312 = vadd.f32 %v283, %v311
  %313 = vdwg.mxu0
  %vm314 = vcmask 56320
  %v315 = vsel %vm314, %v310, -inf
  %316 = vmax.xlane.f32.xlu0 %v315
  %v317 = vpop.xlane.xlu0 %316
  %v318 = vsel %vm314, %v312, -inf
  %319 = vmax.xlane.f32.xlu0 %v318
  %v320 = vpop.xlane.xlu0 %319
  %v321 = vsub.f32 %v310, %v317
  %v322 = vsub.f32 %v312, %v320
  %v323 = vmul.f32 %v321, 1.442695
  %v324 = vpow.pop %v323
  %v325 = vmul.f32 %v322, 1.442695
  %v326 = vpow.pop %v325
  %v327 = vsel %vm314, %v324, 0.0
  %328 = vadd.xlane.f32.xlu0 %v327
  %v329 = vpop.xlane.xlu0 %328
  %v330 = vsel %vm314, %v326, 0.0
  %331 = vadd.xlane.f32.xlu0 %v330
  %v332 = vpop.xlane.xlu0 %331
  %v333 = vlog2.pop %v329
  %v334 = vmul.f32 %v333, 0.6931472
  %v335 = vlog2.pop %v332
  %v336 = vmul.f32 %v335, 0.6931472
  %v337 = vadd.f32 %v317, %v334
  %v338 = vadd.f32 %v320, %v336
  %v339 = vsub.f32 %v310, %v337
  %v340 = vsub.f32 %v312, %v338
  %341 = vst.msk [vmem:[%s9] sm:$0xff] %vm314, %v339
  %342 = vst.msk [vmem:[%s9 + $0x8] sm:$0xff] %vm314, %v340
  %343 = vst.msk [vmem:[%s10] sm:$0xff] %vm148, %v181
  %344 = vst.msk [vmem:[%s10 + $0x8] sm:$0xff] %vm148, %v196
  // Predicated region
  $region38: #{lstm_model_forward.5} parent=0 // pred_check
    _
  $region39: #{lstm_model_forward.5} parent=0 // pred_check_branch
    %346 = sbr.rel (0) target = $region41
  $region40: #{lstm_model_forward.5} parent=0 // pred_region
    _
  $region41: #{lstm_model_forward.5} parent=0 // pred_fallthru
    _
  // Predicated region
  $region42: #{lstm_model_forward.5} parent=0 // pred_check
    _
  $region43: #{lstm_model_forward.5} parent=0 // pred_check_branch
    %348 = sbr.rel (0) target = $region45
  $region44: #{lstm_model_forward.5} parent=0 // pred_region
    _
  $region45: #{lstm_model_forward.5} parent=0 // pred_fallthru
    _
  // Predicated region
  $region46: #{lstm_model_forward.5} parent=0 // pred_check
    _
  $region47: #{lstm_model_forward.5} parent=0 // pred_check_branch
    %350 = sbr.rel (0) target = $region49
  $region48: #{lstm_model_forward.5} parent=0 // pred_region
    _
  $region49: #{lstm_model_forward.5} parent=0 // pred_fallthru
    _
  // Predicated region
  $region50: #{lstm_model_forward.5} parent=0 // pred_check
    _
  $region51: #{lstm_model_forward.5} parent=0 // pred_check_branch
    %352 = sbr.rel (0) target = $region53
  $region52: #{lstm_model_forward.5} parent=0 // pred_region
    _
  $region53: #{lstm_model_forward.5} parent=0 // pred_fallthru
    _

</llo_original>
